<compile_context>
chip_gen: v7x
topology: tpu7x:2x2x1
jax: 0.10.0
libtpu: 0.0.40
codegen_flags: <defaults>
</compile_context>

<pallas_src>
import functools

import jax
import jax.numpy as jnp
from jax.experimental import pallas as pl
from jax.experimental.pallas import tpu as pltpu

# ----------------------------- configuration -----------------------------
POOLING_SIZE = 4            # cfg.POOLING_SIZE
FEAT_STRIDE = 16            # spatial scale 1/16
DOUT_BASE = 128             # self.dout_base_model (lane-dense)
RPN_HIDDEN = 128            # RPN_Conv output channels (lane-dense)
FC_HIDDEN = 128             # head hidden width (lane-dense)
ANCHOR_SCALES = (1.0, 2.0, 4.0)
NUM_ANCHORS = len(ANCHOR_SCALES)
N_CLASSES = 5
N_ROIS = 8                  # proposals kept per image


# ----------------------------- tiled linear (MXU) -----------------------------
def _pick_tile(m, max_tile=512):
    for t in (max_tile, 256, 128, 64, 32, 16, 8):
        if t <= m and m % t == 0:
            return t
    return m


def _linear_kernel(x_ref, w_ref, b_ref, o_ref, *, relu):
    acc = jnp.dot(x_ref[...], w_ref[...], preferred_element_type=jnp.float32)
    acc = acc + b_ref[...]
    if relu:
        acc = jnp.maximum(acc, 0.0)
    o_ref[...] = acc.astype(o_ref.dtype)


def linear(x, w, b, relu=False):
    """x:(M,K) @ w:(K,N) + b:(1,N) (+ReLU), tiled over M with a parallel grid."""
    M, K = x.shape
    N = w.shape[1]
    tm = _pick_tile(M)
    return pl.pallas_call(
        functools.partial(_linear_kernel, relu=relu),
        out_shape=jax.ShapeDtypeStruct((M, N), jnp.float32),
        grid=(M // tm,),
        in_specs=[
            pl.BlockSpec((tm, K), lambda i: (i, 0)),
            pl.BlockSpec((K, N), lambda i: (0, 0)),
            pl.BlockSpec((1, N), lambda i: (0, 0)),
        ],
        out_specs=pl.BlockSpec((tm, N), lambda i: (i, 0)),
        compiler_params=pltpu.CompilerParams(
            dimension_semantics=("parallel",)),
    )(x, w, b)


# ----------------------------- fused RPN kernel -----------------------------
def _rpn_kernel(x_ref, w9_ref, b1_ref, wo_ref, bo_ref, o_ref,
                *, Hf, Wf, Cin, Chid):
    # x_ref: (1, Hf, Wf, Cin) feature tile; w9_ref: (9, Cin, Chid) conv taps;
    # wo_ref: (Chid, 2A+4A) fused 1x1 cls/bbox weights.
    x = x_ref[...][0]                                   # (Hf, Wf, Cin)
    # Build the 1-pixel zero halo in-kernel (zero-concat): no padded HBM copy.
    zrow = jnp.zeros((1, Wf, Cin), jnp.float32)
    xp = jnp.concatenate([zrow, x, zrow], axis=0)       # (Hf+2, Wf,   Cin)
    zcol = jnp.zeros((Hf + 2, 1, Cin), jnp.float32)
    xp = jnp.concatenate([zcol, xp, zcol], axis=1)      # (Hf+2, Wf+2, Cin)

    acc = jnp.zeros((Hf * Wf, Chid), jnp.float32)
    for ky in range(3):
        for kx in range(3):
            patch = xp[ky:ky + Hf, kx:kx + Wf, :].reshape(Hf * Wf, Cin)
            acc = acc + jnp.dot(patch, w9_ref[ky * 3 + kx],
                                preferred_element_type=jnp.float32)
    hidden = jnp.maximum(acc + b1_ref[...], 0.0)        # RPN_Conv + ReLU
    out = jnp.dot(hidden, wo_ref[...],
                  preferred_element_type=jnp.float32) + bo_ref[...]
    o_ref[...] = out.reshape(1, Hf, Wf, out.shape[-1])


def rpn_conv_fused(base_feat, w3x3, b3x3, w_out, b_out):
    B, Hf, Wf, Cin = base_feat.shape
    Chid = w3x3.shape[-1]
    Nout = w_out.shape[-1]
    kernel = functools.partial(_rpn_kernel, Hf=Hf, Wf=Wf, Cin=Cin, Chid=Chid)
    return pl.pallas_call(
        kernel,
        out_shape=jax.ShapeDtypeStruct((B, Hf, Wf, Nout), jnp.float32),
        grid=(B,),
        in_specs=[
            pl.BlockSpec((1, Hf, Wf, Cin), lambda b: (b, 0, 0, 0)),
            pl.BlockSpec((9, Cin, Chid), lambda b: (0, 0, 0)),
            pl.BlockSpec((1, Chid), lambda b: (0, 0)),
            pl.BlockSpec((Chid, Nout), lambda b: (0, 0)),
            pl.BlockSpec((1, Nout), lambda b: (0, 0)),
        ],
        out_specs=pl.BlockSpec((1, Hf, Wf, Nout), lambda b: (b, 0, 0, 0)),
        compiler_params=pltpu.CompilerParams(
            dimension_semantics=("parallel",)),
    )(base_feat, w3x3, b3x3, w_out, b_out)


# ----------------------------- RoI max pooling -----------------------------
def _roi_pool_kernel(bidx_ref, hs_ref, he_ref, ws_ref, we_ref,
                     feat_ref, o_ref, *, P, Hf, Wf):
    # feat_ref: (1, Hf, Wf, C) -- the feature map of this RoI's image (selected
    # by the data-dependent index_map).  Bin extents live in SMEM (prefetch).
    # Pooling is separable: width-max per width-bin, then height-max per
    # height-bin -> ~P x less masked-reduction work than per-bin full-map max.
    del bidx_ref
    r = pl.program_id(0)
    C = o_ref.shape[-1]
    feat = feat_ref[...][0]                              # (Hf, Wf, C)
    neg = jnp.float32(-1e30)
    ww = jax.lax.broadcasted_iota(jnp.int32, (Hf, Wf, 1), 1)
    hh = jax.lax.broadcasted_iota(jnp.int32, (Hf, 1), 0)

    # Stage 1: one (Hf, C) column-max strip per width bin.
    cols = []
    w_ok = []
    for pw in range(P):
        ws = ws_ref[r * P + pw]
        we = we_ref[r * P + pw]
        wmask = (ww >= ws) & (ww < we)                   # (Hf, Wf, 1)
        cols.append(jnp.max(jnp.where(wmask, feat, neg), axis=1))   # (Hf, C)
        w_ok.append(we > ws)

    # Stage 2: height-max of each strip per height bin; zero empty bins.
    rows = []
    for ph in range(P):
        hs = hs_ref[r * P + ph]
        he = he_ref[r * P + ph]
        hmask = (hh >= hs) & (hh < he)                   # (Hf, 1)
        h_ok = he > hs
        for pw in range(P):
            pooled = jnp.max(jnp.where(hmask, cols[pw], neg),
                             axis=0, keepdims=True)      # (1, C)
            keep = jnp.logical_and(h_ok, w_ok[pw])
            rows.append(jnp.where(keep, pooled, 0.0))
    o_ref[...] = jnp.concatenate(rows, axis=0)[None]     # (1, P*P, C)


def roi_max_pool(base_feat, batch_idx, hs, he, ws, we, P):
    B, Hf, Wf, C = base_feat.shape
    R = batch_idx.shape[0]
    kernel = functools.partial(_roi_pool_kernel, P=P, Hf=Hf, Wf=Wf)
    return pl.pallas_call(
        kernel,
        out_shape=jax.ShapeDtypeStruct((R, P * P, C), jnp.float32),
        grid_spec=pltpu.PrefetchScalarGridSpec(
            num_scalar_prefetch=5,
            grid=(R,),
            in_specs=[pl.BlockSpec(
                (1, Hf, Wf, C),
                lambda r, bidx, hs_, he_, ws_, we_: (bidx[r], 0, 0, 0))],
            out_specs=pl.BlockSpec(
                (1, P * P, C),
                lambda r, bidx, hs_, he_, ws_, we_: (r, 0, 0)),
        ),
        compiler_params=pltpu.CompilerParams(
            dimension_semantics=("parallel",)),
    )(batch_idx, hs, he, ws, we, base_feat)


# ----------------------------- fused RoI head -----------------------------
def _head_kernel(x_ref, w1_ref, b1_ref, w2_ref, b2_ref, wo_ref, bo_ref,
                 cls_ref, bbox_ref):
    h = jnp.dot(x_ref[...], w1_ref[...], preferred_element_type=jnp.float32)
    h = jnp.maximum(h + b1_ref[...], 0.0)
    h = jnp.dot(h, w2_ref[...], preferred_element_type=jnp.float32)
    h = jnp.maximum(h + b2_ref[...], 0.0)
    out = jnp.dot(h, wo_ref[...], preferred_element_type=jnp.float32) + bo_ref[...]
    cls_logits = out[:, :N_CLASSES]
    bbox_ref[...] = out[:, N_CLASSES:]
    m = jnp.max(cls_logits, axis=-1, keepdims=True)
    e = jnp.exp(cls_logits - m)
    inv = pl.reciprocal(jnp.sum(e, axis=-1, keepdims=True), approx=True)
    cls_ref[...] = e * inv


def roi_head(pooled_flat, params):
    R = pooled_flat.shape[0]
    return pl.pallas_call(
        _head_kernel,
        out_shape=(jax.ShapeDtypeStruct((R, N_CLASSES), jnp.float32),
                   jax.ShapeDtypeStruct((R, 4 * N_CLASSES), jnp.float32)),
    )(pooled_flat, params["fc1_w"], params["fc1_b"],
      params["fc2_w"], params["fc2_b"],
      params["head_out_w"], params["head_out_b"])


# ----------------------------- JAX glue -----------------------------
def generate_anchors(Hf, Wf, stride, scales):
    # (h, w, a) ordering to match the proposal-layer flattening
    ys = jnp.arange(Hf, dtype=jnp.float32) * stride + stride / 2.0
    xs = jnp.arange(Wf, dtype=jnp.float32) * stride + stride / 2.0
    sizes = jnp.asarray(scales, jnp.float32) * stride
    cy = ys[:, None, None]
    cx = xs[None, :, None]
    s = sizes[None, None, :]
    x1, y1 = cx - s / 2.0, cy - s / 2.0
    x2, y2 = cx + s / 2.0 - 1.0, cy + s / 2.0 - 1.0
    x1, y1, x2, y2 = jnp.broadcast_arrays(x1, y1, x2, y2)
    return jnp.stack([x1, y1, x2, y2], axis=-1).reshape(-1, 4)


def bbox_transform_inv(boxes, deltas):
    widths = boxes[..., 2] - boxes[..., 0] + 1.0
    heights = boxes[..., 3] - boxes[..., 1] + 1.0
    ctr_x = boxes[..., 0] + 0.5 * widths
    ctr_y = boxes[..., 1] + 0.5 * heights
    dx, dy, dw, dh = (deltas[..., 0], deltas[..., 1],
                      deltas[..., 2], deltas[..., 3])
    pred_ctr_x = dx * widths + ctr_x
    pred_ctr_y = dy * heights + ctr_y
    pred_w = jnp.exp(dw) * widths
    pred_h = jnp.exp(dh) * heights
    return jnp.stack([pred_ctr_x - 0.5 * pred_w, pred_ctr_y - 0.5 * pred_h,
                      pred_ctr_x + 0.5 * pred_w, pred_ctr_y + 0.5 * pred_h],
                     axis=-1)


def clip_boxes(boxes, im_info):
    w = im_info[:, 1][:, None] - 1.0
    h = im_info[:, 0][:, None] - 1.0
    return jnp.stack([jnp.clip(boxes[..., 0], 0.0, w),
                      jnp.clip(boxes[..., 1], 0.0, h),
                      jnp.clip(boxes[..., 2], 0.0, w),
                      jnp.clip(boxes[..., 3], 0.0, h)], axis=-1)


def roi_bin_extents(rois_flat, Hf, Wf, P, spatial_scale):
    # Same bin geometry as _RoIPooling; returns 1-D int32 arrays for SMEM.
    x1 = jnp.round(rois_flat[:, 1] * spatial_scale)
    y1 = jnp.round(rois_flat[:, 2] * spatial_scale)
    x2 = jnp.round(rois_flat[:, 3] * spatial_scale)
    y2 = jnp.round(rois_flat[:, 4] * spatial_scale)
    roi_w = jnp.maximum(x2 - x1 + 1.0, 1.0)
    roi_h = jnp.maximum(y2 - y1 + 1.0, 1.0)
    bin_w = roi_w / P
    bin_h = roi_h / P
    p = jnp.arange(P, dtype=jnp.float32)
    hstart = jnp.clip(jnp.floor(p[None, :] * bin_h[:, None]) + y1[:, None], 0, Hf)
    hend = jnp.clip(jnp.ceil((p[None, :] + 1.0) * bin_h[:, None]) + y1[:, None], 0, Hf)
    wstart = jnp.clip(jnp.floor(p[None, :] * bin_w[:, None]) + x1[:, None], 0, Wf)
    wend = jnp.clip(jnp.ceil((p[None, :] + 1.0) * bin_w[:, None]) + x1[:, None], 0, Wf)
    toi = lambda a: a.astype(jnp.int32).reshape(-1)      # (R*P,)
    return toi(hstart), toi(hend), toi(wstart), toi(wend)


# ----------------------------- parameters -----------------------------
def init_params(key):
    ks = jax.random.split(key, 8)
    n = lambda k, shape, std: jax.random.normal(k, shape, jnp.float32) * std
    z = lambda c: jnp.zeros((1, c), jnp.float32)
    A = NUM_ANCHORS
    p = {}
    p["base_w"] = n(ks[0], (FEAT_STRIDE * FEAT_STRIDE * 3, DOUT_BASE), 0.01)
    p["base_b"] = z(DOUT_BASE)
    # RPN_Conv stored as (9, Cin, Cout) taps for the fused kernel
    p["rpn_conv_w"] = n(ks[1], (9, DOUT_BASE, RPN_HIDDEN), 0.01)
    p["rpn_conv_b"] = z(RPN_HIDDEN)
    # RPN_cls_score (2A, [bg*A, fg*A]) and RPN_bbox_pred (4A) fused on N axis
    p["rpn_out_w"] = n(ks[2], (RPN_HIDDEN, 6 * A), 0.01)
    p["rpn_out_b"] = z(6 * A)
    # fc1 defined directly in the (P*P, C) pooled-flatten basis (equivalent to
    # the PyTorch (C, P, P) order under a fixed row permutation of the weight).
    p["fc1_w"] = n(ks[3], (POOLING_SIZE * POOLING_SIZE * DOUT_BASE, FC_HIDDEN), 0.01)
    p["fc1_b"] = z(FC_HIDDEN)
    p["fc2_w"] = n(ks[4], (FC_HIDDEN, FC_HIDDEN), 0.01)
    p["fc2_b"] = z(FC_HIDDEN)
    # RCNN_cls_score (std .01) and RCNN_bbox_pred (std .001) fused on N axis
    p["head_out_w"] = jnp.concatenate(
        [n(ks[5], (FC_HIDDEN, N_CLASSES), 0.01),
         n(ks[6], (FC_HIDDEN, 4 * N_CLASSES), 0.001)], axis=1)
    p["head_out_b"] = z(5 * N_CLASSES)
    return p


# ----------------------------- RPN + proposal layer -----------------------------
def rpn_forward(params, base_feat, im_info):
    B, Hf, Wf, _ = base_feat.shape
    A = NUM_ANCHORS
    rpn_out = rpn_conv_fused(base_feat, params["rpn_conv_w"], params["rpn_conv_b"],
                             params["rpn_out_w"], params["rpn_out_b"])   # (B,Hf,Wf,6A)

    # Softmax over the 2 RPN classes is monotone in (fg - bg), so top-N proposal
    # selection is identical without the 2-lane softmax / reshape round-trips.
    bg = rpn_out[..., :A]
    fg = rpn_out[..., A:2 * A]
    scores = (fg - bg).reshape(B, Hf * Wf * A)            # (h, w, a) order
    deltas = rpn_out[..., 2 * A:].reshape(B, Hf * Wf * A, 4)

    anchors = generate_anchors(Hf, Wf, FEAT_STRIDE, ANCHOR_SCALES)
    proposals = clip_boxes(bbox_transform_inv(anchors[None], deltas), im_info)
    # TODO(synk): NMS in the reference proposal layer has no clean Pallas
    # equivalent; proposals are selected as top-N by foreground score instead.
    order = jnp.argsort(-scores, axis=1)[:, :N_ROIS]
    top_boxes = jnp.take_along_axis(proposals, order[:, :, None], axis=1)
    batch_idx = jnp.broadcast_to(
        jnp.arange(B, dtype=jnp.float32)[:, None, None], (B, N_ROIS, 1))
    return jnp.concatenate([batch_idx, top_boxes], axis=2)               # (B,N,5)


# ----------------------------- full forward (eval path) -----------------------------
def faster_rcnn_forward(params, im_data, im_info, gt_boxes, num_boxes):
    del gt_boxes, num_boxes   # only used by the training branch
    B, _, H, W = im_data.shape
    Hf, Wf = H // FEAT_STRIDE, W // FEAT_STRIDE
    P = POOLING_SIZE

    # RCNN_base: synthetic stride-16 patch-embedding conv + ReLU (the backbone
    # is abstract in the reference class) as a single tiled MXU matmul.
    x = jnp.transpose(im_data, (0, 2, 3, 1))              # NCHW -> NHWC
    patches = x.reshape(B, Hf, FEAT_STRIDE, Wf, FEAT_STRIDE, 3)
    patches = jnp.transpose(patches, (0, 1, 3, 2, 4, 5)).reshape(
        B * Hf * Wf, FEAT_STRIDE * FEAT_STRIDE * 3)
    base_feat = linear(patches, params["base_w"], params["base_b"], relu=True
                       ).reshape(B, Hf, Wf, DOUT_BASE)

    rois = rpn_forward(params, base_feat, im_info)

    # POOLING_MODE == 'pool': RoI max pooling with scalar-prefetched bin extents.
    # TODO(synk): 'crop' (affine-grid RoI crop) and 'align' modes not implemented.
    rois_flat = rois.reshape(-1, 5)
    R = rois_flat.shape[0]
    batch_idx = rois_flat[:, 0].astype(jnp.int32)
    hs, he, ws, we = roi_bin_extents(rois_flat, Hf, Wf, P, 1.0 / FEAT_STRIDE)
    pooled = roi_max_pool(base_feat, batch_idx, hs, he, ws, we, P)       # (R,PP,C)
    pooled_flat = pooled.reshape(R, P * P * DOUT_BASE)    # lane-contiguous flatten

    # _head_to_tail + RCNN_cls_score + RCNN_bbox_pred + softmax, one fused kernel.
    # TODO(synk): training branch (RCNN_proposal_target + losses) not implemented.
    cls_prob, bbox_pred = roi_head(pooled_flat, params)

    cls_prob = cls_prob.reshape(B, rois.shape[1], -1)
    bbox_pred = bbox_pred.reshape(B, rois.shape[1], -1)
    return rois, cls_prob, bbox_pred


# ----------------------------- main -----------------------------
if __name__ == "__main__":
    key = jax.random.PRNGKey(0)
    k_param, k_data = jax.random.split(key)
    params = init_params(k_param)

    B, H, W = 2, 64, 64
    im_data = jax.random.normal(k_data, (B, 3, H, W), jnp.float32)       # NCHW
    im_info = jnp.array([[H, W, 1.0], [H, W, 1.0]], jnp.float32)
    gt_boxes = jnp.zeros((B, 5, 5), jnp.float32)
    num_boxes = jnp.zeros((B,), jnp.int32)

    fwd = jax.jit(faster_rcnn_forward)
    rois, cls_prob, bbox_pred = fwd(params, im_data, im_info, gt_boxes, num_boxes)
    jax.block_until_ready((rois, cls_prob, bbox_pred))

    assert rois.shape == (B, N_ROIS, 5)
    assert cls_prob.shape == (B, N_ROIS, N_CLASSES)
    assert bbox_pred.shape == (B, N_ROIS, 4 * N_CLASSES)
    print("KERNEL_OK")
</pallas_src>

<mosaic_0001>
module attributes {stable_mosaic.version = 11 : i64} {
  func.func @_linear_kernel(%arg0: i32, %arg1: memref<32x768xf32, #tpu.memory_space<vmem>>, %arg2: memref<768x128xf32, #tpu.memory_space<vmem>>, %arg3: memref<1x128xf32, #tpu.memory_space<vmem>>, %arg4: memref<32x128xf32, #tpu.memory_space<vmem>>) attributes {dimension_semantics = [#tpu.dimension_semantics<parallel>], iteration_bounds = array<i64: 1>, scalar_prefetch = 0 : i64, scratch_operands = 0 : i64, tpu.core_type = #tpu.core_type<tc>, window_params = [{transform_indices = @transform_0, window_bounds = array<i64: 32, 768>}, {pipeline_mode = #tpu.pipeline_mode<synchronous>, transform_indices = @transform_1, window_bounds = array<i64: 768, 128>}, {pipeline_mode = #tpu.pipeline_mode<synchronous>, transform_indices = @transform_2, window_bounds = array<i64: 1, 128>}, {transform_indices = @transform_3, window_bounds = array<i64: 32, 128>}]} {
    %c0 = arith.constant 0 : index
    %c0_0 = arith.constant 0 : index
    %0 = vector.load %arg1[%c0, %c0_0] : memref<32x768xf32, #tpu.memory_space<vmem>>, vector<32x768xf32>
    %c0_1 = arith.constant 0 : index
    %c0_2 = arith.constant 0 : index
    %1 = vector.load %arg2[%c0_1, %c0_2] : memref<768x128xf32, #tpu.memory_space<vmem>>, vector<768x128xf32>
    %cst = arith.constant dense<0.000000e+00> : vector<32x128xf32>
    %2 = tpu.matmul %0, %1, %cst {dimension_numbers = #tpu.dot_dimension_numbers<[1], [0], [0], [1], [0, 0, 1, 1], [], []>} : vector<32x768xf32>, vector<768x128xf32>, vector<32x128xf32> -> vector<32x128xf32>
    %c0_3 = arith.constant 0 : index
    %c0_4 = arith.constant 0 : index
    %3 = vector.load %arg3[%c0_3, %c0_4] : memref<1x128xf32, #tpu.memory_space<vmem>>, vector<1x128xf32>
    %4 = vector.broadcast %3 : vector<1x128xf32> to vector<32x128xf32>
    %5 = arith.addf %2, %4 : vector<32x128xf32>
    %cst_5 = arith.constant 0.000000e+00 : f32
    %6 = vector.broadcast %cst_5 : f32 to vector<32x128xf32>
    %7 = arith.maximumf %5, %6 : vector<32x128xf32>
    %c0_6 = arith.constant 0 : index
    %c0_7 = arith.constant 0 : index
    %8 = vector.load %arg4[%c0_6, %c0_7] : memref<32x128xf32, #tpu.memory_space<vmem>>, vector<32x128xf32>
    tpu.vector_store %arg4[%c0_6, %c0_7], %7 {strides = array<i32>} : memref<32x128xf32, #tpu.memory_space<vmem>>, vector<32x128xf32>,
    return
  }
  func.func @transform_0(%arg0: i32) -> (i32, i32) {
    %c0_i32 = arith.constant 0 : i32
    %c0_i32_0 = arith.constant 0 : i32
    return %arg0, %c0_i32 : i32, i32
  }
  func.func @transform_1(%arg0: i32) -> (i32, i32) {
    %c0_i32 = arith.constant 0 : i32
    %c0_i32_0 = arith.constant 0 : i32
    %c0_i32_1 = arith.constant 0 : i32
    return %c0_i32, %c0_i32_0 : i32, i32
  }
  func.func @transform_2(%arg0: i32) -> (i32, i32) {
    %c0_i32 = arith.constant 0 : i32
    %c0_i32_0 = arith.constant 0 : i32
    %c0_i32_1 = arith.constant 0 : i32
    return %c0_i32, %c0_i32_0 : i32, i32
  }
  func.func @transform_3(%arg0: i32) -> (i32, i32) {
    %c0_i32 = arith.constant 0 : i32
    %c0_i32_0 = arith.constant 0 : i32
    return %arg0, %c0_i32 : i32, i32
  }
}

module attributes {stable_mosaic.version = 11 : i64} {
  func.func @_rpn_kernel(%arg0: i32, %arg1: memref<1x4x4x128xf32, #tpu.memory_space<vmem>>, %arg2: memref<9x128x128xf32, #tpu.memory_space<vmem>>, %arg3: memref<1x128xf32, #tpu.memory_space<vmem>>, %arg4: memref<128x18xf32, #tpu.memory_space<vmem>>, %arg5: memref<1x18xf32, #tpu.memory_space<vmem>>, %arg6: memref<1x4x4x18xf32, #tpu.memory_space<vmem>>) attributes {dimension_semantics = [#tpu.dimension_semantics<parallel>], iteration_bounds = array<i64: 2>, scalar_prefetch = 0 : i64, scratch_operands = 0 : i64, tpu.core_type = #tpu.core_type<tc>, window_params = [{transform_indices = @transform_0, window_bounds = array<i64: 1, 4, 4, 128>}, {pipeline_mode = #tpu.pipeline_mode<synchronous>, transform_indices = @transform_1, window_bounds = array<i64: 9, 128, 128>}, {pipeline_mode = #tpu.pipeline_mode<synchronous>, transform_indices = @transform_2, window_bounds = array<i64: 1, 128>}, {pipeline_mode = #tpu.pipeline_mode<synchronous>, transform_indices = @transform_3, window_bounds = array<i64: 128, 18>}, {pipeline_mode = #tpu.pipeline_mode<synchronous>, transform_indices = @transform_4, window_bounds = array<i64: 1, 18>}, {transform_indices = @transform_5, window_bounds = array<i64: 1, 4, 4, 18>}]} {
    %c0 = arith.constant 0 : index
    %c0_0 = arith.constant 0 : index
    %c0_1 = arith.constant 0 : index
    %c0_2 = arith.constant 0 : index
    %0 = vector.load %arg1[%c0, %c0_0, %c0_1, %c0_2] : memref<1x4x4x128xf32, #tpu.memory_space<vmem>>, vector<1x4x4x128xf32>
    %1 = vector.shape_cast %0 : vector<1x4x4x128xf32> to vector<4x4x128xf32>
    %cst = arith.constant 0.000000e+00 : f32
    %2 = vector.broadcast %cst : f32 to vector<1x4x128xf32>
    %3 = tpu.concatenate %2, %1, %2 in 0 : vector<1x4x128xf32>, vector<4x4x128xf32>, vector<1x4x128xf32> -> vector<6x4x128xf32>
    %cst_3 = arith.constant 0.000000e+00 : f32
    %4 = vector.broadcast %cst_3 : f32 to vector<6x1x128xf32>
    %5 = tpu.concatenate %4, %3, %4 in 1 : vector<6x1x128xf32>, vector<6x4x128xf32>, vector<6x1x128xf32> -> vector<6x6x128xf32>
    %cst_4 = arith.constant 0.000000e+00 : f32
    %6 = vector.broadcast %cst_4 : f32 to vector<16x128xf32>
    %7 = vector.extract_strided_slice %5 {offsets = [0, 0, 0], sizes = [4, 4, 128], strides = [1, 1, 1]} : vector<6x6x128xf32> to vector<4x4x128xf32>
    %8 = vector.shape_cast %7 : vector<4x4x128xf32> to vector<16x128xf32>
    %c0_5 = arith.constant 0 : index
    %c0_6 = arith.constant 0 : index
    %c0_7 = arith.constant 0 : index
    %9 = vector.load %arg2[%c0_5, %c0_6, %c0_7] : memref<9x128x128xf32, #tpu.memory_space<vmem>>, vector<1x128x128xf32>
    %10 = vector.shape_cast %9 : vector<1x128x128xf32> to vector<128x128xf32>
    %cst_8 = arith.constant dense<0.000000e+00> : vector<16x128xf32>
    %11 = tpu.matmul %8, %10, %cst_8 {dimension_numbers = #tpu.dot_dimension_numbers<[1], [0], [0], [1], [0, 0, 1, 1], [], []>} : vector<16x128xf32>, vector<128x128xf32>, vector<16x128xf32> -> vector<16x128xf32>
    %12 = arith.addf %6, %11 : vector<16x128xf32>
    %13 = vector.extract_strided_slice %5 {offsets = [0, 1, 0], sizes = [4, 4, 128], strides = [1, 1, 1]} : vector<6x6x128xf32> to vector<4x4x128xf32>
    %14 = vector.shape_cast %13 : vector<4x4x128xf32> to vector<16x128xf32>
    %c1 = arith.constant 1 : index
    %c0_9 = arith.constant 0 : index
    %c0_10 = arith.constant 0 : index
    %15 = vector.load %arg2[%c1, %c0_9, %c0_10] : memref<9x128x128xf32, #tpu.memory_space<vmem>>, vector<1x128x128xf32>
    %16 = vector.shape_cast %15 : vector<1x128x128xf32> to vector<128x128xf32>
    %cst_11 = arith.constant dense<0.000000e+00> : vector<16x128xf32>
    %17 = tpu.matmul %14, %16, %cst_11 {dimension_numbers = #tpu.dot_dimension_numbers<[1], [0], [0], [1], [0, 0, 1, 1], [], []>} : vector<16x128xf32>, vector<128x128xf32>, vector<16x128xf32> -> vector<16x128xf32>
    %18 = arith.addf %12, %17 : vector<16x128xf32>
    %19 = vector.extract_strided_slice %5 {offsets = [0, 2, 0], sizes = [4, 4, 128], strides = [1, 1, 1]} : vector<6x6x128xf32> to vector<4x4x128xf32>
    %20 = vector.shape_cast %19 : vector<4x4x128xf32> to vector<16x128xf32>
    %c2 = arith.constant 2 : index
    %c0_12 = arith.constant 0 : index
    %c0_13 = arith.constant 0 : index
    %21 = vector.load %arg2[%c2, %c0_12, %c0_13] : memref<9x128x128xf32, #tpu.memory_space<vmem>>, vector<1x128x128xf32>
    %22 = vector.shape_cast %21 : vector<1x128x128xf32> to vector<128x128xf32>
    %cst_14 = arith.constant dense<0.000000e+00> : vector<16x128xf32>
    %23 = tpu.matmul %20, %22, %cst_14 {dimension_numbers = #tpu.dot_dimension_numbers<[1], [0], [0], [1], [0, 0, 1, 1], [], []>} : vector<16x128xf32>, vector<128x128xf32>, vector<16x128xf32> -> vector<16x128xf32>
    %24 = arith.addf %18, %23 : vector<16x128xf32>
    %25 = vector.extract_strided_slice %5 {offsets = [1, 0, 0], sizes = [4, 4, 128], strides = [1, 1, 1]} : vector<6x6x128xf32> to vector<4x4x128xf32>
    %26 = vector.shape_cast %25 : vector<4x4x128xf32> to vector<16x128xf32>
    %c3 = arith.constant 3 : index
    %c0_15 = arith.constant 0 : index
    %c0_16 = arith.constant 0 : index
    %27 = vector.load %arg2[%c3, %c0_15, %c0_16] : memref<9x128x128xf32, #tpu.memory_space<vmem>>, vector<1x128x128xf32>
    %28 = vector.shape_cast %27 : vector<1x128x128xf32> to vector<128x128xf32>
    %cst_17 = arith.constant dense<0.000000e+00> : vector<16x128xf32>
    %29 = tpu.matmul %26, %28, %cst_17 {dimension_numbers = #tpu.dot_dimension_numbers<[1], [0], [0], [1], [0, 0, 1, 1], [], []>} : vector<16x128xf32>, vector<128x128xf32>, vector<16x128xf32> -> vector<16x128xf32>
    %30 = arith.addf %24, %29 : vector<16x128xf32>
    %31 = vector.extract_strided_slice %5 {offsets = [1, 1, 0], sizes = [4, 4, 128], strides = [1, 1, 1]} : vector<6x6x128xf32> to vector<4x4x128xf32>
    %32 = vector.shape_cast %31 : vector<4x4x128xf32> to vector<16x128xf32>
    %c4 = arith.constant 4 : index
    %c0_18 = arith.constant 0 : index
    %c0_19 = arith.constant 0 : index
    %33 = vector.load %arg2[%c4, %c0_18, %c0_19] : memref<9x128x128xf32, #tpu.memory_space<vmem>>, vector<1x128x128xf32>
    %34 = vector.shape_cast %33 : vector<1x128x128xf32> to vector<128x128xf32>
    %cst_20 = arith.constant dense<0.000000e+00> : vector<16x128xf32>
    %35 = tpu.matmul %32, %34, %cst_20 {dimension_numbers = #tpu.dot_dimension_numbers<[1], [0], [0], [1], [0, 0, 1, 1], [], []>} : vector<16x128xf32>, vector<128x128xf32>, vector<16x128xf32> -> vector<16x128xf32>
    %36 = arith.addf %30, %35 : vector<16x128xf32>
    %37 = vector.extract_strided_slice %5 {offsets = [1, 2, 0], sizes = [4, 4, 128], strides = [1, 1, 1]} : vector<6x6x128xf32> to vector<4x4x128xf32>
    %38 = vector.shape_cast %37 : vector<4x4x128xf32> to vector<16x128xf32>
    %c5 = arith.constant 5 : index
    %c0_21 = arith.constant 0 : index
    %c0_22 = arith.constant 0 : index
    %39 = vector.load %arg2[%c5, %c0_21, %c0_22] : memref<9x128x128xf32, #tpu.memory_space<vmem>>, vector<1x128x128xf32>
    %40 = vector.shape_cast %39 : vector<1x128x128xf32> to vector<128x128xf32>
    %cst_23 = arith.constant dense<0.000000e+00> : vector<16x128xf32>
    %41 = tpu.matmul %38, %40, %cst_23 {dimension_numbers = #tpu.dot_dimension_numbers<[1], [0], [0], [1], [0, 0, 1, 1], [], []>} : vector<16x128xf32>, vector<128x128xf32>, vector<16x128xf32> -> vector<16x128xf32>
    %42 = arith.addf %36, %41 : vector<16x128xf32>
    %43 = vector.extract_strided_slice %5 {offsets = [2, 0, 0], sizes = [4, 4, 128], strides = [1, 1, 1]} : vector<6x6x128xf32> to vector<4x4x128xf32>
    %44 = vector.shape_cast %43 : vector<4x4x128xf32> to vector<16x128xf32>
    %c6 = arith.constant 6 : index
    %c0_24 = arith.constant 0 : index
    %c0_25 = arith.constant 0 : index
    %45 = vector.load %arg2[%c6, %c0_24, %c0_25] : memref<9x128x128xf32, #tpu.memory_space<vmem>>, vector<1x128x128xf32>
    %46 = vector.shape_cast %45 : vector<1x128x128xf32> to vector<128x128xf32>
    %cst_26 = arith.constant dense<0.000000e+00> : vector<16x128xf32>
    %47 = tpu.matmul %44, %46, %cst_26 {dimension_numbers = #tpu.dot_dimension_numbers<[1], [0], [0], [1], [0, 0, 1, 1], [], []>} : vector<16x128xf32>, vector<128x128xf32>, vector<16x128xf32> -> vector<16x128xf32>
    %48 = arith.addf %42, %47 : vector<16x128xf32>
    %49 = vector.extract_strided_slice %5 {offsets = [2, 1, 0], sizes = [4, 4, 128], strides = [1, 1, 1]} : vector<6x6x128xf32> to vector<4x4x128xf32>
    %50 = vector.shape_cast %49 : vector<4x4x128xf32> to vector<16x128xf32>
    %c7 = arith.constant 7 : index
    %c0_27 = arith.constant 0 : index
    %c0_28 = arith.constant 0 : index
    %51 = vector.load %arg2[%c7, %c0_27, %c0_28] : memref<9x128x128xf32, #tpu.memory_space<vmem>>, vector<1x128x128xf32>
    %52 = vector.shape_cast %51 : vector<1x128x128xf32> to vector<128x128xf32>
    %cst_29 = arith.constant dense<0.000000e+00> : vector<16x128xf32>
    %53 = tpu.matmul %50, %52, %cst_29 {dimension_numbers = #tpu.dot_dimension_numbers<[1], [0], [0], [1], [0, 0, 1, 1], [], []>} : vector<16x128xf32>, vector<128x128xf32>, vector<16x128xf32> -> vector<16x128xf32>
    %54 = arith.addf %48, %53 : vector<16x128xf32>
    %55 = vector.extract_strided_slice %5 {offsets = [2, 2, 0], sizes = [4, 4, 128], strides = [1, 1, 1]} : vector<6x6x128xf32> to vector<4x4x128xf32>
    %56 = vector.shape_cast %55 : vector<4x4x128xf32> to vector<16x128xf32>
    %c8 = arith.constant 8 : index
    %c0_30 = arith.constant 0 : index
    %c0_31 = arith.constant 0 : index
    %57 = vector.load %arg2[%c8, %c0_30, %c0_31] : memref<9x128x128xf32, #tpu.memory_space<vmem>>, vector<1x128x128xf32>
    %58 = vector.shape_cast %57 : vector<1x128x128xf32> to vector<128x128xf32>
    %cst_32 = arith.constant dense<0.000000e+00> : vector<16x128xf32>
    %59 = tpu.matmul %56, %58, %cst_32 {dimension_numbers = #tpu.dot_dimension_numbers<[1], [0], [0], [1], [0, 0, 1, 1], [], []>} : vector<16x128xf32>, vector<128x128xf32>, vector<16x128xf32> -> vector<16x128xf32>
    %60 = arith.addf %54, %59 : vector<16x128xf32>
    %c0_33 = arith.constant 0 : index
    %c0_34 = arith.constant 0 : index
    %61 = vector.load %arg3[%c0_33, %c0_34] : memref<1x128xf32, #tpu.memory_space<vmem>>, vector<1x128xf32>
    %62 = vector.broadcast %61 : vector<1x128xf32> to vector<16x128xf32>
    %63 = arith.addf %60, %62 : vector<16x128xf32>
    %cst_35 = arith.constant 0.000000e+00 : f32
    %64 = vector.broadcast %cst_35 : f32 to vector<16x128xf32>
    %65 = arith.maximumf %63, %64 : vector<16x128xf32>
    %c0_36 = arith.constant 0 : index
    %c0_37 = arith.constant 0 : index
    %66 = vector.load %arg4[%c0_36, %c0_37] : memref<128x18xf32, #tpu.memory_space<vmem>>, vector<128x18xf32>
    %cst_38 = arith.constant dense<0.000000e+00> : vector<16x18xf32>
    %67 = tpu.matmul %65, %66, %cst_38 {dimension_numbers = #tpu.dot_dimension_numbers<[1], [0], [0], [1], [0, 0, 1, 1], [], []>} : vector<16x128xf32>, vector<128x18xf32>, vector<16x18xf32> -> vector<16x18xf32>
    %c0_39 = arith.constant 0 : index
    %c0_40 = arith.constant 0 : index
    %68 = vector.load %arg5[%c0_39, %c0_40] : memref<1x18xf32, #tpu.memory_space<vmem>>, vector<1x18xf32>
    %69 = vector.broadcast %68 : vector<1x18xf32> to vector<16x18xf32>
    %70 = arith.addf %67, %69 : vector<16x18xf32>
    %71 = vector.shape_cast %70 : vector<16x18xf32> to vector<1x4x4x18xf32>
    %c0_41 = arith.constant 0 : index
    %c0_42 = arith.constant 0 : index
    %c0_43 = arith.constant 0 : index
    %c0_44 = arith.constant 0 : index
    %72 = vector.load %arg6[%c0_41, %c0_42, %c0_43, %c0_44] : memref<1x4x4x18xf32, #tpu.memory_space<vmem>>, vector<1x4x4x18xf32>
    tpu.vector_store %arg6[%c0_41, %c0_42, %c0_43, %c0_44], %71 {strides = array<i32>} : memref<1x4x4x18xf32, #tpu.memory_space<vmem>>, vector<1x4x4x18xf32>,
    return
  }
  func.func @transform_0(%arg0: i32) -> (i32, i32, i32, i32) {
    %c0_i32 = arith.constant 0 : i32
    %c0_i32_0 = arith.constant 0 : i32
    %c0_i32_1 = arith.constant 0 : i32
    %c0_i32_2 = arith.constant 0 : i32
    return %arg0, %c0_i32, %c0_i32_0, %c0_i32_1 : i32, i32, i32, i32
  }
  func.func @transform_1(%arg0: i32) -> (i32, i32, i32) {
    %c0_i32 = arith.constant 0 : i32
    %c0_i32_0 = arith.constant 0 : i32
    %c0_i32_1 = arith.constant 0 : i32
    %c0_i32_2 = arith.constant 0 : i32
    return %c0_i32, %c0_i32_0, %c0_i32_1 : i32, i32, i32
  }
  func.func @transform_2(%arg0: i32) -> (i32, i32) {
    %c0_i32 = arith.constant 0 : i32
    %c0_i32_0 = arith.constant 0 : i32
    %c0_i32_1 = arith.constant 0 : i32
    return %c0_i32, %c0_i32_0 : i32, i32
  }
  func.func @transform_3(%arg0: i32) -> (i32, i32) {
    %c0_i32 = arith.constant 0 : i32
    %c0_i32_0 = arith.constant 0 : i32
    %c0_i32_1 = arith.constant 0 : i32
    return %c0_i32, %c0_i32_0 : i32, i32
  }
  func.func @transform_4(%arg0: i32) -> (i32, i32) {
    %c0_i32 = arith.constant 0 : i32
    %c0_i32_0 = arith.constant 0 : i32
    %c0_i32_1 = arith.constant 0 : i32
    return %c0_i32, %c0_i32_0 : i32, i32
  }
  func.func @transform_5(%arg0: i32) -> (i32, i32, i32, i32) {
    %c0_i32 = arith.constant 0 : i32
    %c0_i32_0 = arith.constant 0 : i32
    %c0_i32_1 = arith.constant 0 : i32
    %c0_i32_2 = arith.constant 0 : i32
    return %arg0, %c0_i32, %c0_i32_0, %c0_i32_1 : i32, i32, i32, i32
  }
}

module attributes {stable_mosaic.version = 11 : i64} {
  func.func @_roi_pool_kernel(%arg0: i32, %arg1: memref<16xi32, #tpu.memory_space<smem>>, %arg2: memref<64xi32, #tpu.memory_space<smem>>, %arg3: memref<64xi32, #tpu.memory_space<smem>>, %arg4: memref<64xi32, #tpu.memory_space<smem>>, %arg5: memref<64xi32, #tpu.memory_space<smem>>, %arg6: memref<1x4x4x128xf32, #tpu.memory_space<vmem>>, %arg7: memref<1x16x128xf32, #tpu.memory_space<vmem>>) attributes {dimension_semantics = [#tpu.dimension_semantics<parallel>], iteration_bounds = array<i64: 16>, scalar_prefetch = 5 : i64, scratch_operands = 0 : i64, tpu.core_type = #tpu.core_type<tc>, window_params = [{transform_indices = @transform_0, window_bounds = array<i64: 1, 4, 4, 128>}, {transform_indices = @transform_1, window_bounds = array<i64: 1, 16, 128>}]} {
    %c0 = arith.constant 0 : index
    %c0_0 = arith.constant 0 : index
    %c0_1 = arith.constant 0 : index
    %c0_2 = arith.constant 0 : index
    %0 = vector.load %arg6[%c0, %c0_0, %c0_1, %c0_2] : memref<1x4x4x128xf32, #tpu.memory_space<vmem>>, vector<1x4x4x128xf32>
    %1 = vector.shape_cast %0 : vector<1x4x4x128xf32> to vector<4x4x128xf32>
    %2 = tpu.iota {dimensions = array<i32: 1>} : vector<4x4x1xi32>
    %3 = tpu.iota {dimensions = array<i32: 0>} : vector<4x1xi32>
    %c4_i32 = arith.constant 4 : i32
    %4 = arith.muli %arg0, %c4_i32 : i32
    %c0_i32 = arith.constant 0 : i32
    %5 = arith.addi %4, %c0_i32 : i32
    %6 = arith.index_cast %5 : i32 to index
    %7 = memref.load %arg4[%6] : memref<64xi32, #tpu.memory_space<smem>>
    %c4_i32_3 = arith.constant 4 : i32
    %8 = arith.muli %arg0, %c4_i32_3 : i32
    %c0_i32_4 = arith.constant 0 : i32
    %9 = arith.addi %8, %c0_i32_4 : i32
    %10 = arith.index_cast %9 : i32 to index
    %11 = memref.load %arg5[%10] : memref<64xi32, #tpu.memory_space<smem>>
    %12 = vector.broadcast %7 : i32 to vector<4x4x1xi32>
    %13 = arith.cmpi sge, %2, %12 : vector<4x4x1xi32>
    %14 = vector.broadcast %11 : i32 to vector<4x4x1xi32>
    %15 = arith.cmpi slt, %2, %14 : vector<4x4x1xi32>
    %16 = arith.andi %13, %15 : vector<4x4x1xi1>
    %cst = arith.constant -1.000000e+30 : f32
    %17 = vector.shape_cast %16 : vector<4x4x1xi1> to vector<4x4x1xi1>
    %18 = vector.broadcast %17 : vector<4x4x1xi1> to vector<4x4x128xi1>
    %19 = vector.broadcast %cst : f32 to vector<4x4x128xf32>
    %20 = arith.select %18, %1, %19 : vector<4x4x128xi1>, vector<4x4x128xf32>
    %cst_5 = arith.constant dense<0xFF800000> : vector<4x128xf32>
    %21 = vector.multi_reduction <maximumf>, %20, %cst_5 [1] : vector<4x4x128xf32> to vector<4x128xf32>
    %22 = arith.cmpi sgt, %11, %7 : i32
    %c4_i32_6 = arith.constant 4 : i32
    %23 = arith.muli %arg0, %c4_i32_6 : i32
    %c1_i32 = arith.constant 1 : i32
    %24 = arith.addi %23, %c1_i32 : i32
    %25 = arith.index_cast %24 : i32 to index
    %26 = memref.load %arg4[%25] : memref<64xi32, #tpu.memory_space<smem>>
    %c4_i32_7 = arith.constant 4 : i32
    %27 = arith.muli %arg0, %c4_i32_7 : i32
    %c1_i32_8 = arith.constant 1 : i32
    %28 = arith.addi %27, %c1_i32_8 : i32
    %29 = arith.index_cast %28 : i32 to index
    %30 = memref.load %arg5[%29] : memref<64xi32, #tpu.memory_space<smem>>
    %31 = vector.broadcast %26 : i32 to vector<4x4x1xi32>
    %32 = arith.cmpi sge, %2, %31 : vector<4x4x1xi32>
    %33 = vector.broadcast %30 : i32 to vector<4x4x1xi32>
    %34 = arith.cmpi slt, %2, %33 : vector<4x4x1xi32>
    %35 = arith.andi %32, %34 : vector<4x4x1xi1>
    %cst_9 = arith.constant -1.000000e+30 : f32
    %36 = vector.shape_cast %35 : vector<4x4x1xi1> to vector<4x4x1xi1>
    %37 = vector.broadcast %36 : vector<4x4x1xi1> to vector<4x4x128xi1>
    %38 = vector.broadcast %cst_9 : f32 to vector<4x4x128xf32>
    %39 = arith.select %37, %1, %38 : vector<4x4x128xi1>, vector<4x4x128xf32>
    %cst_10 = arith.constant dense<0xFF800000> : vector<4x128xf32>
    %40 = vector.multi_reduction <maximumf>, %39, %cst_10 [1] : vector<4x4x128xf32> to vector<4x128xf32>
    %41 = arith.cmpi sgt, %30, %26 : i32
    %c4_i32_11 = arith.constant 4 : i32
    %42 = arith.muli %arg0, %c4_i32_11 : i32
    %c2_i32 = arith.constant 2 : i32
    %43 = arith.addi %42, %c2_i32 : i32
    %44 = arith.index_cast %43 : i32 to index
    %45 = memref.load %arg4[%44] : memref<64xi32, #tpu.memory_space<smem>>
    %c4_i32_12 = arith.constant 4 : i32
    %46 = arith.muli %arg0, %c4_i32_12 : i32
    %c2_i32_13 = arith.constant 2 : i32
    %47 = arith.addi %46, %c2_i32_13 : i32
    %48 = arith.index_cast %47 : i32 to index
    %49 = memref.load %arg5[%48] : memref<64xi32, #tpu.memory_space<smem>>
    %50 = vector.broadcast %45 : i32 to vector<4x4x1xi32>
    %51 = arith.cmpi sge, %2, %50 : vector<4x4x1xi32>
    %52 = vector.broadcast %49 : i32 to vector<4x4x1xi32>
    %53 = arith.cmpi slt, %2, %52 : vector<4x4x1xi32>
    %54 = arith.andi %51, %53 : vector<4x4x1xi1>
    %cst_14 = arith.constant -1.000000e+30 : f32
    %55 = vector.shape_cast %54 : vector<4x4x1xi1> to vector<4x4x1xi1>
    %56 = vector.broadcast %55 : vector<4x4x1xi1> to vector<4x4x128xi1>
    %57 = vector.broadcast %cst_14 : f32 to vector<4x4x128xf32>
    %58 = arith.select %56, %1, %57 : vector<4x4x128xi1>, vector<4x4x128xf32>
    %cst_15 = arith.constant dense<0xFF800000> : vector<4x128xf32>
    %59 = vector.multi_reduction <maximumf>, %58, %cst_15 [1] : vector<4x4x128xf32> to vector<4x128xf32>
    %60 = arith.cmpi sgt, %49, %45 : i32
    %c4_i32_16 = arith.constant 4 : i32
    %61 = arith.muli %arg0, %c4_i32_16 : i32
    %c3_i32 = arith.constant 3 : i32
    %62 = arith.addi %61, %c3_i32 : i32
    %63 = arith.index_cast %62 : i32 to index
    %64 = memref.load %arg4[%63] : memref<64xi32, #tpu.memory_space<smem>>
    %c4_i32_17 = arith.constant 4 : i32
    %65 = arith.muli %arg0, %c4_i32_17 : i32
    %c3_i32_18 = arith.constant 3 : i32
    %66 = arith.addi %65, %c3_i32_18 : i32
    %67 = arith.index_cast %66 : i32 to index
    %68 = memref.load %arg5[%67] : memref<64xi32, #tpu.memory_space<smem>>
    %69 = vector.broadcast %64 : i32 to vector<4x4x1xi32>
    %70 = arith.cmpi sge, %2, %69 : vector<4x4x1xi32>
    %71 = vector.broadcast %68 : i32 to vector<4x4x1xi32>
    %72 = arith.cmpi slt, %2, %71 : vector<4x4x1xi32>
    %73 = arith.andi %70, %72 : vector<4x4x1xi1>
    %cst_19 = arith.constant -1.000000e+30 : f32
    %74 = vector.shape_cast %73 : vector<4x4x1xi1> to vector<4x4x1xi1>
    %75 = vector.broadcast %74 : vector<4x4x1xi1> to vector<4x4x128xi1>
    %76 = vector.broadcast %cst_19 : f32 to vector<4x4x128xf32>
    %77 = arith.select %75, %1, %76 : vector<4x4x128xi1>, vector<4x4x128xf32>
    %cst_20 = arith.constant dense<0xFF800000> : vector<4x128xf32>
    %78 = vector.multi_reduction <maximumf>, %77, %cst_20 [1] : vector<4x4x128xf32> to vector<4x128xf32>
    %79 = arith.cmpi sgt, %68, %64 : i32
    %c4_i32_21 = arith.constant 4 : i32
    %80 = arith.muli %arg0, %c4_i32_21 : i32
    %c0_i32_22 = arith.constant 0 : i32
    %81 = arith.addi %80, %c0_i32_22 : i32
    %82 = arith.index_cast %81 : i32 to index
    %83 = memref.load %arg2[%82] : memref<64xi32, #tpu.memory_space<smem>>
    %c4_i32_23 = arith.constant 4 : i32
    %84 = arith.muli %arg0, %c4_i32_23 : i32
    %c0_i32_24 = arith.constant 0 : i32
    %85 = arith.addi %84, %c0_i32_24 : i32
    %86 = arith.index_cast %85 : i32 to index
    %87 = memref.load %arg3[%86] : memref<64xi32, #tpu.memory_space<smem>>
    %88 = vector.broadcast %83 : i32 to vector<4x1xi32>
    %89 = arith.cmpi sge, %3, %88 : vector<4x1xi32>
    %90 = vector.broadcast %87 : i32 to vector<4x1xi32>
    %91 = arith.cmpi slt, %3, %90 : vector<4x1xi32>
    %92 = arith.andi %89, %91 : vector<4x1xi1>
    %93 = arith.cmpi sgt, %87, %83 : i32
    %cst_25 = arith.constant -1.000000e+30 : f32
    %94 = vector.shape_cast %92 : vector<4x1xi1> to vector<4x1xi1>
    %95 = vector.broadcast %94 : vector<4x1xi1> to vector<4x128xi1>
    %96 = vector.broadcast %cst_25 : f32 to vector<4x128xf32>
    %97 = arith.select %95, %21, %96 : vector<4x128xi1>, vector<4x128xf32>
    %cst_26 = arith.constant dense<0xFF800000> : vector<128xf32>
    %98 = vector.multi_reduction <maximumf>, %97, %cst_26 [0] : vector<4x128xf32> to vector<128xf32>
    %99 = vector.shape_cast %98 : vector<128xf32> to vector<1x128xf32>
    %100 = arith.andi %93, %22 : i1
    %cst_27 = arith.constant 0.000000e+00 : f32
    %101 = vector.broadcast %cst_27 : f32 to vector<1x128xf32>
    %102 = arith.select %100, %99, %101 : vector<1x128xf32>
    %cst_28 = arith.constant -1.000000e+30 : f32
    %103 = vector.shape_cast %92 : vector<4x1xi1> to vector<4x1xi1>
    %104 = vector.broadcast %103 : vector<4x1xi1> to vector<4x128xi1>
    %105 = vector.broadcast %cst_28 : f32 to vector<4x128xf32>
    %106 = arith.select %104, %40, %105 : vector<4x128xi1>, vector<4x128xf32>
    %cst_29 = arith.constant dense<0xFF800000> : vector<128xf32>
    %107 = vector.multi_reduction <maximumf>, %106, %cst_29 [0] : vector<4x128xf32> to vector<128xf32>
    %108 = vector.shape_cast %107 : vector<128xf32> to vector<1x128xf32>
    %109 = arith.andi %93, %41 : i1
    %cst_30 = arith.constant 0.000000e+00 : f32
    %110 = vector.broadcast %cst_30 : f32 to vector<1x128xf32>
    %111 = arith.select %109, %108, %110 : vector<1x128xf32>
    %cst_31 = arith.constant -1.000000e+30 : f32
    %112 = vector.shape_cast %92 : vector<4x1xi1> to vector<4x1xi1>
    %113 = vector.broadcast %112 : vector<4x1xi1> to vector<4x128xi1>
    %114 = vector.broadcast %cst_31 : f32 to vector<4x128xf32>
    %115 = arith.select %113, %59, %114 : vector<4x128xi1>, vector<4x128xf32>
    %cst_32 = arith.constant dense<0xFF800000> : vector<128xf32>
    %116 = vector.multi_reduction <maximumf>, %115, %cst_32 [0] : vector<4x128xf32> to vector<128xf32>
    %117 = vector.shape_cast %116 : vector<128xf32> to vector<1x128xf32>
    %118 = arith.andi %93, %60 : i1
    %cst_33 = arith.constant 0.000000e+00 : f32
    %119 = vector.broadcast %cst_33 : f32 to vector<1x128xf32>
    %120 = arith.select %118, %117, %119 : vector<1x128xf32>
    %cst_34 = arith.constant -1.000000e+30 : f32
    %121 = vector.shape_cast %92 : vector<4x1xi1> to vector<4x1xi1>
    %122 = vector.broadcast %121 : vector<4x1xi1> to vector<4x128xi1>
    %123 = vector.broadcast %cst_34 : f32 to vector<4x128xf32>
    %124 = arith.select %122, %78, %123 : vector<4x128xi1>, vector<4x128xf32>
    %cst_35 = arith.constant dense<0xFF800000> : vector<128xf32>
    %125 = vector.multi_reduction <maximumf>, %124, %cst_35 [0] : vector<4x128xf32> to vector<128xf32>
    %126 = vector.shape_cast %125 : vector<128xf32> to vector<1x128xf32>
    %127 = arith.andi %93, %79 : i1
    %cst_36 = arith.constant 0.000000e+00 : f32
    %128 = vector.broadcast %cst_36 : f32 to vector<1x128xf32>
    %129 = arith.select %127, %126, %128 : vector<1x128xf32>
    %c4_i32_37 = arith.constant 4 : i32
    %130 = arith.muli %arg0, %c4_i32_37 : i32
    %c1_i32_38 = arith.constant 1 : i32
    %131 = arith.addi %130, %c1_i32_38 : i32
    %132 = arith.index_cast %131 : i32 to index
    %133 = memref.load %arg2[%132] : memref<64xi32, #tpu.memory_space<smem>>
    %c4_i32_39 = arith.constant 4 : i32
    %134 = arith.muli %arg0, %c4_i32_39 : i32
    %c1_i32_40 = arith.constant 1 : i32
    %135 = arith.addi %134, %c1_i32_40 : i32
    %136 = arith.index_cast %135 : i32 to index
    %137 = memref.load %arg3[%136] : memref<64xi32, #tpu.memory_space<smem>>
    %138 = vector.broadcast %133 : i32 to vector<4x1xi32>
    %139 = arith.cmpi sge, %3, %138 : vector<4x1xi32>
    %140 = vector.broadcast %137 : i32 to vector<4x1xi32>
    %141 = arith.cmpi slt, %3, %140 : vector<4x1xi32>
    %142 = arith.andi %139, %141 : vector<4x1xi1>
    %143 = arith.cmpi sgt, %137, %133 : i32
    %cst_41 = arith.constant -1.000000e+30 : f32
    %144 = vector.shape_cast %142 : vector<4x1xi1> to vector<4x1xi1>
    %145 = vector.broadcast %144 : vector<4x1xi1> to vector<4x128xi1>
    %146 = vector.broadcast %cst_41 : f32 to vector<4x128xf32>
    %147 = arith.select %145, %21, %146 : vector<4x128xi1>, vector<4x128xf32>
    %cst_42 = arith.constant dense<0xFF800000> : vector<128xf32>
    %148 = vector.multi_reduction <maximumf>, %147, %cst_42 [0] : vector<4x128xf32> to vector<128xf32>
    %149 = vector.shape_cast %148 : vector<128xf32> to vector<1x128xf32>
    %150 = arith.andi %143, %22 : i1
    %cst_43 = arith.constant 0.000000e+00 : f32
    %151 = vector.broadcast %cst_43 : f32 to vector<1x128xf32>
    %152 = arith.select %150, %149, %151 : vector<1x128xf32>
    %cst_44 = arith.constant -1.000000e+30 : f32
    %153 = vector.shape_cast %142 : vector<4x1xi1> to vector<4x1xi1>
    %154 = vector.broadcast %153 : vector<4x1xi1> to vector<4x128xi1>
    %155 = vector.broadcast %cst_44 : f32 to vector<4x128xf32>
    %156 = arith.select %154, %40, %155 : vector<4x128xi1>, vector<4x128xf32>
    %cst_45 = arith.constant dense<0xFF800000> : vector<128xf32>
    %157 = vector.multi_reduction <maximumf>, %156, %cst_45 [0] : vector<4x128xf32> to vector<128xf32>
    %158 = vector.shape_cast %157 : vector<128xf32> to vector<1x128xf32>
    %159 = arith.andi %143, %41 : i1
    %cst_46 = arith.constant 0.000000e+00 : f32
    %160 = vector.broadcast %cst_46 : f32 to vector<1x128xf32>
    %161 = arith.select %159, %158, %160 : vector<1x128xf32>
    %cst_47 = arith.constant -1.000000e+30 : f32
    %162 = vector.shape_cast %142 : vector<4x1xi1> to vector<4x1xi1>
    %163 = vector.broadcast %162 : vector<4x1xi1> to vector<4x128xi1>
    %164 = vector.broadcast %cst_47 : f32 to vector<4x128xf32>
    %165 = arith.select %163, %59, %164 : vector<4x128xi1>, vector<4x128xf32>
    %cst_48 = arith.constant dense<0xFF800000> : vector<128xf32>
    %166 = vector.multi_reduction <maximumf>, %165, %cst_48 [0] : vector<4x128xf32> to vector<128xf32>
    %167 = vector.shape_cast %166 : vector<128xf32> to vector<1x128xf32>
    %168 = arith.andi %143, %60 : i1
    %cst_49 = arith.constant 0.000000e+00 : f32
    %169 = vector.broadcast %cst_49 : f32 to vector<1x128xf32>
    %170 = arith.select %168, %167, %169 : vector<1x128xf32>
    %cst_50 = arith.constant -1.000000e+30 : f32
    %171 = vector.shape_cast %142 : vector<4x1xi1> to vector<4x1xi1>
    %172 = vector.broadcast %171 : vector<4x1xi1> to vector<4x128xi1>
    %173 = vector.broadcast %cst_50 : f32 to vector<4x128xf32>
    %174 = arith.select %172, %78, %173 : vector<4x128xi1>, vector<4x128xf32>
    %cst_51 = arith.constant dense<0xFF800000> : vector<128xf32>
    %175 = vector.multi_reduction <maximumf>, %174, %cst_51 [0] : vector<4x128xf32> to vector<128xf32>
    %176 = vector.shape_cast %175 : vector<128xf32> to vector<1x128xf32>
    %177 = arith.andi %143, %79 : i1
    %cst_52 = arith.constant 0.000000e+00 : f32
    %178 = vector.broadcast %cst_52 : f32 to vector<1x128xf32>
    %179 = arith.select %177, %176, %178 : vector<1x128xf32>
    %c4_i32_53 = arith.constant 4 : i32
    %180 = arith.muli %arg0, %c4_i32_53 : i32
    %c2_i32_54 = arith.constant 2 : i32
    %181 = arith.addi %180, %c2_i32_54 : i32
    %182 = arith.index_cast %181 : i32 to index
    %183 = memref.load %arg2[%182] : memref<64xi32, #tpu.memory_space<smem>>
    %c4_i32_55 = arith.constant 4 : i32
    %184 = arith.muli %arg0, %c4_i32_55 : i32
    %c2_i32_56 = arith.constant 2 : i32
    %185 = arith.addi %184, %c2_i32_56 : i32
    %186 = arith.index_cast %185 : i32 to index
    %187 = memref.load %arg3[%186] : memref<64xi32, #tpu.memory_space<smem>>
    %188 = vector.broadcast %183 : i32 to vector<4x1xi32>
    %189 = arith.cmpi sge, %3, %188 : vector<4x1xi32>
    %190 = vector.broadcast %187 : i32 to vector<4x1xi32>
    %191 = arith.cmpi slt, %3, %190 : vector<4x1xi32>
    %192 = arith.andi %189, %191 : vector<4x1xi1>
    %193 = arith.cmpi sgt, %187, %183 : i32
    %cst_57 = arith.constant -1.000000e+30 : f32
    %194 = vector.shape_cast %192 : vector<4x1xi1> to vector<4x1xi1>
    %195 = vector.broadcast %194 : vector<4x1xi1> to vector<4x128xi1>
    %196 = vector.broadcast %cst_57 : f32 to vector<4x128xf32>
    %197 = arith.select %195, %21, %196 : vector<4x128xi1>, vector<4x128xf32>
    %cst_58 = arith.constant dense<0xFF800000> : vector<128xf32>
    %198 = vector.multi_reduction <maximumf>, %197, %cst_58 [0] : vector<4x128xf32> to vector<128xf32>
    %199 = vector.shape_cast %198 : vector<128xf32> to vector<1x128xf32>
    %200 = arith.andi %193, %22 : i1
    %cst_59 = arith.constant 0.000000e+00 : f32
    %201 = vector.broadcast %cst_59 : f32 to vector<1x128xf32>
    %202 = arith.select %200, %199, %201 : vector<1x128xf32>
    %cst_60 = arith.constant -1.000000e+30 : f32
    %203 = vector.shape_cast %192 : vector<4x1xi1> to vector<4x1xi1>
    %204 = vector.broadcast %203 : vector<4x1xi1> to vector<4x128xi1>
    %205 = vector.broadcast %cst_60 : f32 to vector<4x128xf32>
    %206 = arith.select %204, %40, %205 : vector<4x128xi1>, vector<4x128xf32>
    %cst_61 = arith.constant dense<0xFF800000> : vector<128xf32>
    %207 = vector.multi_reduction <maximumf>, %206, %cst_61 [0] : vector<4x128xf32> to vector<128xf32>
    %208 = vector.shape_cast %207 : vector<128xf32> to vector<1x128xf32>
    %209 = arith.andi %193, %41 : i1
    %cst_62 = arith.constant 0.000000e+00 : f32
    %210 = vector.broadcast %cst_62 : f32 to vector<1x128xf32>
    %211 = arith.select %209, %208, %210 : vector<1x128xf32>
    %cst_63 = arith.constant -1.000000e+30 : f32
    %212 = vector.shape_cast %192 : vector<4x1xi1> to vector<4x1xi1>
    %213 = vector.broadcast %212 : vector<4x1xi1> to vector<4x128xi1>
    %214 = vector.broadcast %cst_63 : f32 to vector<4x128xf32>
    %215 = arith.select %213, %59, %214 : vector<4x128xi1>, vector<4x128xf32>
    %cst_64 = arith.constant dense<0xFF800000> : vector<128xf32>
    %216 = vector.multi_reduction <maximumf>, %215, %cst_64 [0] : vector<4x128xf32> to vector<128xf32>
    %217 = vector.shape_cast %216 : vector<128xf32> to vector<1x128xf32>
    %218 = arith.andi %193, %60 : i1
    %cst_65 = arith.constant 0.000000e+00 : f32
    %219 = vector.broadcast %cst_65 : f32 to vector<1x128xf32>
    %220 = arith.select %218, %217, %219 : vector<1x128xf32>
    %cst_66 = arith.constant -1.000000e+30 : f32
    %221 = vector.shape_cast %192 : vector<4x1xi1> to vector<4x1xi1>
    %222 = vector.broadcast %221 : vector<4x1xi1> to vector<4x128xi1>
    %223 = vector.broadcast %cst_66 : f32 to vector<4x128xf32>
    %224 = arith.select %222, %78, %223 : vector<4x128xi1>, vector<4x128xf32>
    %cst_67 = arith.constant dense<0xFF800000> : vector<128xf32>
    %225 = vector.multi_reduction <maximumf>, %224, %cst_67 [0] : vector<4x128xf32> to vector<128xf32>
    %226 = vector.shape_cast %225 : vector<128xf32> to vector<1x128xf32>
    %227 = arith.andi %193, %79 : i1
    %cst_68 = arith.constant 0.000000e+00 : f32
    %228 = vector.broadcast %cst_68 : f32 to vector<1x128xf32>
    %229 = arith.select %227, %226, %228 : vector<1x128xf32>
    %c4_i32_69 = arith.constant 4 : i32
    %230 = arith.muli %arg0, %c4_i32_69 : i32
    %c3_i32_70 = arith.constant 3 : i32
    %231 = arith.addi %230, %c3_i32_70 : i32
    %232 = arith.index_cast %231 : i32 to index
    %233 = memref.load %arg2[%232] : memref<64xi32, #tpu.memory_space<smem>>
    %c4_i32_71 = arith.constant 4 : i32
    %234 = arith.muli %arg0, %c4_i32_71 : i32
    %c3_i32_72 = arith.constant 3 : i32
    %235 = arith.addi %234, %c3_i32_72 : i32
    %236 = arith.index_cast %235 : i32 to index
    %237 = memref.load %arg3[%236] : memref<64xi32, #tpu.memory_space<smem>>
    %238 = vector.broadcast %233 : i32 to vector<4x1xi32>
    %239 = arith.cmpi sge, %3, %238 : vector<4x1xi32>
    %240 = vector.broadcast %237 : i32 to vector<4x1xi32>
    %241 = arith.cmpi slt, %3, %240 : vector<4x1xi32>
    %242 = arith.andi %239, %241 : vector<4x1xi1>
    %243 = arith.cmpi sgt, %237, %233 : i32
    %cst_73 = arith.constant -1.000000e+30 : f32
    %244 = vector.shape_cast %242 : vector<4x1xi1> to vector<4x1xi1>
    %245 = vector.broadcast %244 : vector<4x1xi1> to vector<4x128xi1>
    %246 = vector.broadcast %cst_73 : f32 to vector<4x128xf32>
    %247 = arith.select %245, %21, %246 : vector<4x128xi1>, vector<4x128xf32>
    %cst_74 = arith.constant dense<0xFF800000> : vector<128xf32>
    %248 = vector.multi_reduction <maximumf>, %247, %cst_74 [0] : vector<4x128xf32> to vector<128xf32>
    %249 = vector.shape_cast %248 : vector<128xf32> to vector<1x128xf32>
    %250 = arith.andi %243, %22 : i1
    %cst_75 = arith.constant 0.000000e+00 : f32
    %251 = vector.broadcast %cst_75 : f32 to vector<1x128xf32>
    %252 = arith.select %250, %249, %251 : vector<1x128xf32>
    %cst_76 = arith.constant -1.000000e+30 : f32
    %253 = vector.shape_cast %242 : vector<4x1xi1> to vector<4x1xi1>
    %254 = vector.broadcast %253 : vector<4x1xi1> to vector<4x128xi1>
    %255 = vector.broadcast %cst_76 : f32 to vector<4x128xf32>
    %256 = arith.select %254, %40, %255 : vector<4x128xi1>, vector<4x128xf32>
    %cst_77 = arith.constant dense<0xFF800000> : vector<128xf32>
    %257 = vector.multi_reduction <maximumf>, %256, %cst_77 [0] : vector<4x128xf32> to vector<128xf32>
    %258 = vector.shape_cast %257 : vector<128xf32> to vector<1x128xf32>
    %259 = arith.andi %243, %41 : i1
    %cst_78 = arith.constant 0.000000e+00 : f32
    %260 = vector.broadcast %cst_78 : f32 to vector<1x128xf32>
    %261 = arith.select %259, %258, %260 : vector<1x128xf32>
    %cst_79 = arith.constant -1.000000e+30 : f32
    %262 = vector.shape_cast %242 : vector<4x1xi1> to vector<4x1xi1>
    %263 = vector.broadcast %262 : vector<4x1xi1> to vector<4x128xi1>
    %264 = vector.broadcast %cst_79 : f32 to vector<4x128xf32>
    %265 = arith.select %263, %59, %264 : vector<4x128xi1>, vector<4x128xf32>
    %cst_80 = arith.constant dense<0xFF800000> : vector<128xf32>
    %266 = vector.multi_reduction <maximumf>, %265, %cst_80 [0] : vector<4x128xf32> to vector<128xf32>
    %267 = vector.shape_cast %266 : vector<128xf32> to vector<1x128xf32>
    %268 = arith.andi %243, %60 : i1
    %cst_81 = arith.constant 0.000000e+00 : f32
    %269 = vector.broadcast %cst_81 : f32 to vector<1x128xf32>
    %270 = arith.select %268, %267, %269 : vector<1x128xf32>
    %cst_82 = arith.constant -1.000000e+30 : f32
    %271 = vector.shape_cast %242 : vector<4x1xi1> to vector<4x1xi1>
    %272 = vector.broadcast %271 : vector<4x1xi1> to vector<4x128xi1>
    %273 = vector.broadcast %cst_82 : f32 to vector<4x128xf32>
    %274 = arith.select %272, %78, %273 : vector<4x128xi1>, vector<4x128xf32>
    %cst_83 = arith.constant dense<0xFF800000> : vector<128xf32>
    %275 = vector.multi_reduction <maximumf>, %274, %cst_83 [0] : vector<4x128xf32> to vector<128xf32>
    %276 = vector.shape_cast %275 : vector<128xf32> to vector<1x128xf32>
    %277 = arith.andi %243, %79 : i1
    %cst_84 = arith.constant 0.000000e+00 : f32
    %278 = vector.broadcast %cst_84 : f32 to vector<1x128xf32>
    %279 = arith.select %277, %276, %278 : vector<1x128xf32>
    %280 = tpu.concatenate %102, %111, %120, %129, %152, %161, %170, %179, %202, %211, %220, %229, %252, %261, %270, %279 in 0 : vector<1x128xf32>, vector<1x128xf32>, vector<1x128xf32>, vector<1x128xf32>, vector<1x128xf32>, vector<1x128xf32>, vector<1x128xf32>, vector<1x128xf32>, vector<1x128xf32>, vector<1x128xf32>, vector<1x128xf32>, vector<1x128xf32>, vector<1x128xf32>, vector<1x128xf32>, vector<1x128xf32>, vector<1x128xf32> -> vector<16x128xf32>
    %281 = vector.shape_cast %280 : vector<16x128xf32> to vector<1x16x128xf32>
    %c0_85 = arith.constant 0 : index
    %c0_86 = arith.constant 0 : index
    %c0_87 = arith.constant 0 : index
    %282 = vector.load %arg7[%c0_85, %c0_86, %c0_87] : memref<1x16x128xf32, #tpu.memory_space<vmem>>, vector<1x16x128xf32>
    tpu.vector_store %arg7[%c0_85, %c0_86, %c0_87], %281 {strides = array<i32>} : memref<1x16x128xf32, #tpu.memory_space<vmem>>, vector<1x16x128xf32>,
    return
  }
  func.func @transform_0(%arg0: i32, %arg1: memref<16xi32, #tpu.memory_space<smem>>, %arg2: memref<64xi32, #tpu.memory_space<smem>>, %arg3: memref<64xi32, #tpu.memory_space<smem>>, %arg4: memref<64xi32, #tpu.memory_space<smem>>, %arg5: memref<64xi32, #tpu.memory_space<smem>>) -> (i32, i32, i32, i32) {
    %0 = arith.index_cast %arg0 : i32 to index
    %1 = memref.load %arg1[%0] : memref<16xi32, #tpu.memory_space<smem>>
    %c0_i32 = arith.constant 0 : i32
    %c0_i32_0 = arith.constant 0 : i32
    %c0_i32_1 = arith.constant 0 : i32
    %c0_i32_2 = arith.constant 0 : i32
    return %1, %c0_i32, %c0_i32_0, %c0_i32_1 : i32, i32, i32, i32
  }
  func.func @transform_1(%arg0: i32, %arg1: memref<16xi32, #tpu.memory_space<smem>>, %arg2: memref<64xi32, #tpu.memory_space<smem>>, %arg3: memref<64xi32, #tpu.memory_space<smem>>, %arg4: memref<64xi32, #tpu.memory_space<smem>>, %arg5: memref<64xi32, #tpu.memory_space<smem>>) -> (i32, i32, i32) {
    %c0_i32 = arith.constant 0 : i32
    %c0_i32_0 = arith.constant 0 : i32
    %c0_i32_1 = arith.constant 0 : i32
    return %arg0, %c0_i32, %c0_i32_0 : i32, i32, i32
  }
}

module attributes {stable_mosaic.version = 11 : i64} {
  func.func @_head_kernel(%arg0: memref<16x2048xf32, #tpu.memory_space<vmem>>, %arg1: memref<2048x128xf32, #tpu.memory_space<vmem>>, %arg2: memref<1x128xf32, #tpu.memory_space<vmem>>, %arg3: memref<128x128xf32, #tpu.memory_space<vmem>>, %arg4: memref<1x128xf32, #tpu.memory_space<vmem>>, %arg5: memref<128x25xf32, #tpu.memory_space<vmem>>, %arg6: memref<1x25xf32, #tpu.memory_space<vmem>>, %arg7: memref<16x5xf32, #tpu.memory_space<vmem>>, %arg8: memref<16x20xf32, #tpu.memory_space<vmem>>) attributes {dimension_semantics = [], scalar_prefetch = 0 : i64, scratch_operands = 0 : i64, tpu.core_type = #tpu.core_type<tc>} {
    %c0 = arith.constant 0 : index
    %c0_0 = arith.constant 0 : index
    %0 = vector.load %arg0[%c0, %c0_0] : memref<16x2048xf32, #tpu.memory_space<vmem>>, vector<16x2048xf32>
    %c0_1 = arith.constant 0 : index
    %c0_2 = arith.constant 0 : index
    %1 = vector.load %arg1[%c0_1, %c0_2] : memref<2048x128xf32, #tpu.memory_space<vmem>>, vector<2048x128xf32>
    %cst = arith.constant dense<0.000000e+00> : vector<16x128xf32>
    %2 = tpu.matmul %0, %1, %cst {dimension_numbers = #tpu.dot_dimension_numbers<[1], [0], [0], [1], [0, 0, 1, 1], [], []>} : vector<16x2048xf32>, vector<2048x128xf32>, vector<16x128xf32> -> vector<16x128xf32>
    %c0_3 = arith.constant 0 : index
    %c0_4 = arith.constant 0 : index
    %3 = vector.load %arg2[%c0_3, %c0_4] : memref<1x128xf32, #tpu.memory_space<vmem>>, vector<1x128xf32>
    %4 = vector.broadcast %3 : vector<1x128xf32> to vector<16x128xf32>
    %5 = arith.addf %2, %4 : vector<16x128xf32>
    %cst_5 = arith.constant 0.000000e+00 : f32
    %6 = vector.broadcast %cst_5 : f32 to vector<16x128xf32>
    %7 = arith.maximumf %5, %6 : vector<16x128xf32>
    %c0_6 = arith.constant 0 : index
    %c0_7 = arith.constant 0 : index
    %8 = vector.load %arg3[%c0_6, %c0_7] : memref<128x128xf32, #tpu.memory_space<vmem>>, vector<128x128xf32>
    %cst_8 = arith.constant dense<0.000000e+00> : vector<16x128xf32>
    %9 = tpu.matmul %7, %8, %cst_8 {dimension_numbers = #tpu.dot_dimension_numbers<[1], [0], [0], [1], [0, 0, 1, 1], [], []>} : vector<16x128xf32>, vector<128x128xf32>, vector<16x128xf32> -> vector<16x128xf32>
    %c0_9 = arith.constant 0 : index
    %c0_10 = arith.constant 0 : index
    %10 = vector.load %arg4[%c0_9, %c0_10] : memref<1x128xf32, #tpu.memory_space<vmem>>, vector<1x128xf32>
    %11 = vector.broadcast %10 : vector<1x128xf32> to vector<16x128xf32>
    %12 = arith.addf %9, %11 : vector<16x128xf32>
    %cst_11 = arith.constant 0.000000e+00 : f32
    %13 = vector.broadcast %cst_11 : f32 to vector<16x128xf32>
    %14 = arith.maximumf %12, %13 : vector<16x128xf32>
    %c0_12 = arith.constant 0 : index
    %c0_13 = arith.constant 0 : index
    %15 = vector.load %arg5[%c0_12, %c0_13] : memref<128x25xf32, #tpu.memory_space<vmem>>, vector<128x25xf32>
    %cst_14 = arith.constant dense<0.000000e+00> : vector<16x25xf32>
    %16 = tpu.matmul %14, %15, %cst_14 {dimension_numbers = #tpu.dot_dimension_numbers<[1], [0], [0], [1], [0, 0, 1, 1], [], []>} : vector<16x128xf32>, vector<128x25xf32>, vector<16x25xf32> -> vector<16x25xf32>
    %c0_15 = arith.constant 0 : index
    %c0_16 = arith.constant 0 : index
    %17 = vector.load %arg6[%c0_15, %c0_16] : memref<1x25xf32, #tpu.memory_space<vmem>>, vector<1x25xf32>
    %18 = vector.broadcast %17 : vector<1x25xf32> to vector<16x25xf32>
    %19 = arith.addf %16, %18 : vector<16x25xf32>
    %20 = vector.extract_strided_slice %19 {offsets = [0, 0], sizes = [16, 5], strides = [1, 1]} : vector<16x25xf32> to vector<16x5xf32>
    %21 = vector.extract_strided_slice %19 {offsets = [0, 5], sizes = [16, 20], strides = [1, 1]} : vector<16x25xf32> to vector<16x20xf32>
    %c0_17 = arith.constant 0 : index
    %c0_18 = arith.constant 0 : index
    %22 = vector.load %arg8[%c0_17, %c0_18] : memref<16x20xf32, #tpu.memory_space<vmem>>, vector<16x20xf32>
    tpu.vector_store %arg8[%c0_17, %c0_18], %21 {strides = array<i32>} : memref<16x20xf32, #tpu.memory_space<vmem>>, vector<16x20xf32>,
    %cst_19 = arith.constant dense<0xFF800000> : vector<16xf32>
    %23 = vector.multi_reduction <maximumf>, %20, %cst_19 [1] : vector<16x5xf32> to vector<16xf32>
    %24 = vector.shape_cast %23 : vector<16xf32> to vector<16x1xf32>
    %25 = vector.broadcast %24 : vector<16x1xf32> to vector<16x5xf32>
    %26 = arith.subf %20, %25 : vector<16x5xf32>
    %27 = math.exp %26 : vector<16x5xf32>
    %cst_20 = arith.constant dense<0.000000e+00> : vector<16xf32>
    %28 = vector.multi_reduction <add>, %27, %cst_20 [1] : vector<16x5xf32> to vector<16xf32>
    %29 = vector.shape_cast %28 : vector<16xf32> to vector<16x1xf32>
    %30 = tpu.reciprocal %29 {approx = true} : vector<16x1xf32> -> vector<16x1xf32>
    %31 = vector.broadcast %30 : vector<16x1xf32> to vector<16x5xf32>
    %32 = arith.mulf %27, %31 : vector<16x5xf32>
    %c0_21 = arith.constant 0 : index
    %c0_22 = arith.constant 0 : index
    %33 = vector.load %arg7[%c0_21, %c0_22] : memref<16x5xf32, #tpu.memory_space<vmem>>, vector<16x5xf32>
    tpu.vector_store %arg7[%c0_21, %c0_22], %32 {strides = array<i32>} : memref<16x5xf32, #tpu.memory_space<vmem>>, vector<16x5xf32>,
    return
  }
}

</mosaic_0001>

<llo_original>
// kernel: faster_rcnn_forward.4
$region0: #{faster_rcnn_forward.4}
  #allocation0 [shape = 'u32[]', space=smem, size = 0x4, offset = 0x4, fixed_abs, tag = 'smem constant byte address 0x4 - core index']
  #allocation1 [shape = 'u32[144,128]{1,0:T(1,128)}', space=vmem, size = 0x12000, scoped, tag = 'internal scratch']
  %s0 = inlined_call_operand.vmem [shape: f32[32,768], index: 0, kind: input, shape index: {}]
  %s1 = inlined_call_operand.vmem [shape: f32[768,128], index: 1, kind: input, shape index: {}]
  %s2 = inlined_call_operand.vmem [shape: f32[1,128], index: 2, kind: input, shape index: {}]
  %s3 = inlined_call_operand.vmem [shape: f32[32,128], index: 3, kind: output, shape index: {}]
  %s4 = sld [smem:[#allocation0]]
  $region22: #{faster_rcnn_forward.4} parent=0
    _
  %s6 = ssub.s32 1, %s4
  %s7 = scalar_select 0, %s6, %s4
  // Predicated region
  $region2: #{faster_rcnn_forward.4} parent=0 // pred_check
    _
  $region3: #{faster_rcnn_forward.4} parent=0 // pred_check_branch
    %9 = sbr.rel (0) target = $region5
  $region4: #{faster_rcnn_forward.4} parent=0 // pred_region
    _
  $region5: #{faster_rcnn_forward.4} parent=0 // pred_fallthru
    _
  // Predicated region
  $region6: #{faster_rcnn_forward.4} parent=0 // pred_check
    _
  $region7: #{faster_rcnn_forward.4} parent=0 // pred_check_branch
    %11 = sbr.rel (0) target = $region9
  $region8: #{faster_rcnn_forward.4} parent=0 // pred_region
    _
  $region9: #{faster_rcnn_forward.4} parent=0 // pred_fallthru
    _
  // Predicated region
  $region10: #{faster_rcnn_forward.4} parent=0 // pred_check
    _
  $region11: #{faster_rcnn_forward.4} parent=0 // pred_check_branch
    %13 = sbr.rel (0) target = $region13
  $region12: #{faster_rcnn_forward.4} parent=0 // pred_region
    _
  $region13: #{faster_rcnn_forward.4} parent=0 // pred_fallthru
    _
  %v14 = vld [vmem:[%s0] sm:$0xff]
  %v15 = vld [vmem:[%s0 + $0x8] sm:$0xff]
  %v16 = vld [vmem:[%s0 + $0x10] sm:$0xff]
  %v17 = vld [vmem:[%s0 + $0x18] sm:$0xff]
  %v18 = vld [vmem:[%s0 + $0x20] sm:$0xff]
  %v19 = vld [vmem:[%s0 + $0x28] sm:$0xff]
  %v20 = vld [vmem:[%s0 + $0x30] sm:$0xff]
  %v21 = vld [vmem:[%s0 + $0x38] sm:$0xff]
  %v22 = vld [vmem:[%s0 + $0x40] sm:$0xff]
  %v23 = vld [vmem:[%s0 + $0x48] sm:$0xff]
  %v24 = vld [vmem:[%s0 + $0x50] sm:$0xff]
  %v25 = vld [vmem:[%s0 + $0x58] sm:$0xff]
  %v26 = vld [vmem:[%s0 + $0x60] sm:$0xff]
  %v27 = vld [vmem:[%s0 + $0x68] sm:$0xff]
  %v28 = vld [vmem:[%s0 + $0x70] sm:$0xff]
  %v29 = vld [vmem:[%s0 + $0x78] sm:$0xff]
  %v30 = vld [vmem:[%s0 + $0x80] sm:$0xff]
  %v31 = vld [vmem:[%s0 + $0x88] sm:$0xff]
  %v32 = vld [vmem:[%s0 + $0x90] sm:$0xff]
  %v33 = vld [vmem:[%s0 + $0x98] sm:$0xff]
  %v34 = vld [vmem:[%s0 + $0xa0] sm:$0xff]
  %v35 = vld [vmem:[%s0 + $0xa8] sm:$0xff]
  %v36 = vld [vmem:[%s0 + $0xb0] sm:$0xff]
  %v37 = vld [vmem:[%s0 + $0xb8] sm:$0xff]
  %v38 = vld [vmem:[%s1] sm:$0xff]
  %v39 = vld [vmem:[%s1 + $0x8] sm:$0xff]
  %v40 = vld [vmem:[%s1 + $0x10] sm:$0xff]
  %v41 = vld [vmem:[%s1 + $0x18] sm:$0xff]
  %v42 = vld [vmem:[%s1 + $0x20] sm:$0xff]
  %v43 = vld [vmem:[%s1 + $0x28] sm:$0xff]
  %v44 = vld [vmem:[%s1 + $0x30] sm:$0xff]
  %v45 = vld [vmem:[%s1 + $0x38] sm:$0xff]
  %v46 = vld [vmem:[%s1 + $0x40] sm:$0xff]
  %v47 = vld [vmem:[%s1 + $0x48] sm:$0xff]
  %v48 = vld [vmem:[%s1 + $0x50] sm:$0xff]
  %v49 = vld [vmem:[%s1 + $0x58] sm:$0xff]
  %v50 = vld [vmem:[%s1 + $0x60] sm:$0xff]
  %v51 = vld [vmem:[%s1 + $0x68] sm:$0xff]
  %v52 = vld [vmem:[%s1 + $0x70] sm:$0xff]
  %v53 = vld [vmem:[%s1 + $0x78] sm:$0xff]
  %v54 = vld [vmem:[%s1 + $0x80] sm:$0xff]
  %v55 = vld [vmem:[%s1 + $0x88] sm:$0xff]
  %v56 = vld [vmem:[%s1 + $0x90] sm:$0xff]
  %v57 = vld [vmem:[%s1 + $0x98] sm:$0xff]
  %v58 = vld [vmem:[%s1 + $0xa0] sm:$0xff]
  %v59 = vld [vmem:[%s1 + $0xa8] sm:$0xff]
  %v60 = vld [vmem:[%s1 + $0xb0] sm:$0xff]
  %v61 = vld [vmem:[%s1 + $0xb8] sm:$0xff]
  %v62 = vld [vmem:[%s1 + $0xc0] sm:$0xff]
  %v63 = vld [vmem:[%s1 + $0xc8] sm:$0xff]
  %v64 = vld [vmem:[%s1 + $0xd0] sm:$0xff]
  %v65 = vld [vmem:[%s1 + $0xd8] sm:$0xff]
  %v66 = vld [vmem:[%s1 + $0xe0] sm:$0xff]
  %v67 = vld [vmem:[%s1 + $0xe8] sm:$0xff]
  %v68 = vld [vmem:[%s1 + $0xf0] sm:$0xff]
  %v69 = vld [vmem:[%s1 + $0xf8] sm:$0xff]
  %v70 = vld [vmem:[%s1 + $0x100] sm:$0xff]
  %v71 = vld [vmem:[%s1 + $0x108] sm:$0xff]
  %v72 = vld [vmem:[%s1 + $0x110] sm:$0xff]
  %v73 = vld [vmem:[%s1 + $0x118] sm:$0xff]
  %v74 = vld [vmem:[%s1 + $0x120] sm:$0xff]
  %v75 = vld [vmem:[%s1 + $0x128] sm:$0xff]
  %v76 = vld [vmem:[%s1 + $0x130] sm:$0xff]
  %v77 = vld [vmem:[%s1 + $0x138] sm:$0xff]
  %v78 = vld [vmem:[%s1 + $0x140] sm:$0xff]
  %v79 = vld [vmem:[%s1 + $0x148] sm:$0xff]
  %v80 = vld [vmem:[%s1 + $0x150] sm:$0xff]
  %v81 = vld [vmem:[%s1 + $0x158] sm:$0xff]
  %v82 = vld [vmem:[%s1 + $0x160] sm:$0xff]
  %v83 = vld [vmem:[%s1 + $0x168] sm:$0xff]
  %v84 = vld [vmem:[%s1 + $0x170] sm:$0xff]
  %v85 = vld [vmem:[%s1 + $0x178] sm:$0xff]
  %v86 = vld [vmem:[%s1 + $0x180] sm:$0xff]
  %v87 = vld [vmem:[%s1 + $0x188] sm:$0xff]
  %v88 = vld [vmem:[%s1 + $0x190] sm:$0xff]
  %v89 = vld [vmem:[%s1 + $0x198] sm:$0xff]
  %v90 = vld [vmem:[%s1 + $0x1a0] sm:$0xff]
  %v91 = vld [vmem:[%s1 + $0x1a8] sm:$0xff]
  %v92 = vld [vmem:[%s1 + $0x1b0] sm:$0xff]
  %v93 = vld [vmem:[%s1 + $0x1b8] sm:$0xff]
  %v94 = vld [vmem:[%s1 + $0x1c0] sm:$0xff]
  %v95 = vld [vmem:[%s1 + $0x1c8] sm:$0xff]
  %v96 = vld [vmem:[%s1 + $0x1d0] sm:$0xff]
  %v97 = vld [vmem:[%s1 + $0x1d8] sm:$0xff]
  %v98 = vld [vmem:[%s1 + $0x1e0] sm:$0xff]
  %v99 = vld [vmem:[%s1 + $0x1e8] sm:$0xff]
  %v100 = vld [vmem:[%s1 + $0x1f0] sm:$0xff]
  %v101 = vld [vmem:[%s1 + $0x1f8] sm:$0xff]
  %v102 = vld [vmem:[%s1 + $0x200] sm:$0xff]
  %v103 = vld [vmem:[%s1 + $0x208] sm:$0xff]
  %v104 = vld [vmem:[%s1 + $0x210] sm:$0xff]
  %v105 = vld [vmem:[%s1 + $0x218] sm:$0xff]
  %v106 = vld [vmem:[%s1 + $0x220] sm:$0xff]
  %v107 = vld [vmem:[%s1 + $0x228] sm:$0xff]
  %v108 = vld [vmem:[%s1 + $0x230] sm:$0xff]
  %v109 = vld [vmem:[%s1 + $0x238] sm:$0xff]
  %v110 = vld [vmem:[%s1 + $0x240] sm:$0xff]
  %v111 = vld [vmem:[%s1 + $0x248] sm:$0xff]
  %v112 = vld [vmem:[%s1 + $0x250] sm:$0xff]
  %v113 = vld [vmem:[%s1 + $0x258] sm:$0xff]
  %v114 = vld [vmem:[%s1 + $0x260] sm:$0xff]
  %v115 = vld [vmem:[%s1 + $0x268] sm:$0xff]
  %v116 = vld [vmem:[%s1 + $0x270] sm:$0xff]
  %v117 = vld [vmem:[%s1 + $0x278] sm:$0xff]
  %v118 = vld [vmem:[%s1 + $0x280] sm:$0xff]
  %v119 = vld [vmem:[%s1 + $0x288] sm:$0xff]
  %v120 = vld [vmem:[%s1 + $0x290] sm:$0xff]
  %v121 = vld [vmem:[%s1 + $0x298] sm:$0xff]
  %v122 = vld [vmem:[%s1 + $0x2a0] sm:$0xff]
  %v123 = vld [vmem:[%s1 + $0x2a8] sm:$0xff]
  %v124 = vld [vmem:[%s1 + $0x2b0] sm:$0xff]
  %v125 = vld [vmem:[%s1 + $0x2b8] sm:$0xff]
  %v126 = vld [vmem:[%s1 + $0x2c0] sm:$0xff]
  %v127 = vld [vmem:[%s1 + $0x2c8] sm:$0xff]
  %v128 = vld [vmem:[%s1 + $0x2d0] sm:$0xff]
  %v129 = vld [vmem:[%s1 + $0x2d8] sm:$0xff]
  %v130 = vld [vmem:[%s1 + $0x2e0] sm:$0xff]
  %v131 = vld [vmem:[%s1 + $0x2e8] sm:$0xff]
  %v132 = vld [vmem:[%s1 + $0x2f0] sm:$0xff]
  %v133 = vld [vmem:[%s1 + $0x2f8] sm:$0xff]
  %v134 = vld [vmem:[%s2] sm:$0x1]
  %v136 = vlaneseq
  %v137 = vshrl.u32 %v136, 7
  %v138 = vsub.s32 0, %v137
  %v139 = vrot.slane %v134, %v138
  %141 = vmatprep.subr.mxu0 0.0
  %142 = vmatpush1.msra.mxu0 %v38
  %143 = vmatprep.subr.mxu0 0.0
  %144 = vmatpush1.msra.mxu0 %v39
  %145 = vmatprep.subr.mxu0 0.0
  %146 = vmatpush1.msra.mxu0 %v40
  %147 = vmatprep.subr.mxu0 0.0
  %148 = vmatpush1.msra.mxu0 %v41
  %149 = vmatprep.subr.mxu0 0.0
  %150 = vmatpush1.msra.mxu0 %v42
  %151 = vmatprep.subr.mxu0 0.0
  %152 = vmatpush1.msra.mxu0 %v43
  %153 = vmatprep.subr.mxu0 0.0
  %154 = vmatpush1.msra.mxu0 %v44
  %155 = vmatprep.subr.mxu0 0.0
  %156 = vmatpush1.msra.mxu0 %v45
  %157 = vmatprep.subr.mxu0 0.0
  %158 = vmatpush1.msra.mxu0 %v46
  %159 = vmatprep.subr.mxu0 0.0
  %160 = vmatpush1.msra.mxu0 %v47
  %161 = vmatprep.subr.mxu0 0.0
  %162 = vmatpush1.msra.mxu0 %v48
  %163 = vmatprep.subr.mxu0 0.0
  %164 = vmatpush1.msra.mxu0 %v49
  %165 = vmatprep.subr.mxu0 0.0
  %166 = vmatpush1.msra.mxu0 %v50
  %167 = vmatprep.subr.mxu0 0.0
  %168 = vmatpush1.msra.mxu0 %v51
  %169 = vmatprep.subr.mxu0 0.0
  %170 = vmatpush1.msra.mxu0 %v52
  %171 = vmatprep.subr.mxu0 0.0
  %172 = vmatpush1.msra.mxu0 %v53
  %173 = vmatprep.subr.mxu0 0.0
  %174 = vmatpush1.msra.mxu0 %v54
  %175 = vmatprep.subr.mxu0 0.0
  %176 = vmatpush1.msra.mxu0 %v55
  %177 = vmatprep.subr.mxu0 0.0
  %178 = vmatpush1.msra.mxu0 %v56
  %179 = vmatprep.subr.mxu0 0.0
  %180 = vmatpush1.msra.mxu0 %v57
  %181 = vmatprep.subr.mxu0 0.0
  %182 = vmatpush1.msra.mxu0 %v58
  %183 = vmatprep.subr.mxu0 0.0
  %184 = vmatpush1.msra.mxu0 %v59
  %185 = vmatprep.subr.mxu0 0.0
  %186 = vmatpush1.msra.mxu0 %v60
  %187 = vmatprep.subr.mxu0 0.0
  %188 = vmatpush1.msra.mxu0 %v61
  %189 = vmatprep.subr.mxu0 0.0
  %190 = vmatpush1.msra.mxu0 %v62
  %191 = vmatprep.subr.mxu0 0.0
  %192 = vmatpush1.msra.mxu0 %v63
  %193 = vmatprep.subr.mxu0 0.0
  %194 = vmatpush1.msra.mxu0 %v64
  %195 = vmatprep.subr.mxu0 0.0
  %196 = vmatpush1.msra.mxu0 %v65
  %197 = vmatprep.subr.mxu0 0.0
  %198 = vmatpush1.msra.mxu0 %v66
  %199 = vmatprep.subr.mxu0 0.0
  %200 = vmatpush1.msra.mxu0 %v67
  %201 = vmatprep.subr.mxu0 0.0
  %202 = vmatpush1.msra.mxu0 %v68
  %203 = vmatprep.subr.mxu0 0.0
  %204 = vmatpush1.msra.mxu0 %v69
  %205 = vmatprep.mubr.f32.mxu0 %v15
  %206 = vmatmul.mubr.f32.gmra.mrb[0].mxu0 %v14
  %v207 = vpop.f32.mrb[0].mxu0
  %v208 = vadd.f32 %v139, %v207
  %v209 = vpop.f32.mrb[0].mxu0
  %210 = vmatprep.mubr.f32.mxu0 %v21
  %211 = vmatmul.mubr.f32.gmra.mrb[0].mxu0 %v20
  %v212 = vpop.f32.mrb[0].mxu0
  %v213 = vadd.f32 %v139, %v212
  %v214 = vpop.f32.mrb[0].mxu0
  %215 = vmatprep.mubr.f32.mxu0 %v27
  %216 = vmatmul.mubr.f32.gmra.mrb[0].mxu0 %v26
  %v217 = vpop.f32.mrb[0].mxu0
  %v218 = vadd.f32 %v139, %v217
  %v219 = vpop.f32.mrb[0].mxu0
  %220 = vmatprep.mubr.f32.mxu0 %v33
  %221 = vmatmul.mubr.f32.gmra.mrb[0].mxu0 %v32
  %v222 = vpop.f32.mrb[0].mxu0
  %v223 = vadd.f32 %v139, %v222
  %v224 = vpop.f32.mrb[0].mxu0
  %225 = vdwg.mxu0
  %226 = vmatprep.subr.mxu0 0.0
  %227 = vmatpush1.msra.mxu0 %v70
  %228 = vmatprep.subr.mxu0 0.0
  %229 = vmatpush1.msra.mxu0 %v71
  %230 = vmatprep.subr.mxu0 0.0
  %231 = vmatpush1.msra.mxu0 %v72
  %232 = vmatprep.subr.mxu0 0.0
  %233 = vmatpush1.msra.mxu0 %v73
  %234 = vmatprep.subr.mxu0 0.0
  %235 = vmatpush1.msra.mxu0 %v74
  %236 = vmatprep.subr.mxu0 0.0
  %237 = vmatpush1.msra.mxu0 %v75
  %238 = vmatprep.subr.mxu0 0.0
  %239 = vmatpush1.msra.mxu0 %v76
  %240 = vmatprep.subr.mxu0 0.0
  %241 = vmatpush1.msra.mxu0 %v77
  %242 = vmatprep.subr.mxu0 0.0
  %243 = vmatpush1.msra.mxu0 %v78
  %244 = vmatprep.subr.mxu0 0.0
  %245 = vmatpush1.msra.mxu0 %v79
  %246 = vmatprep.subr.mxu0 0.0
  %247 = vmatpush1.msra.mxu0 %v80
  %248 = vmatprep.subr.mxu0 0.0
  %249 = vmatpush1.msra.mxu0 %v81
  %250 = vmatprep.subr.mxu0 0.0
  %251 = vmatpush1.msra.mxu0 %v82
  %252 = vmatprep.subr.mxu0 0.0
  %253 = vmatpush1.msra.mxu0 %v83
  %254 = vmatprep.subr.mxu0 0.0
  %255 = vmatpush1.msra.mxu0 %v84
  %256 = vmatprep.subr.mxu0 0.0
  %257 = vmatpush1.msra.mxu0 %v85
  %258 = vmatprep.subr.mxu0 0.0
  %259 = vmatpush1.msra.mxu0 %v86
  %260 = vmatprep.subr.mxu0 0.0
  %261 = vmatpush1.msra.mxu0 %v87
  %262 = vmatprep.subr.mxu0 0.0
  %263 = vmatpush1.msra.mxu0 %v88
  %264 = vmatprep.subr.mxu0 0.0
  %265 = vmatpush1.msra.mxu0 %v89
  %266 = vmatprep.subr.mxu0 0.0
  %267 = vmatpush1.msra.mxu0 %v90
  %268 = vmatprep.subr.mxu0 0.0
  %269 = vmatpush1.msra.mxu0 %v91
  %270 = vmatprep.subr.mxu0 0.0
  %271 = vmatpush1.msra.mxu0 %v92
  %272 = vmatprep.subr.mxu0 0.0
  %273 = vmatpush1.msra.mxu0 %v93
  %274 = vmatprep.subr.mxu0 0.0
  %275 = vmatpush1.msra.mxu0 %v94
  %276 = vmatprep.subr.mxu0 0.0
  %277 = vmatpush1.msra.mxu0 %v95
  %278 = vmatprep.subr.mxu0 0.0
  %279 = vmatpush1.msra.mxu0 %v96
  %280 = vmatprep.subr.mxu0 0.0
  %281 = vmatpush1.msra.mxu0 %v97
  %282 = vmatprep.subr.mxu0 0.0
  %283 = vmatpush1.msra.mxu0 %v98
  %284 = vmatprep.subr.mxu0 0.0
  %285 = vmatpush1.msra.mxu0 %v99
  %286 = vmatprep.subr.mxu0 0.0
  %287 = vmatpush1.msra.mxu0 %v100
  %288 = vmatprep.subr.mxu0 0.0
  %289 = vmatpush1.msra.mxu0 %v101
  %290 = vmatprep.mubr.f32.mxu0 %v17
  %291 = vmatmul.mubr.f32.gmra.mrb[0].mxu0 %v16
  %v292 = vpop.f32.mrb[0].mxu0
  %v293 = vadd.f32 %v208, %v292
  %v294 = vpop.f32.mrb[0].mxu0
  %295 = vmatprep.mubr.f32.mxu0 %v23
  %296 = vmatmul.mubr.f32.gmra.mrb[0].mxu0 %v22
  %v297 = vpop.f32.mrb[0].mxu0
  %v298 = vadd.f32 %v213, %v297
  %v299 = vpop.f32.mrb[0].mxu0
  %300 = vmatprep.mubr.f32.mxu0 %v29
  %301 = vmatmul.mubr.f32.gmra.mrb[0].mxu0 %v28
  %v302 = vpop.f32.mrb[0].mxu0
  %v303 = vadd.f32 %v218, %v302
  %v304 = vpop.f32.mrb[0].mxu0
  %305 = vmatprep.mubr.f32.mxu0 %v35
  %306 = vmatmul.mubr.f32.gmra.mrb[0].mxu0 %v34
  %v307 = vpop.f32.mrb[0].mxu0
  %v308 = vadd.f32 %v223, %v307
  %v309 = vpop.f32.mrb[0].mxu0
  %310 = vdwg.mxu0
  %311 = vmatprep.subr.mxu0 0.0
  %312 = vmatpush1.msra.mxu0 %v102
  %313 = vmatprep.subr.mxu0 0.0
  %314 = vmatpush1.msra.mxu0 %v103
  %315 = vmatprep.subr.mxu0 0.0
  %316 = vmatpush1.msra.mxu0 %v104
  %317 = vmatprep.subr.mxu0 0.0
  %318 = vmatpush1.msra.mxu0 %v105
  %319 = vmatprep.subr.mxu0 0.0
  %320 = vmatpush1.msra.mxu0 %v106
  %321 = vmatprep.subr.mxu0 0.0
  %322 = vmatpush1.msra.mxu0 %v107
  %323 = vmatprep.subr.mxu0 0.0
  %324 = vmatpush1.msra.mxu0 %v108
  %325 = vmatprep.subr.mxu0 0.0
  %326 = vmatpush1.msra.mxu0 %v109
  %327 = vmatprep.subr.mxu0 0.0
  %328 = vmatpush1.msra.mxu0 %v110
  %329 = vmatprep.subr.mxu0 0.0
  %330 = vmatpush1.msra.mxu0 %v111
  %331 = vmatprep.subr.mxu0 0.0
  %332 = vmatpush1.msra.mxu0 %v112
  %333 = vmatprep.subr.mxu0 0.0
  %334 = vmatpush1.msra.mxu0 %v113
  %335 = vmatprep.subr.mxu0 0.0
  %336 = vmatpush1.msra.mxu0 %v114
  %337 = vmatprep.subr.mxu0 0.0
  %338 = vmatpush1.msra.mxu0 %v115
  %339 = vmatprep.subr.mxu0 0.0
  %340 = vmatpush1.msra.mxu0 %v116
  %341 = vmatprep.subr.mxu0 0.0
  %342 = vmatpush1.msra.mxu0 %v117
  %343 = vmatprep.subr.mxu0 0.0
  %344 = vmatpush1.msra.mxu0 %v118
  %345 = vmatprep.subr.mxu0 0.0
  %346 = vmatpush1.msra.mxu0 %v119
  %347 = vmatprep.subr.mxu0 0.0
  %348 = vmatpush1.msra.mxu0 %v120
  %349 = vmatprep.subr.mxu0 0.0
  %350 = vmatpush1.msra.mxu0 %v121
  %351 = vmatprep.subr.mxu0 0.0
  %352 = vmatpush1.msra.mxu0 %v122
  %353 = vmatprep.subr.mxu0 0.0
  %354 = vmatpush1.msra.mxu0 %v123
  %355 = vmatprep.subr.mxu0 0.0
  %356 = vmatpush1.msra.mxu0 %v124
  %357 = vmatprep.subr.mxu0 0.0
  %358 = vmatpush1.msra.mxu0 %v125
  %359 = vmatprep.subr.mxu0 0.0
  %360 = vmatpush1.msra.mxu0 %v126
  %361 = vmatprep.subr.mxu0 0.0
  %362 = vmatpush1.msra.mxu0 %v127
  %363 = vmatprep.subr.mxu0 0.0
  %364 = vmatpush1.msra.mxu0 %v128
  %365 = vmatprep.subr.mxu0 0.0
  %366 = vmatpush1.msra.mxu0 %v129
  %367 = vmatprep.subr.mxu0 0.0
  %368 = vmatpush1.msra.mxu0 %v130
  %369 = vmatprep.subr.mxu0 0.0
  %370 = vmatpush1.msra.mxu0 %v131
  %371 = vmatprep.subr.mxu0 0.0
  %372 = vmatpush1.msra.mxu0 %v132
  %373 = vmatprep.subr.mxu0 0.0
  %374 = vmatpush1.msra.mxu0 %v133
  %375 = vmatprep.mubr.f32.mxu0 %v19
  %376 = vmatmul.mubr.f32.gmra.mrb[0].mxu0 %v18
  %v377 = vpop.f32.mrb[0].mxu0
  %v378 = vadd.f32 %v293, %v377
  %v379 = vpop.f32.mrb[0].mxu0
  %380 = vmatprep.mubr.f32.mxu0 %v25
  %381 = vmatmul.mubr.f32.gmra.mrb[0].mxu0 %v24
  %v382 = vpop.f32.mrb[0].mxu0
  %v383 = vadd.f32 %v298, %v382
  %v384 = vpop.f32.mrb[0].mxu0
  %385 = vmatprep.mubr.f32.mxu0 %v31
  %386 = vmatmul.mubr.f32.gmra.mrb[0].mxu0 %v30
  %v387 = vpop.f32.mrb[0].mxu0
  %v388 = vadd.f32 %v303, %v387
  %v389 = vpop.f32.mrb[0].mxu0
  %390 = vmatprep.mubr.f32.mxu0 %v37
  %391 = vmatmul.mubr.f32.gmra.mrb[0].mxu0 %v36
  %v392 = vpop.f32.mrb[0].mxu0
  %v393 = vadd.f32 %v308, %v392
  %v394 = vpop.f32.mrb[0].mxu0
  %395 = vdwg.mxu0
  %v396 = vmax.f32 %v378, 0.0
  %v397 = vmax.f32 %v383, 0.0
  %v398 = vmax.f32 %v388, 0.0
  %v399 = vmax.f32 %v393, 0.0
  %400 = vst [vmem:[%s3] sm:$0xff] %v396
  %401 = vst [vmem:[%s3 + $0x8] sm:$0xff] %v397
  %402 = vst [vmem:[%s3 + $0x10] sm:$0xff] %v398
  %403 = vst [vmem:[%s3 + $0x18] sm:$0xff] %v399
  // Predicated region
  $region14: #{faster_rcnn_forward.4} parent=0 // pred_check
    _
  $region15: #{faster_rcnn_forward.4} parent=0 // pred_check_branch
    %405 = sbr.rel (0) target = $region17
  $region16: #{faster_rcnn_forward.4} parent=0 // pred_region
    _
  $region17: #{faster_rcnn_forward.4} parent=0 // pred_fallthru
    _
  // Predicated region
  $region18: #{faster_rcnn_forward.4} parent=0 // pred_check
    _
  $region19: #{faster_rcnn_forward.4} parent=0 // pred_check_branch
    %407 = sbr.rel (0) target = $region21
  $region20: #{faster_rcnn_forward.4} parent=0 // pred_region
    _
  $region21: #{faster_rcnn_forward.4} parent=0 // pred_fallthru
    _

// kernel: faster_rcnn_forward.5
$region0: #{faster_rcnn_forward.5}
  #allocation0 [shape = 'u32[]', space=smem, size = 0x4, offset = 0x4, fixed_abs, tag = 'smem constant byte address 0x4 - core index']
  #allocation1 [shape = 'u32[144,128]{1,0:T(1,128)}', space=vmem, size = 0x12000, scoped, tag = 'internal scratch']
  %s0 = inlined_call_operand.vmem [shape: f32[2,4,4,128], index: 0, kind: input, shape index: {}]
  %s1 = inlined_call_operand.vmem [shape: f32[9,128,128], index: 1, kind: input, shape index: {}]
  %s2 = inlined_call_operand.vmem [shape: f32[1,128], index: 2, kind: input, shape index: {}]
  %s3 = inlined_call_operand.vmem [shape: f32[128,18], index: 3, kind: input, shape index: {}]
  %s4 = inlined_call_operand.vmem [shape: f32[1,18], index: 4, kind: input, shape index: {}]
  %s5 = inlined_call_operand.vmem [shape: f32[2,4,4,18], index: 5, kind: output, shape index: {}]
  %s6 = sld [smem:[#allocation0]]
  $region53: #{faster_rcnn_forward.5} parent=0
    _
  %s8 = ssub.s32 1, %s6
  %s9 = scalar_select 0, %s8, %s6
  loop: start=0, step=1, limit=4
  $region2: #{faster_rcnn_forward.5} parent=0 // loop_pre_header
    _
  $region3: #{faster_rcnn_forward.5} parent=0 // loop_header
    %s11 = sphi 0, %s15
    %p12 = scmp.ge.s32.totalorder %s11, 4
    %s21 = sphi 0, %s23
    %s24 = sphi 0, %s21
    %s25 = sphi 0, %s24
    %s41 = sphi 0, %s25
    %s45 = sphi 0, %s45
    %s47 = sphi 0, %s45
    %s48 = sphi 0, %s47
    %s62 = sphi 0, %s48
    %s66 = sphi 0, %s66
    %s68 = sphi 0, %s66
    %s69 = sphi 0, %s68
    %s83 = sphi 0, %s69
    %s87 = sphi 0, %s87
    %s89 = sphi 0, %s87
    %s90 = sphi 0, %s89
    %s104 = sphi 0, %s90
    %s108 = sphi 0, %s108
    %s110 = sphi 0, %s108
    %s111 = sphi 0, %s110
    %s125 = sphi 0, %s111
    %s131 = sphi 0, %s133
    %s134 = sphi 0, %s131
    %s135 = sphi 0, %s134
    %s151 = sphi 0, %s135
  $region4: #{faster_rcnn_forward.5} parent=0 // loop_header_branch
    %14 = sbr.rel (%p12) target = $region8
  $region5: #{faster_rcnn_forward.5} parent=0 // loop_body
    %s16 = ssub.s32 %s11, 1
    %s17 = ssub.s32 %s11, 2
    %s18 = sadd.s32 %s11, 1
    %s19 = ssub.s32 %s11, %s18
    %p20 = scmp.eq.s32.totalorder %s19, 0
    %s22 = sadd.s32 %s21, 1
    %s23 = scalar_select %p20, %s21, %s22
    %p26 = pneg %p20
    %p27 = scmp.eq.s32.totalorder %s11, 1
    %p28 = por %p26, %p27
    %p29 = scmp.ne.s32.totalorder %s21, %s24
    %p30 = scmp.eq.s32.totalorder %s11, 0
    %p31 = por %p29, %p30
    %p32 = scmp.ne.s32.totalorder %s21, %s24
    %p33 = scmp.eq.s32.totalorder %s16, 1
    %p34 = por %p32, %p33
    %p35 = scmp.ne.s32.totalorder %s24, %s25
    %p36 = scmp.eq.s32.totalorder %s16, 0
    %p37 = por %p35, %p36
    %p38 = scmp.ne.s32.totalorder %s24, %s25
    %p39 = scmp.eq.s32.totalorder %s17, 1
    %p40 = por %p38, %p39
    %p42 = scmp.ne.s32.totalorder %s25, %s41
    %p43 = scmp.eq.s32.totalorder %s17, 0
    %p44 = por %p42, %p43
    %s46 = sadd.s32 %s45, 1
    %p49 = scmp.eq.s32.totalorder %s11, 1
    %p50 = scmp.ne.s32.totalorder %s45, %s47
    %p51 = scmp.eq.s32.totalorder %s11, 0
    %p52 = por %p50, %p51
    %p53 = scmp.ne.s32.totalorder %s45, %s47
    %p54 = scmp.eq.s32.totalorder %s16, 1
    %p55 = por %p53, %p54
    %p56 = scmp.ne.s32.totalorder %s47, %s48
    %p57 = scmp.eq.s32.totalorder %s16, 0
    %p58 = por %p56, %p57
    %p59 = scmp.ne.s32.totalorder %s47, %s48
    %p60 = scmp.eq.s32.totalorder %s17, 1
    %p61 = por %p59, %p60
    %p63 = scmp.ne.s32.totalorder %s48, %s62
    %p64 = scmp.eq.s32.totalorder %s17, 0
    %p65 = por %p63, %p64
    %s67 = sadd.s32 %s66, 1
    %p70 = scmp.eq.s32.totalorder %s11, 1
    %p71 = scmp.ne.s32.totalorder %s66, %s68
    %p72 = scmp.eq.s32.totalorder %s11, 0
    %p73 = por %p71, %p72
    %p74 = scmp.ne.s32.totalorder %s66, %s68
    %p75 = scmp.eq.s32.totalorder %s16, 1
    %p76 = por %p74, %p75
    %p77 = scmp.ne.s32.totalorder %s68, %s69
    %p78 = scmp.eq.s32.totalorder %s16, 0
    %p79 = por %p77, %p78
    %p80 = scmp.ne.s32.totalorder %s68, %s69
    %p81 = scmp.eq.s32.totalorder %s17, 1
    %p82 = por %p80, %p81
    %p84 = scmp.ne.s32.totalorder %s69, %s83
    %p85 = scmp.eq.s32.totalorder %s17, 0
    %p86 = por %p84, %p85
    %s88 = sadd.s32 %s87, 1
    %p91 = scmp.eq.s32.totalorder %s11, 1
    %p92 = scmp.ne.s32.totalorder %s87, %s89
    %p93 = scmp.eq.s32.totalorder %s11, 0
    %p94 = por %p92, %p93
    %p95 = scmp.ne.s32.totalorder %s87, %s89
    %p96 = scmp.eq.s32.totalorder %s16, 1
    %p97 = por %p95, %p96
    %p98 = scmp.ne.s32.totalorder %s89, %s90
    %p99 = scmp.eq.s32.totalorder %s16, 0
    %p100 = por %p98, %p99
    %p101 = scmp.ne.s32.totalorder %s89, %s90
    %p102 = scmp.eq.s32.totalorder %s17, 1
    %p103 = por %p101, %p102
    %p105 = scmp.ne.s32.totalorder %s90, %s104
    %p106 = scmp.eq.s32.totalorder %s17, 0
    %p107 = por %p105, %p106
    %s109 = sadd.s32 %s108, 1
    %p112 = scmp.eq.s32.totalorder %s11, 1
    %p113 = scmp.ne.s32.totalorder %s108, %s110
    %p114 = scmp.eq.s32.totalorder %s11, 0
    %p115 = por %p113, %p114
    %p116 = scmp.ne.s32.totalorder %s108, %s110
    %p117 = scmp.eq.s32.totalorder %s16, 1
    %p118 = por %p116, %p117
    %p119 = scmp.ne.s32.totalorder %s110, %s111
    %p120 = scmp.eq.s32.totalorder %s16, 0
    %p121 = por %p119, %p120
    %p122 = scmp.ne.s32.totalorder %s110, %s111
    %p123 = scmp.eq.s32.totalorder %s17, 1
    %p124 = por %p122, %p123
    %p126 = scmp.ne.s32.totalorder %s111, %s125
    %p127 = scmp.eq.s32.totalorder %s17, 0
    %p128 = por %p126, %p127
    %s129 = ssub.s32 %s11, %s18
    %p130 = scmp.eq.s32.totalorder %s129, 0
    %s132 = sadd.s32 %s131, 1
    %s133 = scalar_select %p130, %s131, %s132
    %p136 = pneg %p130
    %p137 = scmp.eq.s32.totalorder %s11, 1
    %p138 = por %p136, %p137
    %p139 = scmp.ne.s32.totalorder %s131, %s134
    %p140 = scmp.eq.s32.totalorder %s11, 0
    %p141 = por %p139, %p140
    %p142 = scmp.ne.s32.totalorder %s131, %s134
    %p143 = scmp.eq.s32.totalorder %s16, 1
    %p144 = por %p142, %p143
    %p145 = scmp.ne.s32.totalorder %s134, %s135
    %p146 = scmp.eq.s32.totalorder %s16, 0
    %p147 = por %p145, %p146
    %p148 = scmp.ne.s32.totalorder %s134, %s135
    %p149 = scmp.eq.s32.totalorder %s17, 1
    %p150 = por %p148, %p149
    %p152 = scmp.ne.s32.totalorder %s135, %s151
    %p153 = scmp.eq.s32.totalorder %s17, 0
    %p154 = por %p152, %p153
    %p155 = scmp.le.s32.totalorder 1, %s11
    %p156 = scmp.lt.s32.totalorder %s11, 3
    %p157 = pnand %p155, %p156
    %p158 = pneg %p157
    // Predicated region
    $region9: #{faster_rcnn_forward.5} parent=5 // pred_check
      _
    $region10: #{faster_rcnn_forward.5} parent=5 // pred_check_branch
      %160 = sbr.rel (%p157) target = $region12
    $region11: #{faster_rcnn_forward.5} parent=5 // pred_region
      %s161 = ssub.s32 %s11, 1
      // Predicated region
      $region13: #{faster_rcnn_forward.5} parent=11 // pred_check
        %p162 = pneg %p58
      $region14: #{faster_rcnn_forward.5} parent=11 // pred_check_branch
        %164 = sbr.rel (%p162) target = $region16
      $region15: #{faster_rcnn_forward.5} parent=11 // pred_region
        _
      $region16: #{faster_rcnn_forward.5} parent=11 // pred_fallthru
        _
      // Predicated region
      $region17: #{faster_rcnn_forward.5} parent=11 // pred_check
        %p165 = pneg %p79
      $region18: #{faster_rcnn_forward.5} parent=11 // pred_check_branch
        %167 = sbr.rel (%p165) target = $region20
      $region19: #{faster_rcnn_forward.5} parent=11 // pred_region
        _
      $region20: #{faster_rcnn_forward.5} parent=11 // pred_fallthru
        _
      // Predicated region
      $region21: #{faster_rcnn_forward.5} parent=11 // pred_check
        %p168 = pneg %p100
      $region22: #{faster_rcnn_forward.5} parent=11 // pred_check_branch
        %170 = sbr.rel (%p168) target = $region24
      $region23: #{faster_rcnn_forward.5} parent=11 // pred_region
        _
      $region24: #{faster_rcnn_forward.5} parent=11 // pred_fallthru
        _
      // Predicated region
      $region25: #{faster_rcnn_forward.5} parent=11 // pred_check
        %p171 = pneg %p121
      $region26: #{faster_rcnn_forward.5} parent=11 // pred_check_branch
        %173 = sbr.rel (%p171) target = $region28
      $region27: #{faster_rcnn_forward.5} parent=11 // pred_region
        _
      $region28: #{faster_rcnn_forward.5} parent=11 // pred_fallthru
        _
    $region12: #{faster_rcnn_forward.5} parent=5 // pred_fallthru
      _
    %p174 = scmp.lt.s32.totalorder %s11, 2
    // Predicated region
    $region29: #{faster_rcnn_forward.5} parent=5 // pred_check
      %p175 = pneg %p174
    $region30: #{faster_rcnn_forward.5} parent=5 // pred_check_branch
      %177 = sbr.rel (%p175) target = $region32
    $region31: #{faster_rcnn_forward.5} parent=5 // pred_region
      // Predicated region
      $region33: #{faster_rcnn_forward.5} parent=31 // pred_check
        %p178 = pneg %p31
      $region34: #{faster_rcnn_forward.5} parent=31 // pred_check_branch
        %180 = sbr.rel (%p178) target = $region36
      $region35: #{faster_rcnn_forward.5} parent=31 // pred_region
        %p181 = scmp.lt.s32.totalorder %s11, 1
        %s182 = scalar_select %p181, %s11, 1
        %s183 = smul.addr %s182, 4
        %s184 = smul.addr %s183, 4
        %s185 = scalar_lea.vmem %s0, %s184
      $region36: #{faster_rcnn_forward.5} parent=31 // pred_fallthru
        _
    $region32: #{faster_rcnn_forward.5} parent=5 // pred_fallthru
      _
    %p186 = scmp.le.s32.totalorder 1, %s11
    %p187 = scmp.lt.s32.totalorder %s11, 3
    %p188 = pnand %p186, %p187
    %p189 = pneg %p188
    // Predicated region
    $region37: #{faster_rcnn_forward.5} parent=5 // pred_check
      _
    $region38: #{faster_rcnn_forward.5} parent=5 // pred_check_branch
      %191 = sbr.rel (%p188) target = $region40
    $region39: #{faster_rcnn_forward.5} parent=5 // pred_region
      %s192 = ssub.s32 %s11, 1
      %p193 = scmp.lt.s32.totalorder %s16, 1
      %s194 = scalar_select %p193, %s16, 1
      %s195 = smul.addr %s194, 4
      %s196 = smul.addr %s195, 4
      %s197 = scalar_lea.vmem %s0, %s196
      %p198 = pneg %p37
      %p199 = pneg %p34
      %p200 = pneg %p58
      %p201 = pneg %p55
      %p202 = pneg %p79
      %p203 = pneg %p76
      %p204 = pneg %p100
      %p205 = pneg %p97
      %p206 = pneg %p121
      %p207 = pneg %p118
      %p208 = pneg %p147
      %p209 = pneg %p144
      %p210 = scmp.lt.s32.totalorder %s16, 1
      %s211 = scalar_select %p210, %s16, 1
      %s212 = smul.addr %s211, 4
      %s213 = smul.addr %s212, 4
      %s214 = scalar_lea.vmem %s5, %s213
      %p215 = scmp.lt.s32.totalorder %s16, 1
      %s216 = scalar_select %p215, %s16, 1
      %s217 = smul.addr %s216, 4
      %s218 = smul.addr %s217, 4
      %s219 = scalar_lea.vmem %s0, %s218
      %p220 = scmp.lt.s32.totalorder %s16, 1
      %s221 = scalar_select %p220, %s16, 1
      %s222 = smul.addr %s221, 4
      %s223 = smul.addr %s222, 4
      %s224 = scalar_lea.vmem %s5, %s223
      %v225 = vld [vmem:[%s219] sm:$0xf]
      %v226 = vld [vmem:[%s219 + $0x4] sm:$0xf]
      %v227 = vld [vmem:[%s219 + $0x8] sm:$0xf]
      %v228 = vld [vmem:[%s219 + $0xc] sm:$0xf]
      %v234 = vrot.slane 0.0, 7
      %v235 = vrot.slane %v225, 7
      %v236 = vrot.slane %v226, 7
      %v237 = vrot.slane %v227, 7
      %v238 = vrot.slane %v228, 7
      %vm244 = vcmask 1040384
      %v245 = vsel %vm244, 0.0, %v234
      %v246 = vsel %vm244, 0.0, %v235
      %v247 = vsel %vm244, 0.0, %v236
      %v248 = vsel %vm244, 0.0, %v237
      %v249 = vsel %vm244, 0.0, %v238
      %vm250 = vcmask 1044480
      %v251 = vsel %vm250, %v245, 0.0
      %v252 = vsel %vm250, %v246, 0.0
      %v253 = vsel %vm250, %v247, 0.0
      %v254 = vsel %vm250, %v248, 0.0
      %v255 = vsel %vm250, %v249, 0.0
      %v256 = vld [vmem:[%s1] sm:$0xff]
      %v257 = vld [vmem:[%s1 + $0x8] sm:$0xff]
      %v258 = vld [vmem:[%s1 + $0x10] sm:$0xff]
      %v259 = vld [vmem:[%s1 + $0x18] sm:$0xff]
      %v260 = vld [vmem:[%s1 + $0x20] sm:$0xff]
      %v261 = vld [vmem:[%s1 + $0x28] sm:$0xff]
      %v262 = vld [vmem:[%s1 + $0x30] sm:$0xff]
      %v263 = vld [vmem:[%s1 + $0x38] sm:$0xff]
      %v264 = vld [vmem:[%s1 + $0x40] sm:$0xff]
      %v265 = vld [vmem:[%s1 + $0x48] sm:$0xff]
      %v266 = vld [vmem:[%s1 + $0x50] sm:$0xff]
      %v267 = vld [vmem:[%s1 + $0x58] sm:$0xff]
      %v268 = vld [vmem:[%s1 + $0x60] sm:$0xff]
      %v269 = vld [vmem:[%s1 + $0x68] sm:$0xff]
      %v270 = vld [vmem:[%s1 + $0x70] sm:$0xff]
      %v271 = vld [vmem:[%s1 + $0x78] sm:$0xff]
      %v276 = vcombine.high %v251, %v251
      %v277 = vcombine.high %v252, %v252
      %v278 = vcombine.high %v253, %v253
      %v279 = vcombine.high %v254, %v254
      %vm280 = vcmask 1042432
      %vm281 = vcmask 1046532
      %vm282 = vmor %vm280, %vm281
      %v283 = vrot.slane %v251, 5
      %v284 = vrot.slane %v283, 4
      %v285 = vrot.slane %v276, 5
      %v286 = vsel %vm282, %v284, %v285
      %v287 = vrot.slane %v252, 5
      %v288 = vrot.slane %v287, 4
      %v289 = vrot.slane %v277, 5
      %v290 = vsel %vm282, %v288, %v289
      %v291 = vrot.slane %v253, 5
      %v292 = vrot.slane %v291, 4
      %v293 = vrot.slane %v278, 5
      %v294 = vsel %vm282, %v292, %v293
      %v295 = vrot.slane %v254, 5
      %v296 = vrot.slane %v295, 4
      %v297 = vrot.slane %v279, 5
      %v298 = vsel %vm282, %v296, %v297
      %s299 = scalar_lea.vmem %s1, 128
      %v300 = vld [vmem:[%s299] sm:$0xff]
      %v301 = vld [vmem:[%s299 + $0x8] sm:$0xff]
      %v302 = vld [vmem:[%s299 + $0x10] sm:$0xff]
      %v303 = vld [vmem:[%s299 + $0x18] sm:$0xff]
      %v304 = vld [vmem:[%s299 + $0x20] sm:$0xff]
      %v305 = vld [vmem:[%s299 + $0x28] sm:$0xff]
      %v306 = vld [vmem:[%s299 + $0x30] sm:$0xff]
      %v307 = vld [vmem:[%s299 + $0x38] sm:$0xff]
      %v308 = vld [vmem:[%s299 + $0x40] sm:$0xff]
      %v309 = vld [vmem:[%s299 + $0x48] sm:$0xff]
      %v310 = vld [vmem:[%s299 + $0x50] sm:$0xff]
      %v311 = vld [vmem:[%s299 + $0x58] sm:$0xff]
      %v312 = vld [vmem:[%s299 + $0x60] sm:$0xff]
      %v313 = vld [vmem:[%s299 + $0x68] sm:$0xff]
      %v314 = vld [vmem:[%s299 + $0x70] sm:$0xff]
      %v315 = vld [vmem:[%s299 + $0x78] sm:$0xff]
      %v316 = vcombine.low %v286, %v290
      %v317 = vcombine.low %v294, %v298
      %320 = vmatprep.subr.mxu0 0.0
      %321 = vmatpush1.msra.mxu0 %v300
      %322 = vmatprep.subr.mxu0 0.0
      %323 = vmatpush1.msra.mxu0 %v301
      %324 = vmatprep.subr.mxu0 0.0
      %325 = vmatpush1.msra.mxu0 %v302
      %326 = vmatprep.subr.mxu0 0.0
      %327 = vmatpush1.msra.mxu0 %v303
      %328 = vmatprep.subr.mxu0 0.0
      %329 = vmatpush1.msra.mxu0 %v304
      %330 = vmatprep.subr.mxu0 0.0
      %331 = vmatpush1.msra.mxu0 %v305
      %332 = vmatprep.subr.mxu0 0.0
      %333 = vmatpush1.msra.mxu0 %v306
      %334 = vmatprep.subr.mxu0 0.0
      %335 = vmatpush1.msra.mxu0 %v307
      %336 = vmatprep.subr.mxu0 0.0
      %337 = vmatpush1.msra.mxu0 %v308
      %338 = vmatprep.subr.mxu0 0.0
      %339 = vmatpush1.msra.mxu0 %v309
      %340 = vmatprep.subr.mxu0 0.0
      %341 = vmatpush1.msra.mxu0 %v310
      %342 = vmatprep.subr.mxu0 0.0
      %343 = vmatpush1.msra.mxu0 %v311
      %344 = vmatprep.subr.mxu0 0.0
      %345 = vmatpush1.msra.mxu0 %v312
      %346 = vmatprep.subr.mxu0 0.0
      %347 = vmatpush1.msra.mxu0 %v313
      %348 = vmatprep.subr.mxu0 0.0
      %349 = vmatpush1.msra.mxu0 %v314
      %350 = vmatprep.subr.mxu0 0.0
      %351 = vmatpush1.msra.mxu0 %v315
      %352 = vmatprep.subr.mxu0 0.0
      %353 = vmatpush1.msra.mxu0 0.0
      %354 = vmatprep.subr.mxu0 0.0
      %355 = vmatpush1.msra.mxu0 0.0
      %356 = vmatprep.subr.mxu0 0.0
      %357 = vmatpush1.msra.mxu0 0.0
      %358 = vmatprep.subr.mxu0 0.0
      %359 = vmatpush1.msra.mxu0 0.0
      %360 = vmatprep.subr.mxu0 0.0
      %361 = vmatpush1.msra.mxu0 0.0
      %362 = vmatprep.subr.mxu0 0.0
      %363 = vmatpush1.msra.mxu0 0.0
      %364 = vmatprep.subr.mxu0 0.0
      %365 = vmatpush1.msra.mxu0 0.0
      %366 = vmatprep.subr.mxu0 0.0
      %367 = vmatpush1.msra.mxu0 0.0
      %368 = vmatprep.subr.mxu0 0.0
      %369 = vmatpush1.msra.mxu0 0.0
      %370 = vmatprep.subr.mxu0 0.0
      %371 = vmatpush1.msra.mxu0 0.0
      %372 = vmatprep.subr.mxu0 0.0
      %373 = vmatpush1.msra.mxu0 0.0
      %374 = vmatprep.subr.mxu0 0.0
      %375 = vmatpush1.msra.mxu0 0.0
      %376 = vmatprep.subr.mxu0 0.0
      %377 = vmatpush1.msra.mxu0 0.0
      %378 = vmatprep.subr.mxu0 0.0
      %379 = vmatpush1.msra.mxu0 0.0
      %380 = vmatprep.subr.mxu0 0.0
      %381 = vmatpush1.msra.mxu0 0.0
      %382 = vmatprep.subr.mxu0 0.0
      %383 = vmatpush1.msra.mxu0 0.0
      %384 = vmatprep.mubr.f32.mxu0 0.0
      %385 = vmatmul.mubr.f32.gmra.mrb[0].mxu0 %v316
      %v386 = vpop.f32.mrb[0].mxu0
      %v387 = vadd.f32 0.0, %v386
      %v388 = vpop.f32.mrb[0].mxu0
      %389 = vmatprep.mubr.f32.mxu0 0.0
      %390 = vmatmul.mubr.f32.gmra.mrb[0].mxu0 %v317
      %v391 = vpop.f32.mrb[0].mxu0
      %v392 = vadd.f32 0.0, %v391
      %v393 = vpop.f32.mrb[0].mxu0
      %394 = vdwg.mxu0
      %v395 = vcombine.low %v251, %v252
      %v396 = vcombine.low %v253, %v254
      %399 = vmatprep.subr.mxu0 0.0
      %400 = vmatpush1.msra.mxu0 %v256
      %401 = vmatprep.subr.mxu0 0.0
      %402 = vmatpush1.msra.mxu0 %v257
      %403 = vmatprep.subr.mxu0 0.0
      %404 = vmatpush1.msra.mxu0 %v258
      %405 = vmatprep.subr.mxu0 0.0
      %406 = vmatpush1.msra.mxu0 %v259
      %407 = vmatprep.subr.mxu0 0.0
      %408 = vmatpush1.msra.mxu0 %v260
      %409 = vmatprep.subr.mxu0 0.0
      %410 = vmatpush1.msra.mxu0 %v261
      %411 = vmatprep.subr.mxu0 0.0
      %412 = vmatpush1.msra.mxu0 %v262
      %413 = vmatprep.subr.mxu0 0.0
      %414 = vmatpush1.msra.mxu0 %v263
      %415 = vmatprep.subr.mxu0 0.0
      %416 = vmatpush1.msra.mxu0 %v264
      %417 = vmatprep.subr.mxu0 0.0
      %418 = vmatpush1.msra.mxu0 %v265
      %419 = vmatprep.subr.mxu0 0.0
      %420 = vmatpush1.msra.mxu0 %v266
      %421 = vmatprep.subr.mxu0 0.0
      %422 = vmatpush1.msra.mxu0 %v267
      %423 = vmatprep.subr.mxu0 0.0
      %424 = vmatpush1.msra.mxu0 %v268
      %425 = vmatprep.subr.mxu0 0.0
      %426 = vmatpush1.msra.mxu0 %v269
      %427 = vmatprep.subr.mxu0 0.0
      %428 = vmatpush1.msra.mxu0 %v270
      %429 = vmatprep.subr.mxu0 0.0
      %430 = vmatpush1.msra.mxu0 %v271
      %431 = vmatprep.subr.mxu0 0.0
      %432 = vmatpush1.msra.mxu0 0.0
      %433 = vmatprep.subr.mxu0 0.0
      %434 = vmatpush1.msra.mxu0 0.0
      %435 = vmatprep.subr.mxu0 0.0
      %436 = vmatpush1.msra.mxu0 0.0
      %437 = vmatprep.subr.mxu0 0.0
      %438 = vmatpush1.msra.mxu0 0.0
      %439 = vmatprep.subr.mxu0 0.0
      %440 = vmatpush1.msra.mxu0 0.0
      %441 = vmatprep.subr.mxu0 0.0
      %442 = vmatpush1.msra.mxu0 0.0
      %443 = vmatprep.subr.mxu0 0.0
      %444 = vmatpush1.msra.mxu0 0.0
      %445 = vmatprep.subr.mxu0 0.0
      %446 = vmatpush1.msra.mxu0 0.0
      %447 = vmatprep.subr.mxu0 0.0
      %448 = vmatpush1.msra.mxu0 0.0
      %449 = vmatprep.subr.mxu0 0.0
      %450 = vmatpush1.msra.mxu0 0.0
      %451 = vmatprep.subr.mxu0 0.0
      %452 = vmatpush1.msra.mxu0 0.0
      %453 = vmatprep.subr.mxu0 0.0
      %454 = vmatpush1.msra.mxu0 0.0
      %455 = vmatprep.subr.mxu0 0.0
      %456 = vmatpush1.msra.mxu0 0.0
      %457 = vmatprep.subr.mxu0 0.0
      %458 = vmatpush1.msra.mxu0 0.0
      %459 = vmatprep.subr.mxu0 0.0
      %460 = vmatpush1.msra.mxu0 0.0
      %461 = vmatprep.subr.mxu0 0.0
      %462 = vmatpush1.msra.mxu0 0.0
      %463 = vmatprep.mubr.f32.mxu0 0.0
      %464 = vmatmul.mubr.f32.gmra.mrb[0].mxu0 %v395
      %v465 = vpop.f32.mrb[0].mxu0
      %v466 = vadd.f32 %v387, %v465
      %v467 = vpop.f32.mrb[0].mxu0
      %468 = vmatprep.mubr.f32.mxu0 0.0
      %469 = vmatmul.mubr.f32.gmra.mrb[0].mxu0 %v396
      %v470 = vpop.f32.mrb[0].mxu0
      %v471 = vadd.f32 %v392, %v470
      %v472 = vpop.f32.mrb[0].mxu0
      %473 = vdwg.mxu0
      %vm474 = vcmask 1041408
      %vm475 = vcmask 1045508
      %vm476 = vmor %vm474, %vm475
      %v477 = vrot.slane %v251, 6
      %v478 = vrot.slane %v477, 4
      %v479 = vrot.slane %v276, 6
      %v480 = vsel %vm476, %v478, %v479
      %v481 = vrot.slane %v252, 6
      %v482 = vrot.slane %v481, 4
      %v483 = vrot.slane %v277, 6
      %v484 = vsel %vm476, %v482, %v483
      %v485 = vrot.slane %v253, 6
      %v486 = vrot.slane %v485, 4
      %v487 = vrot.slane %v278, 6
      %v488 = vsel %vm476, %v486, %v487
      %v489 = vrot.slane %v254, 6
      %v490 = vrot.slane %v489, 4
      %v491 = vrot.slane %v279, 6
      %v492 = vsel %vm476, %v490, %v491
      %s493 = scalar_lea.vmem %s1, 256
      %v494 = vld [vmem:[%s493] sm:$0xff]
      %v495 = vld [vmem:[%s493 + $0x8] sm:$0xff]
      %v496 = vld [vmem:[%s493 + $0x10] sm:$0xff]
      %v497 = vld [vmem:[%s493 + $0x18] sm:$0xff]
      %v498 = vld [vmem:[%s493 + $0x20] sm:$0xff]
      %v499 = vld [vmem:[%s493 + $0x28] sm:$0xff]
      %v500 = vld [vmem:[%s493 + $0x30] sm:$0xff]
      %v501 = vld [vmem:[%s493 + $0x38] sm:$0xff]
      %v502 = vld [vmem:[%s493 + $0x40] sm:$0xff]
      %v503 = vld [vmem:[%s493 + $0x48] sm:$0xff]
      %v504 = vld [vmem:[%s493 + $0x50] sm:$0xff]
      %v505 = vld [vmem:[%s493 + $0x58] sm:$0xff]
      %v506 = vld [vmem:[%s493 + $0x60] sm:$0xff]
      %v507 = vld [vmem:[%s493 + $0x68] sm:$0xff]
      %v508 = vld [vmem:[%s493 + $0x70] sm:$0xff]
      %v509 = vld [vmem:[%s493 + $0x78] sm:$0xff]
      %v510 = vcombine.low %v480, %v484
      %v511 = vcombine.low %v488, %v492
      %514 = vmatprep.subr.mxu0 0.0
      %515 = vmatpush1.msra.mxu0 %v494
      %516 = vmatprep.subr.mxu0 0.0
      %517 = vmatpush1.msra.mxu0 %v495
      %518 = vmatprep.subr.mxu0 0.0
      %519 = vmatpush1.msra.mxu0 %v496
      %520 = vmatprep.subr.mxu0 0.0
      %521 = vmatpush1.msra.mxu0 %v497
      %522 = vmatprep.subr.mxu0 0.0
      %523 = vmatpush1.msra.mxu0 %v498
      %524 = vmatprep.subr.mxu0 0.0
      %525 = vmatpush1.msra.mxu0 %v499
      %526 = vmatprep.subr.mxu0 0.0
      %527 = vmatpush1.msra.mxu0 %v500
      %528 = vmatprep.subr.mxu0 0.0
      %529 = vmatpush1.msra.mxu0 %v501
      %530 = vmatprep.subr.mxu0 0.0
      %531 = vmatpush1.msra.mxu0 %v502
      %532 = vmatprep.subr.mxu0 0.0
      %533 = vmatpush1.msra.mxu0 %v503
      %534 = vmatprep.subr.mxu0 0.0
      %535 = vmatpush1.msra.mxu0 %v504
      %536 = vmatprep.subr.mxu0 0.0
      %537 = vmatpush1.msra.mxu0 %v505
      %538 = vmatprep.subr.mxu0 0.0
      %539 = vmatpush1.msra.mxu0 %v506
      %540 = vmatprep.subr.mxu0 0.0
      %541 = vmatpush1.msra.mxu0 %v507
      %542 = vmatprep.subr.mxu0 0.0
      %543 = vmatpush1.msra.mxu0 %v508
      %544 = vmatprep.subr.mxu0 0.0
      %545 = vmatpush1.msra.mxu0 %v509
      %546 = vmatprep.subr.mxu0 0.0
      %547 = vmatpush1.msra.mxu0 0.0
      %548 = vmatprep.subr.mxu0 0.0
      %549 = vmatpush1.msra.mxu0 0.0
      %550 = vmatprep.subr.mxu0 0.0
      %551 = vmatpush1.msra.mxu0 0.0
      %552 = vmatprep.subr.mxu0 0.0
      %553 = vmatpush1.msra.mxu0 0.0
      %554 = vmatprep.subr.mxu0 0.0
      %555 = vmatpush1.msra.mxu0 0.0
      %556 = vmatprep.subr.mxu0 0.0
      %557 = vmatpush1.msra.mxu0 0.0
      %558 = vmatprep.subr.mxu0 0.0
      %559 = vmatpush1.msra.mxu0 0.0
      %560 = vmatprep.subr.mxu0 0.0
      %561 = vmatpush1.msra.mxu0 0.0
      %562 = vmatprep.subr.mxu0 0.0
      %563 = vmatpush1.msra.mxu0 0.0
      %564 = vmatprep.subr.mxu0 0.0
      %565 = vmatpush1.msra.mxu0 0.0
      %566 = vmatprep.subr.mxu0 0.0
      %567 = vmatpush1.msra.mxu0 0.0
      %568 = vmatprep.subr.mxu0 0.0
      %569 = vmatpush1.msra.mxu0 0.0
      %570 = vmatprep.subr.mxu0 0.0
      %571 = vmatpush1.msra.mxu0 0.0
      %572 = vmatprep.subr.mxu0 0.0
      %573 = vmatpush1.msra.mxu0 0.0
      %574 = vmatprep.subr.mxu0 0.0
      %575 = vmatpush1.msra.mxu0 0.0
      %576 = vmatprep.subr.mxu0 0.0
      %577 = vmatpush1.msra.mxu0 0.0
      %578 = vmatprep.mubr.f32.mxu0 0.0
      %579 = vmatmul.mubr.f32.gmra.mrb[0].mxu0 %v510
      %v580 = vpop.f32.mrb[0].mxu0
      %v581 = vadd.f32 0.0, %v580
      %v582 = vpop.f32.mrb[0].mxu0
      %583 = vmatprep.mubr.f32.mxu0 0.0
      %584 = vmatmul.mubr.f32.gmra.mrb[0].mxu0 %v511
      %v585 = vpop.f32.mrb[0].mxu0
      %v586 = vadd.f32 0.0, %v585
      %v587 = vpop.f32.mrb[0].mxu0
      %588 = vdwg.mxu0
      %v589 = vadd.f32 %v466, %v581
      %v590 = vadd.f32 %v471, %v586
      %s591 = scalar_lea.vmem %s1, 384
      %v592 = vld [vmem:[%s591] sm:$0xff]
      %v593 = vld [vmem:[%s591 + $0x8] sm:$0xff]
      %v594 = vld [vmem:[%s591 + $0x10] sm:$0xff]
      %v595 = vld [vmem:[%s591 + $0x18] sm:$0xff]
      %v596 = vld [vmem:[%s591 + $0x20] sm:$0xff]
      %v597 = vld [vmem:[%s591 + $0x28] sm:$0xff]
      %v598 = vld [vmem:[%s591 + $0x30] sm:$0xff]
      %v599 = vld [vmem:[%s591 + $0x38] sm:$0xff]
      %v600 = vld [vmem:[%s591 + $0x40] sm:$0xff]
      %v601 = vld [vmem:[%s591 + $0x48] sm:$0xff]
      %v602 = vld [vmem:[%s591 + $0x50] sm:$0xff]
      %v603 = vld [vmem:[%s591 + $0x58] sm:$0xff]
      %v604 = vld [vmem:[%s591 + $0x60] sm:$0xff]
      %v605 = vld [vmem:[%s591 + $0x68] sm:$0xff]
      %v606 = vld [vmem:[%s591 + $0x70] sm:$0xff]
      %v607 = vld [vmem:[%s591 + $0x78] sm:$0xff]
      %v609 = vcombine.low %v252, %v253
      %v610 = vcombine.low %v254, %v255
      %613 = vmatprep.subr.mxu0 0.0
      %614 = vmatpush1.msra.mxu0 %v592
      %615 = vmatprep.subr.mxu0 0.0
      %616 = vmatpush1.msra.mxu0 %v593
      %617 = vmatprep.subr.mxu0 0.0
      %618 = vmatpush1.msra.mxu0 %v594
      %619 = vmatprep.subr.mxu0 0.0
      %620 = vmatpush1.msra.mxu0 %v595
      %621 = vmatprep.subr.mxu0 0.0
      %622 = vmatpush1.msra.mxu0 %v596
      %623 = vmatprep.subr.mxu0 0.0
      %624 = vmatpush1.msra.mxu0 %v597
      %625 = vmatprep.subr.mxu0 0.0
      %626 = vmatpush1.msra.mxu0 %v598
      %627 = vmatprep.subr.mxu0 0.0
      %628 = vmatpush1.msra.mxu0 %v599
      %629 = vmatprep.subr.mxu0 0.0
      %630 = vmatpush1.msra.mxu0 %v600
      %631 = vmatprep.subr.mxu0 0.0
      %632 = vmatpush1.msra.mxu0 %v601
      %633 = vmatprep.subr.mxu0 0.0
      %634 = vmatpush1.msra.mxu0 %v602
      %635 = vmatprep.subr.mxu0 0.0
      %636 = vmatpush1.msra.mxu0 %v603
      %637 = vmatprep.subr.mxu0 0.0
      %638 = vmatpush1.msra.mxu0 %v604
      %639 = vmatprep.subr.mxu0 0.0
      %640 = vmatpush1.msra.mxu0 %v605
      %641 = vmatprep.subr.mxu0 0.0
      %642 = vmatpush1.msra.mxu0 %v606
      %643 = vmatprep.subr.mxu0 0.0
      %644 = vmatpush1.msra.mxu0 %v607
      %645 = vmatprep.subr.mxu0 0.0
      %646 = vmatpush1.msra.mxu0 0.0
      %647 = vmatprep.subr.mxu0 0.0
      %648 = vmatpush1.msra.mxu0 0.0
      %649 = vmatprep.subr.mxu0 0.0
      %650 = vmatpush1.msra.mxu0 0.0
      %651 = vmatprep.subr.mxu0 0.0
      %652 = vmatpush1.msra.mxu0 0.0
      %653 = vmatprep.subr.mxu0 0.0
      %654 = vmatpush1.msra.mxu0 0.0
      %655 = vmatprep.subr.mxu0 0.0
      %656 = vmatpush1.msra.mxu0 0.0
      %657 = vmatprep.subr.mxu0 0.0
      %658 = vmatpush1.msra.mxu0 0.0
      %659 = vmatprep.subr.mxu0 0.0
      %660 = vmatpush1.msra.mxu0 0.0
      %661 = vmatprep.subr.mxu0 0.0
      %662 = vmatpush1.msra.mxu0 0.0
      %663 = vmatprep.subr.mxu0 0.0
      %664 = vmatpush1.msra.mxu0 0.0
      %665 = vmatprep.subr.mxu0 0.0
      %666 = vmatpush1.msra.mxu0 0.0
      %667 = vmatprep.subr.mxu0 0.0
      %668 = vmatpush1.msra.mxu0 0.0
      %669 = vmatprep.subr.mxu0 0.0
      %670 = vmatpush1.msra.mxu0 0.0
      %671 = vmatprep.subr.mxu0 0.0
      %672 = vmatpush1.msra.mxu0 0.0
      %673 = vmatprep.subr.mxu0 0.0
      %674 = vmatpush1.msra.mxu0 0.0
      %675 = vmatprep.subr.mxu0 0.0
      %676 = vmatpush1.msra.mxu0 0.0
      %677 = vmatprep.mubr.f32.mxu0 0.0
      %678 = vmatmul.mubr.f32.gmra.mrb[0].mxu0 %v609
      %v679 = vpop.f32.mrb[0].mxu0
      %v680 = vadd.f32 0.0, %v679
      %v681 = vpop.f32.mrb[0].mxu0
      %682 = vmatprep.mubr.f32.mxu0 0.0
      %683 = vmatmul.mubr.f32.gmra.mrb[0].mxu0 %v610
      %v684 = vpop.f32.mrb[0].mxu0
      %v685 = vadd.f32 0.0, %v684
      %v686 = vpop.f32.mrb[0].mxu0
      %687 = vdwg.mxu0
      %v688 = vadd.f32 %v589, %v680
      %v689 = vadd.f32 %v590, %v685
      %v690 = vcombine.high %v255, %v255
      %v691 = vrot.slane %v255, 5
      %v692 = vrot.slane %v691, 4
      %v693 = vrot.slane %v690, 5
      %v694 = vsel %vm282, %v692, %v693
      %s695 = scalar_lea.vmem %s1, 512
      %v696 = vld [vmem:[%s695] sm:$0xff]
      %v697 = vld [vmem:[%s695 + $0x8] sm:$0xff]
      %v698 = vld [vmem:[%s695 + $0x10] sm:$0xff]
      %v699 = vld [vmem:[%s695 + $0x18] sm:$0xff]
      %v700 = vld [vmem:[%s695 + $0x20] sm:$0xff]
      %v701 = vld [vmem:[%s695 + $0x28] sm:$0xff]
      %v702 = vld [vmem:[%s695 + $0x30] sm:$0xff]
      %v703 = vld [vmem:[%s695 + $0x38] sm:$0xff]
      %v704 = vld [vmem:[%s695 + $0x40] sm:$0xff]
      %v705 = vld [vmem:[%s695 + $0x48] sm:$0xff]
      %v706 = vld [vmem:[%s695 + $0x50] sm:$0xff]
      %v707 = vld [vmem:[%s695 + $0x58] sm:$0xff]
      %v708 = vld [vmem:[%s695 + $0x60] sm:$0xff]
      %v709 = vld [vmem:[%s695 + $0x68] sm:$0xff]
      %v710 = vld [vmem:[%s695 + $0x70] sm:$0xff]
      %v711 = vld [vmem:[%s695 + $0x78] sm:$0xff]
      %v712 = vcombine.low %v290, %v294
      %v713 = vcombine.low %v298, %v694
      %716 = vmatprep.subr.mxu0 0.0
      %717 = vmatpush1.msra.mxu0 %v696
      %718 = vmatprep.subr.mxu0 0.0
      %719 = vmatpush1.msra.mxu0 %v697
      %720 = vmatprep.subr.mxu0 0.0
      %721 = vmatpush1.msra.mxu0 %v698
      %722 = vmatprep.subr.mxu0 0.0
      %723 = vmatpush1.msra.mxu0 %v699
      %724 = vmatprep.subr.mxu0 0.0
      %725 = vmatpush1.msra.mxu0 %v700
      %726 = vmatprep.subr.mxu0 0.0
      %727 = vmatpush1.msra.mxu0 %v701
      %728 = vmatprep.subr.mxu0 0.0
      %729 = vmatpush1.msra.mxu0 %v702
      %730 = vmatprep.subr.mxu0 0.0
      %731 = vmatpush1.msra.mxu0 %v703
      %732 = vmatprep.subr.mxu0 0.0
      %733 = vmatpush1.msra.mxu0 %v704
      %734 = vmatprep.subr.mxu0 0.0
      %735 = vmatpush1.msra.mxu0 %v705
      %736 = vmatprep.subr.mxu0 0.0
      %737 = vmatpush1.msra.mxu0 %v706
      %738 = vmatprep.subr.mxu0 0.0
      %739 = vmatpush1.msra.mxu0 %v707
      %740 = vmatprep.subr.mxu0 0.0
      %741 = vmatpush1.msra.mxu0 %v708
      %742 = vmatprep.subr.mxu0 0.0
      %743 = vmatpush1.msra.mxu0 %v709
      %744 = vmatprep.subr.mxu0 0.0
      %745 = vmatpush1.msra.mxu0 %v710
      %746 = vmatprep.subr.mxu0 0.0
      %747 = vmatpush1.msra.mxu0 %v711
      %748 = vmatprep.subr.mxu0 0.0
      %749 = vmatpush1.msra.mxu0 0.0
      %750 = vmatprep.subr.mxu0 0.0
      %751 = vmatpush1.msra.mxu0 0.0
      %752 = vmatprep.subr.mxu0 0.0
      %753 = vmatpush1.msra.mxu0 0.0
      %754 = vmatprep.subr.mxu0 0.0
      %755 = vmatpush1.msra.mxu0 0.0
      %756 = vmatprep.subr.mxu0 0.0
      %757 = vmatpush1.msra.mxu0 0.0
      %758 = vmatprep.subr.mxu0 0.0
      %759 = vmatpush1.msra.mxu0 0.0
      %760 = vmatprep.subr.mxu0 0.0
      %761 = vmatpush1.msra.mxu0 0.0
      %762 = vmatprep.subr.mxu0 0.0
      %763 = vmatpush1.msra.mxu0 0.0
      %764 = vmatprep.subr.mxu0 0.0
      %765 = vmatpush1.msra.mxu0 0.0
      %766 = vmatprep.subr.mxu0 0.0
      %767 = vmatpush1.msra.mxu0 0.0
      %768 = vmatprep.subr.mxu0 0.0
      %769 = vmatpush1.msra.mxu0 0.0
      %770 = vmatprep.subr.mxu0 0.0
      %771 = vmatpush1.msra.mxu0 0.0
      %772 = vmatprep.subr.mxu0 0.0
      %773 = vmatpush1.msra.mxu0 0.0
      %774 = vmatprep.subr.mxu0 0.0
      %775 = vmatpush1.msra.mxu0 0.0
      %776 = vmatprep.subr.mxu0 0.0
      %777 = vmatpush1.msra.mxu0 0.0
      %778 = vmatprep.subr.mxu0 0.0
      %779 = vmatpush1.msra.mxu0 0.0
      %780 = vmatprep.mubr.f32.mxu0 0.0
      %781 = vmatmul.mubr.f32.gmra.mrb[0].mxu0 %v712
      %v782 = vpop.f32.mrb[0].mxu0
      %v783 = vadd.f32 0.0, %v782
      %v784 = vpop.f32.mrb[0].mxu0
      %785 = vmatprep.mubr.f32.mxu0 0.0
      %786 = vmatmul.mubr.f32.gmra.mrb[0].mxu0 %v713
      %v787 = vpop.f32.mrb[0].mxu0
      %v788 = vadd.f32 0.0, %v787
      %v789 = vpop.f32.mrb[0].mxu0
      %790 = vdwg.mxu0
      %v791 = vadd.f32 %v688, %v783
      %v792 = vadd.f32 %v689, %v788
      %v793 = vrot.slane %v255, 6
      %v794 = vrot.slane %v793, 4
      %v795 = vrot.slane %v690, 6
      %v796 = vsel %vm476, %v794, %v795
      %s797 = scalar_lea.vmem %s1, 640
      %v798 = vld [vmem:[%s797] sm:$0xff]
      %v799 = vld [vmem:[%s797 + $0x8] sm:$0xff]
      %v800 = vld [vmem:[%s797 + $0x10] sm:$0xff]
      %v801 = vld [vmem:[%s797 + $0x18] sm:$0xff]
      %v802 = vld [vmem:[%s797 + $0x20] sm:$0xff]
      %v803 = vld [vmem:[%s797 + $0x28] sm:$0xff]
      %v804 = vld [vmem:[%s797 + $0x30] sm:$0xff]
      %v805 = vld [vmem:[%s797 + $0x38] sm:$0xff]
      %v806 = vld [vmem:[%s797 + $0x40] sm:$0xff]
      %v807 = vld [vmem:[%s797 + $0x48] sm:$0xff]
      %v808 = vld [vmem:[%s797 + $0x50] sm:$0xff]
      %v809 = vld [vmem:[%s797 + $0x58] sm:$0xff]
      %v810 = vld [vmem:[%s797 + $0x60] sm:$0xff]
      %v811 = vld [vmem:[%s797 + $0x68] sm:$0xff]
      %v812 = vld [vmem:[%s797 + $0x70] sm:$0xff]
      %v813 = vld [vmem:[%s797 + $0x78] sm:$0xff]
      %v814 = vcombine.low %v484, %v488
      %v815 = vcombine.low %v492, %v796
      %818 = vmatprep.subr.mxu0 0.0
      %819 = vmatpush1.msra.mxu0 %v798
      %820 = vmatprep.subr.mxu0 0.0
      %821 = vmatpush1.msra.mxu0 %v799
      %822 = vmatprep.subr.mxu0 0.0
      %823 = vmatpush1.msra.mxu0 %v800
      %824 = vmatprep.subr.mxu0 0.0
      %825 = vmatpush1.msra.mxu0 %v801
      %826 = vmatprep.subr.mxu0 0.0
      %827 = vmatpush1.msra.mxu0 %v802
      %828 = vmatprep.subr.mxu0 0.0
      %829 = vmatpush1.msra.mxu0 %v803
      %830 = vmatprep.subr.mxu0 0.0
      %831 = vmatpush1.msra.mxu0 %v804
      %832 = vmatprep.subr.mxu0 0.0
      %833 = vmatpush1.msra.mxu0 %v805
      %834 = vmatprep.subr.mxu0 0.0
      %835 = vmatpush1.msra.mxu0 %v806
      %836 = vmatprep.subr.mxu0 0.0
      %837 = vmatpush1.msra.mxu0 %v807
      %838 = vmatprep.subr.mxu0 0.0
      %839 = vmatpush1.msra.mxu0 %v808
      %840 = vmatprep.subr.mxu0 0.0
      %841 = vmatpush1.msra.mxu0 %v809
      %842 = vmatprep.subr.mxu0 0.0
      %843 = vmatpush1.msra.mxu0 %v810
      %844 = vmatprep.subr.mxu0 0.0
      %845 = vmatpush1.msra.mxu0 %v811
      %846 = vmatprep.subr.mxu0 0.0
      %847 = vmatpush1.msra.mxu0 %v812
      %848 = vmatprep.subr.mxu0 0.0
      %849 = vmatpush1.msra.mxu0 %v813
      %850 = vmatprep.subr.mxu0 0.0
      %851 = vmatpush1.msra.mxu0 0.0
      %852 = vmatprep.subr.mxu0 0.0
      %853 = vmatpush1.msra.mxu0 0.0
      %854 = vmatprep.subr.mxu0 0.0
      %855 = vmatpush1.msra.mxu0 0.0
      %856 = vmatprep.subr.mxu0 0.0
      %857 = vmatpush1.msra.mxu0 0.0
      %858 = vmatprep.subr.mxu0 0.0
      %859 = vmatpush1.msra.mxu0 0.0
      %860 = vmatprep.subr.mxu0 0.0
      %861 = vmatpush1.msra.mxu0 0.0
      %862 = vmatprep.subr.mxu0 0.0
      %863 = vmatpush1.msra.mxu0 0.0
      %864 = vmatprep.subr.mxu0 0.0
      %865 = vmatpush1.msra.mxu0 0.0
      %866 = vmatprep.subr.mxu0 0.0
      %867 = vmatpush1.msra.mxu0 0.0
      %868 = vmatprep.subr.mxu0 0.0
      %869 = vmatpush1.msra.mxu0 0.0
      %870 = vmatprep.subr.mxu0 0.0
      %871 = vmatpush1.msra.mxu0 0.0
      %872 = vmatprep.subr.mxu0 0.0
      %873 = vmatpush1.msra.mxu0 0.0
      %874 = vmatprep.subr.mxu0 0.0
      %875 = vmatpush1.msra.mxu0 0.0
      %876 = vmatprep.subr.mxu0 0.0
      %877 = vmatpush1.msra.mxu0 0.0
      %878 = vmatprep.subr.mxu0 0.0
      %879 = vmatpush1.msra.mxu0 0.0
      %880 = vmatprep.subr.mxu0 0.0
      %881 = vmatpush1.msra.mxu0 0.0
      %882 = vmatprep.mubr.f32.mxu0 0.0
      %883 = vmatmul.mubr.f32.gmra.mrb[0].mxu0 %v814
      %v884 = vpop.f32.mrb[0].mxu0
      %v885 = vadd.f32 0.0, %v884
      %v886 = vpop.f32.mrb[0].mxu0
      %887 = vmatprep.mubr.f32.mxu0 0.0
      %888 = vmatmul.mubr.f32.gmra.mrb[0].mxu0 %v815
      %v889 = vpop.f32.mrb[0].mxu0
      %v890 = vadd.f32 0.0, %v889
      %v891 = vpop.f32.mrb[0].mxu0
      %892 = vdwg.mxu0
      %v893 = vadd.f32 %v791, %v885
      %v894 = vadd.f32 %v792, %v890
      %s895 = scalar_lea.vmem %s1, 768
      %v896 = vld [vmem:[%s895] sm:$0xff]
      %v897 = vld [vmem:[%s895 + $0x8] sm:$0xff]
      %v898 = vld [vmem:[%s895 + $0x10] sm:$0xff]
      %v899 = vld [vmem:[%s895 + $0x18] sm:$0xff]
      %v900 = vld [vmem:[%s895 + $0x20] sm:$0xff]
      %v901 = vld [vmem:[%s895 + $0x28] sm:$0xff]
      %v902 = vld [vmem:[%s895 + $0x30] sm:$0xff]
      %v903 = vld [vmem:[%s895 + $0x38] sm:$0xff]
      %v904 = vld [vmem:[%s895 + $0x40] sm:$0xff]
      %v905 = vld [vmem:[%s895 + $0x48] sm:$0xff]
      %v906 = vld [vmem:[%s895 + $0x50] sm:$0xff]
      %v907 = vld [vmem:[%s895 + $0x58] sm:$0xff]
      %v908 = vld [vmem:[%s895 + $0x60] sm:$0xff]
      %v909 = vld [vmem:[%s895 + $0x68] sm:$0xff]
      %v910 = vld [vmem:[%s895 + $0x70] sm:$0xff]
      %v911 = vld [vmem:[%s895 + $0x78] sm:$0xff]
      %v912 = vcombine.low %v255, %v251
      %914 = vmatprep.subr.mxu0 0.0
      %915 = vmatpush1.msra.mxu0 %v896
      %916 = vmatprep.subr.mxu0 0.0
      %917 = vmatpush1.msra.mxu0 %v897
      %918 = vmatprep.subr.mxu0 0.0
      %919 = vmatpush1.msra.mxu0 %v898
      %920 = vmatprep.subr.mxu0 0.0
      %921 = vmatpush1.msra.mxu0 %v899
      %922 = vmatprep.subr.mxu0 0.0
      %923 = vmatpush1.msra.mxu0 %v900
      %924 = vmatprep.subr.mxu0 0.0
      %925 = vmatpush1.msra.mxu0 %v901
      %926 = vmatprep.subr.mxu0 0.0
      %927 = vmatpush1.msra.mxu0 %v902
      %928 = vmatprep.subr.mxu0 0.0
      %929 = vmatpush1.msra.mxu0 %v903
      %930 = vmatprep.subr.mxu0 0.0
      %931 = vmatpush1.msra.mxu0 %v904
      %932 = vmatprep.subr.mxu0 0.0
      %933 = vmatpush1.msra.mxu0 %v905
      %934 = vmatprep.subr.mxu0 0.0
      %935 = vmatpush1.msra.mxu0 %v906
      %936 = vmatprep.subr.mxu0 0.0
      %937 = vmatpush1.msra.mxu0 %v907
      %938 = vmatprep.subr.mxu0 0.0
      %939 = vmatpush1.msra.mxu0 %v908
      %940 = vmatprep.subr.mxu0 0.0
      %941 = vmatpush1.msra.mxu0 %v909
      %942 = vmatprep.subr.mxu0 0.0
      %943 = vmatpush1.msra.mxu0 %v910
      %944 = vmatprep.subr.mxu0 0.0
      %945 = vmatpush1.msra.mxu0 %v911
      %946 = vmatprep.subr.mxu0 0.0
      %947 = vmatpush1.msra.mxu0 0.0
      %948 = vmatprep.subr.mxu0 0.0
      %949 = vmatpush1.msra.mxu0 0.0
      %950 = vmatprep.subr.mxu0 0.0
      %951 = vmatpush1.msra.mxu0 0.0
      %952 = vmatprep.subr.mxu0 0.0
      %953 = vmatpush1.msra.mxu0 0.0
      %954 = vmatprep.subr.mxu0 0.0
      %955 = vmatpush1.msra.mxu0 0.0
      %956 = vmatprep.subr.mxu0 0.0
      %957 = vmatpush1.msra.mxu0 0.0
      %958 = vmatprep.subr.mxu0 0.0
      %959 = vmatpush1.msra.mxu0 0.0
      %960 = vmatprep.subr.mxu0 0.0
      %961 = vmatpush1.msra.mxu0 0.0
      %962 = vmatprep.subr.mxu0 0.0
      %963 = vmatpush1.msra.mxu0 0.0
      %964 = vmatprep.subr.mxu0 0.0
      %965 = vmatpush1.msra.mxu0 0.0
      %966 = vmatprep.subr.mxu0 0.0
      %967 = vmatpush1.msra.mxu0 0.0
      %968 = vmatprep.subr.mxu0 0.0
      %969 = vmatpush1.msra.mxu0 0.0
      %970 = vmatprep.subr.mxu0 0.0
      %971 = vmatpush1.msra.mxu0 0.0
      %972 = vmatprep.subr.mxu0 0.0
      %973 = vmatpush1.msra.mxu0 0.0
      %974 = vmatprep.subr.mxu0 0.0
      %975 = vmatpush1.msra.mxu0 0.0
      %976 = vmatprep.subr.mxu0 0.0
      %977 = vmatpush1.msra.mxu0 0.0
      %978 = vmatprep.mubr.f32.mxu0 0.0
      %979 = vmatmul.mubr.f32.gmra.mrb[0].mxu0 %v396
      %v980 = vpop.f32.mrb[0].mxu0
      %v981 = vadd.f32 0.0, %v980
      %v982 = vpop.f32.mrb[0].mxu0
      %983 = vmatprep.mubr.f32.mxu0 0.0
      %984 = vmatmul.mubr.f32.gmra.mrb[0].mxu0 %v912
      %v985 = vpop.f32.mrb[0].mxu0
      %v986 = vadd.f32 0.0, %v985
      %v987 = vpop.f32.mrb[0].mxu0
      %988 = vdwg.mxu0
      %v989 = vadd.f32 %v893, %v981
      %v990 = vadd.f32 %v894, %v986
      %s991 = scalar_lea.vmem %s1, 896
      %v992 = vld [vmem:[%s991] sm:$0xff]
      %v993 = vld [vmem:[%s991 + $0x8] sm:$0xff]
      %v994 = vld [vmem:[%s991 + $0x10] sm:$0xff]
      %v995 = vld [vmem:[%s991 + $0x18] sm:$0xff]
      %v996 = vld [vmem:[%s991 + $0x20] sm:$0xff]
      %v997 = vld [vmem:[%s991 + $0x28] sm:$0xff]
      %v998 = vld [vmem:[%s991 + $0x30] sm:$0xff]
      %v999 = vld [vmem:[%s991 + $0x38] sm:$0xff]
      %v1000 = vld [vmem:[%s991 + $0x40] sm:$0xff]
      %v1001 = vld [vmem:[%s991 + $0x48] sm:$0xff]
      %v1002 = vld [vmem:[%s991 + $0x50] sm:$0xff]
      %v1003 = vld [vmem:[%s991 + $0x58] sm:$0xff]
      %v1004 = vld [vmem:[%s991 + $0x60] sm:$0xff]
      %v1005 = vld [vmem:[%s991 + $0x68] sm:$0xff]
      %v1006 = vld [vmem:[%s991 + $0x70] sm:$0xff]
      %v1007 = vld [vmem:[%s991 + $0x78] sm:$0xff]
      %v1008 = vcombine.low %v694, %v286
      %1010 = vmatprep.subr.mxu0 0.0
      %1011 = vmatpush1.msra.mxu0 %v992
      %1012 = vmatprep.subr.mxu0 0.0
      %1013 = vmatpush1.msra.mxu0 %v993
      %1014 = vmatprep.subr.mxu0 0.0
      %1015 = vmatpush1.msra.mxu0 %v994
      %1016 = vmatprep.subr.mxu0 0.0
      %1017 = vmatpush1.msra.mxu0 %v995
      %1018 = vmatprep.subr.mxu0 0.0
      %1019 = vmatpush1.msra.mxu0 %v996
      %1020 = vmatprep.subr.mxu0 0.0
      %1021 = vmatpush1.msra.mxu0 %v997
      %1022 = vmatprep.subr.mxu0 0.0
      %1023 = vmatpush1.msra.mxu0 %v998
      %1024 = vmatprep.subr.mxu0 0.0
      %1025 = vmatpush1.msra.mxu0 %v999
      %1026 = vmatprep.subr.mxu0 0.0
      %1027 = vmatpush1.msra.mxu0 %v1000
      %1028 = vmatprep.subr.mxu0 0.0
      %1029 = vmatpush1.msra.mxu0 %v1001
      %1030 = vmatprep.subr.mxu0 0.0
      %1031 = vmatpush1.msra.mxu0 %v1002
      %1032 = vmatprep.subr.mxu0 0.0
      %1033 = vmatpush1.msra.mxu0 %v1003
      %1034 = vmatprep.subr.mxu0 0.0
      %1035 = vmatpush1.msra.mxu0 %v1004
      %1036 = vmatprep.subr.mxu0 0.0
      %1037 = vmatpush1.msra.mxu0 %v1005
      %1038 = vmatprep.subr.mxu0 0.0
      %1039 = vmatpush1.msra.mxu0 %v1006
      %1040 = vmatprep.subr.mxu0 0.0
      %1041 = vmatpush1.msra.mxu0 %v1007
      %1042 = vmatprep.subr.mxu0 0.0
      %1043 = vmatpush1.msra.mxu0 0.0
      %1044 = vmatprep.subr.mxu0 0.0
      %1045 = vmatpush1.msra.mxu0 0.0
      %1046 = vmatprep.subr.mxu0 0.0
      %1047 = vmatpush1.msra.mxu0 0.0
      %1048 = vmatprep.subr.mxu0 0.0
      %1049 = vmatpush1.msra.mxu0 0.0
      %1050 = vmatprep.subr.mxu0 0.0
      %1051 = vmatpush1.msra.mxu0 0.0
      %1052 = vmatprep.subr.mxu0 0.0
      %1053 = vmatpush1.msra.mxu0 0.0
      %1054 = vmatprep.subr.mxu0 0.0
      %1055 = vmatpush1.msra.mxu0 0.0
      %1056 = vmatprep.subr.mxu0 0.0
      %1057 = vmatpush1.msra.mxu0 0.0
      %1058 = vmatprep.subr.mxu0 0.0
      %1059 = vmatpush1.msra.mxu0 0.0
      %1060 = vmatprep.subr.mxu0 0.0
      %1061 = vmatpush1.msra.mxu0 0.0
      %1062 = vmatprep.subr.mxu0 0.0
      %1063 = vmatpush1.msra.mxu0 0.0
      %1064 = vmatprep.subr.mxu0 0.0
      %1065 = vmatpush1.msra.mxu0 0.0
      %1066 = vmatprep.subr.mxu0 0.0
      %1067 = vmatpush1.msra.mxu0 0.0
      %1068 = vmatprep.subr.mxu0 0.0
      %1069 = vmatpush1.msra.mxu0 0.0
      %1070 = vmatprep.subr.mxu0 0.0
      %1071 = vmatpush1.msra.mxu0 0.0
      %1072 = vmatprep.subr.mxu0 0.0
      %1073 = vmatpush1.msra.mxu0 0.0
      %1074 = vmatprep.mubr.f32.mxu0 0.0
      %1075 = vmatmul.mubr.f32.gmra.mrb[0].mxu0 %v317
      %v1076 = vpop.f32.mrb[0].mxu0
      %v1077 = vadd.f32 0.0, %v1076
      %v1078 = vpop.f32.mrb[0].mxu0
      %1079 = vmatprep.mubr.f32.mxu0 0.0
      %1080 = vmatmul.mubr.f32.gmra.mrb[0].mxu0 %v1008
      %v1081 = vpop.f32.mrb[0].mxu0
      %v1082 = vadd.f32 0.0, %v1081
      %v1083 = vpop.f32.mrb[0].mxu0
      %1084 = vdwg.mxu0
      %v1085 = vadd.f32 %v989, %v1077
      %v1086 = vadd.f32 %v990, %v1082
      %s1087 = scalar_lea.vmem %s1, 1024
      %v1088 = vld [vmem:[%s1087] sm:$0xff]
      %v1089 = vld [vmem:[%s1087 + $0x8] sm:$0xff]
      %v1090 = vld [vmem:[%s1087 + $0x10] sm:$0xff]
      %v1091 = vld [vmem:[%s1087 + $0x18] sm:$0xff]
      %v1092 = vld [vmem:[%s1087 + $0x20] sm:$0xff]
      %v1093 = vld [vmem:[%s1087 + $0x28] sm:$0xff]
      %v1094 = vld [vmem:[%s1087 + $0x30] sm:$0xff]
      %v1095 = vld [vmem:[%s1087 + $0x38] sm:$0xff]
      %v1096 = vld [vmem:[%s1087 + $0x40] sm:$0xff]
      %v1097 = vld [vmem:[%s1087 + $0x48] sm:$0xff]
      %v1098 = vld [vmem:[%s1087 + $0x50] sm:$0xff]
      %v1099 = vld [vmem:[%s1087 + $0x58] sm:$0xff]
      %v1100 = vld [vmem:[%s1087 + $0x60] sm:$0xff]
      %v1101 = vld [vmem:[%s1087 + $0x68] sm:$0xff]
      %v1102 = vld [vmem:[%s1087 + $0x70] sm:$0xff]
      %v1103 = vld [vmem:[%s1087 + $0x78] sm:$0xff]
      %v1104 = vcombine.low %v796, %v480
      %1106 = vmatprep.subr.mxu0 0.0
      %1107 = vmatpush1.msra.mxu0 %v1088
      %1108 = vmatprep.subr.mxu0 0.0
      %1109 = vmatpush1.msra.mxu0 %v1089
      %1110 = vmatprep.subr.mxu0 0.0
      %1111 = vmatpush1.msra.mxu0 %v1090
      %1112 = vmatprep.subr.mxu0 0.0
      %1113 = vmatpush1.msra.mxu0 %v1091
      %1114 = vmatprep.subr.mxu0 0.0
      %1115 = vmatpush1.msra.mxu0 %v1092
      %1116 = vmatprep.subr.mxu0 0.0
      %1117 = vmatpush1.msra.mxu0 %v1093
      %1118 = vmatprep.subr.mxu0 0.0
      %1119 = vmatpush1.msra.mxu0 %v1094
      %1120 = vmatprep.subr.mxu0 0.0
      %1121 = vmatpush1.msra.mxu0 %v1095
      %1122 = vmatprep.subr.mxu0 0.0
      %1123 = vmatpush1.msra.mxu0 %v1096
      %1124 = vmatprep.subr.mxu0 0.0
      %1125 = vmatpush1.msra.mxu0 %v1097
      %1126 = vmatprep.subr.mxu0 0.0
      %1127 = vmatpush1.msra.mxu0 %v1098
      %1128 = vmatprep.subr.mxu0 0.0
      %1129 = vmatpush1.msra.mxu0 %v1099
      %1130 = vmatprep.subr.mxu0 0.0
      %1131 = vmatpush1.msra.mxu0 %v1100
      %1132 = vmatprep.subr.mxu0 0.0
      %1133 = vmatpush1.msra.mxu0 %v1101
      %1134 = vmatprep.subr.mxu0 0.0
      %1135 = vmatpush1.msra.mxu0 %v1102
      %1136 = vmatprep.subr.mxu0 0.0
      %1137 = vmatpush1.msra.mxu0 %v1103
      %1138 = vmatprep.subr.mxu0 0.0
      %1139 = vmatpush1.msra.mxu0 0.0
      %1140 = vmatprep.subr.mxu0 0.0
      %1141 = vmatpush1.msra.mxu0 0.0
      %1142 = vmatprep.subr.mxu0 0.0
      %1143 = vmatpush1.msra.mxu0 0.0
      %1144 = vmatprep.subr.mxu0 0.0
      %1145 = vmatpush1.msra.mxu0 0.0
      %1146 = vmatprep.subr.mxu0 0.0
      %1147 = vmatpush1.msra.mxu0 0.0
      %1148 = vmatprep.subr.mxu0 0.0
      %1149 = vmatpush1.msra.mxu0 0.0
      %1150 = vmatprep.subr.mxu0 0.0
      %1151 = vmatpush1.msra.mxu0 0.0
      %1152 = vmatprep.subr.mxu0 0.0
      %1153 = vmatpush1.msra.mxu0 0.0
      %1154 = vmatprep.subr.mxu0 0.0
      %1155 = vmatpush1.msra.mxu0 0.0
      %1156 = vmatprep.subr.mxu0 0.0
      %1157 = vmatpush1.msra.mxu0 0.0
      %1158 = vmatprep.subr.mxu0 0.0
      %1159 = vmatpush1.msra.mxu0 0.0
      %1160 = vmatprep.subr.mxu0 0.0
      %1161 = vmatpush1.msra.mxu0 0.0
      %1162 = vmatprep.subr.mxu0 0.0
      %1163 = vmatpush1.msra.mxu0 0.0
      %1164 = vmatprep.subr.mxu0 0.0
      %1165 = vmatpush1.msra.mxu0 0.0
      %1166 = vmatprep.subr.mxu0 0.0
      %1167 = vmatpush1.msra.mxu0 0.0
      %1168 = vmatprep.subr.mxu0 0.0
      %1169 = vmatpush1.msra.mxu0 0.0
      %1170 = vmatprep.mubr.f32.mxu0 0.0
      %1171 = vmatmul.mubr.f32.gmra.mrb[0].mxu0 %v511
      %v1172 = vpop.f32.mrb[0].mxu0
      %v1173 = vadd.f32 0.0, %v1172
      %v1174 = vpop.f32.mrb[0].mxu0
      %1175 = vmatprep.mubr.f32.mxu0 0.0
      %1176 = vmatmul.mubr.f32.gmra.mrb[0].mxu0 %v1104
      %v1177 = vpop.f32.mrb[0].mxu0
      %v1178 = vadd.f32 0.0, %v1177
      %v1179 = vpop.f32.mrb[0].mxu0
      %1180 = vdwg.mxu0
      %v1181 = vadd.f32 %v1085, %v1173
      %v1182 = vadd.f32 %v1086, %v1178
      %v1183 = vld [vmem:[%s2] sm:$0x1]
      %v1185 = vlaneseq
      %v1186 = vshrl.u32 %v1185, 7
      %v1187 = vsub.s32 0, %v1186
      %v1188 = vrot.slane %v1183, %v1187
      %v1190 = vadd.f32 %v1181, %v1188
      %v1191 = vadd.f32 %v1182, %v1188
      %v1192 = vmax.f32 %v1190, 0.0
      %v1193 = vmax.f32 %v1191, 0.0
      %v1194 = vld [vmem:[%s3] sm:$0xff]
      %v1195 = vld [vmem:[%s3 + $0x8] sm:$0xff]
      %v1196 = vld [vmem:[%s3 + $0x10] sm:$0xff]
      %v1197 = vld [vmem:[%s3 + $0x18] sm:$0xff]
      %v1198 = vld [vmem:[%s3 + $0x20] sm:$0xff]
      %v1199 = vld [vmem:[%s3 + $0x28] sm:$0xff]
      %v1200 = vld [vmem:[%s3 + $0x30] sm:$0xff]
      %v1201 = vld [vmem:[%s3 + $0x38] sm:$0xff]
      %v1202 = vld [vmem:[%s3 + $0x40] sm:$0xff]
      %v1203 = vld [vmem:[%s3 + $0x48] sm:$0xff]
      %v1204 = vld [vmem:[%s3 + $0x50] sm:$0xff]
      %v1205 = vld [vmem:[%s3 + $0x58] sm:$0xff]
      %v1206 = vld [vmem:[%s3 + $0x60] sm:$0xff]
      %v1207 = vld [vmem:[%s3 + $0x68] sm:$0xff]
      %v1208 = vld [vmem:[%s3 + $0x70] sm:$0xff]
      %v1209 = vld [vmem:[%s3 + $0x78] sm:$0xff]
      %v1210 = vld [vmem:[%s4] sm:$0x1]
      %v1212 = vlaneseq
      %v1213 = vshrl.u32 %v1212, 7
      %v1214 = vsub.s32 0, %v1213
      %v1215 = vrot.slane %v1210, %v1214
      %1217 = vmatprep.subr.mxu0 0.0
      %1218 = vmatpush1.msra.mxu0 %v1194
      %1219 = vmatprep.subr.mxu0 0.0
      %1220 = vmatpush1.msra.mxu0 %v1195
      %1221 = vmatprep.subr.mxu0 0.0
      %1222 = vmatpush1.msra.mxu0 %v1196
      %1223 = vmatprep.subr.mxu0 0.0
      %1224 = vmatpush1.msra.mxu0 %v1197
      %1225 = vmatprep.subr.mxu0 0.0
      %1226 = vmatpush1.msra.mxu0 %v1198
      %1227 = vmatprep.subr.mxu0 0.0
      %1228 = vmatpush1.msra.mxu0 %v1199
      %1229 = vmatprep.subr.mxu0 0.0
      %1230 = vmatpush1.msra.mxu0 %v1200
      %1231 = vmatprep.subr.mxu0 0.0
      %1232 = vmatpush1.msra.mxu0 %v1201
      %1233 = vmatprep.subr.mxu0 0.0
      %1234 = vmatpush1.msra.mxu0 %v1202
      %1235 = vmatprep.subr.mxu0 0.0
      %1236 = vmatpush1.msra.mxu0 %v1203
      %1237 = vmatprep.subr.mxu0 0.0
      %1238 = vmatpush1.msra.mxu0 %v1204
      %1239 = vmatprep.subr.mxu0 0.0
      %1240 = vmatpush1.msra.mxu0 %v1205
      %1241 = vmatprep.subr.mxu0 0.0
      %1242 = vmatpush1.msra.mxu0 %v1206
      %1243 = vmatprep.subr.mxu0 0.0
      %1244 = vmatpush1.msra.mxu0 %v1207
      %1245 = vmatprep.subr.mxu0 0.0
      %1246 = vmatpush1.msra.mxu0 %v1208
      %1247 = vmatprep.subr.mxu0 0.0
      %1248 = vmatpush1.msra.mxu0 %v1209
      %1249 = vmatprep.subr.mxu0 0.0
      %1250 = vmatpush1.msra.mxu0 0.0
      %1251 = vmatprep.subr.mxu0 0.0
      %1252 = vmatpush1.msra.mxu0 0.0
      %1253 = vmatprep.subr.mxu0 0.0
      %1254 = vmatpush1.msra.mxu0 0.0
      %1255 = vmatprep.subr.mxu0 0.0
      %1256 = vmatpush1.msra.mxu0 0.0
      %1257 = vmatprep.subr.mxu0 0.0
      %1258 = vmatpush1.msra.mxu0 0.0
      %1259 = vmatprep.subr.mxu0 0.0
      %1260 = vmatpush1.msra.mxu0 0.0
      %1261 = vmatprep.subr.mxu0 0.0
      %1262 = vmatpush1.msra.mxu0 0.0
      %1263 = vmatprep.subr.mxu0 0.0
      %1264 = vmatpush1.msra.mxu0 0.0
      %1265 = vmatprep.subr.mxu0 0.0
      %1266 = vmatpush1.msra.mxu0 0.0
      %1267 = vmatprep.subr.mxu0 0.0
      %1268 = vmatpush1.msra.mxu0 0.0
      %1269 = vmatprep.subr.mxu0 0.0
      %1270 = vmatpush1.msra.mxu0 0.0
      %1271 = vmatprep.subr.mxu0 0.0
      %1272 = vmatpush1.msra.mxu0 0.0
      %1273 = vmatprep.subr.mxu0 0.0
      %1274 = vmatpush1.msra.mxu0 0.0
      %1275 = vmatprep.subr.mxu0 0.0
      %1276 = vmatpush1.msra.mxu0 0.0
      %1277 = vmatprep.subr.mxu0 0.0
      %1278 = vmatpush1.msra.mxu0 0.0
      %1279 = vmatprep.subr.mxu0 0.0
      %1280 = vmatpush1.msra.mxu0 0.0
      %1281 = vmatprep.mubr.f32.mxu0 0.0
      %1282 = vmatmul.mubr.f32.gmra.mrb[0].mxu0 %v1192
      %v1283 = vpop.f32.mrb[0].mxu0
      %v1284 = vadd.f32 %v1215, %v1283
      %v1285 = vpop.f32.mrb[0].mxu0
      %1286 = vmatprep.mubr.f32.mxu0 0.0
      %1287 = vmatmul.mubr.f32.gmra.mrb[0].mxu0 %v1193
      %v1288 = vpop.f32.mrb[0].mxu0
      %v1289 = vadd.f32 %v1215, %v1288
      %v1290 = vpop.f32.mrb[0].mxu0
      %1291 = vdwg.mxu0
      %v1294 = vcombine.high %v1284, %v1284
      %v1295 = vcombine.high %v1289, %v1289
      %vm1298 = vcmask 142336
      %1299 = vst.msk [vmem:[%s224] sm:$0xf] %vm1298, %v1284
      %1300 = vst.msk [vmem:[%s224 + $0x4] sm:$0xf] %vm1298, %v1294
      %1301 = vst.msk [vmem:[%s224 + $0x8] sm:$0xf] %vm1298, %v1289
      %1302 = vst.msk [vmem:[%s224 + $0xc] sm:$0xf] %vm1298, %v1295
      %p1303 = scmp.lt.s32.totalorder %s16, 1
      %s1304 = scalar_select %p1303, %s16, 1
      %s1305 = smul.addr %s1304, 4
      %s1306 = smul.addr %s1305, 4
      %s1307 = scalar_lea.vmem %s5, %s1306
      // Predicated region
      $region41: #{faster_rcnn_forward.5} parent=39 // pred_check
        %p1308 = pneg %p144
      $region42: #{faster_rcnn_forward.5} parent=39 // pred_check_branch
        %1310 = sbr.rel (%p1308) target = $region44
      $region43: #{faster_rcnn_forward.5} parent=39 // pred_region
        _
      $region44: #{faster_rcnn_forward.5} parent=39 // pred_fallthru
        _
    $region40: #{faster_rcnn_forward.5} parent=5 // pred_fallthru
      _
    %p1311 = scmp.le.s32.totalorder 2, %s11
    // Predicated region
    $region45: #{faster_rcnn_forward.5} parent=5 // pred_check
      %p1312 = pneg %p1311
    $region46: #{faster_rcnn_forward.5} parent=5 // pred_check_branch
      %1314 = sbr.rel (%p1312) target = $region48
    $region47: #{faster_rcnn_forward.5} parent=5 // pred_region
      %s1315 = ssub.s32 %s11, 2
      // Predicated region
      $region49: #{faster_rcnn_forward.5} parent=47 // pred_check
        %p1316 = pneg %p150
      $region50: #{faster_rcnn_forward.5} parent=47 // pred_check_branch
        %1318 = sbr.rel (%p1316) target = $region52
      $region51: #{faster_rcnn_forward.5} parent=47 // pred_region
        %p1319 = scmp.lt.s32.totalorder %s17, 1
        %s1320 = scalar_select %p1319, %s17, 1
        %s1321 = smul.addr %s1320, 4
        %s1322 = smul.addr %s1321, 4
        %s1323 = scalar_lea.vmem %s5, %s1322
      $region52: #{faster_rcnn_forward.5} parent=47 // pred_fallthru
        _
    $region48: #{faster_rcnn_forward.5} parent=5 // pred_fallthru
      _
  $region6: #{faster_rcnn_forward.5} parent=0 // loop_footer
    %s15 = sadd.s32 1, %s11
  $region7: #{faster_rcnn_forward.5} parent=0 // loop_footer_branch
    %10 = sbr.rel target = $region3
  $region8: #{faster_rcnn_forward.5} parent=0 // loop_exit
    _

// kernel: faster_rcnn_forward.6
$region0: #{faster_rcnn_forward.6}
  #allocation0 [shape = 'u32[]', space=smem, size = 0x4, offset = 0x4, fixed_abs, tag = 'smem constant byte address 0x4 - core index']
  #allocation1 [shape = 'u32[144,128]{1,0:T(1,128)}', space=vmem, size = 0x12000, scoped, tag = 'internal scratch']
  #allocation2 [shape = 's32[1]{0}', space=sflag, size = 0x4, scoped, tag = 'scoped memory for faster_rcnn_forward.6']
  #allocation3 [shape = 'u8[512]{0}', space=smem, size = 0x200, scoped, tag = 'prefetched SMEM operand 0']
  #allocation4 [shape = 'u8[512]{0}', space=smem, size = 0x200, scoped, tag = 'prefetched SMEM operand 1']
  #allocation5 [shape = 'u8[512]{0}', space=smem, size = 0x200, scoped, tag = 'prefetched SMEM operand 2']
  #allocation6 [shape = 'u8[512]{0}', space=smem, size = 0x200, scoped, tag = 'prefetched SMEM operand 3']
  #allocation7 [shape = 'u8[512]{0}', space=smem, size = 0x200, scoped, tag = 'prefetched SMEM operand 4']
  %s0 = inlined_call_operand.vmem [shape: s32[16], index: 0, kind: input, shape index: {}]
  %s1 = inlined_call_operand.vmem [shape: s32[64], index: 1, kind: input, shape index: {}]
  %s2 = inlined_call_operand.vmem [shape: s32[64], index: 2, kind: input, shape index: {}]
  %s3 = inlined_call_operand.vmem [shape: s32[64], index: 3, kind: input, shape index: {}]
  %s4 = inlined_call_operand.vmem [shape: s32[64], index: 4, kind: input, shape index: {}]
  %s5 = inlined_call_operand.vmem [shape: f32[2,4,4,128], index: 5, kind: input, shape index: {}]
  %s6 = inlined_call_operand.vmem [shape: f32[16,16,128], index: 6, kind: output, shape index: {}]
  %s7 = sld [smem:[#allocation0]]
  $region37: #{faster_rcnn_forward.6} parent=0
    _
  %s9 = ssub.s32 1, %s7
  %s10 = scalar_select 0, %s9, %s7
  %s11 = sshll.u32 %s0, 4
  %s12 = int_to_ptr.vmem [resolvable:$true] %s11
  %14 = dma.vmem_to_smem %s12, 16, [#allocation3], [#allocation2]
  %s15 = sshll.u32 %s1, 4
  %s16 = int_to_ptr.vmem [resolvable:$true] %s15
  %18 = dma.vmem_to_smem %s16, 16, [#allocation4], [#allocation2]
  %s19 = sshll.u32 %s2, 4
  %s20 = int_to_ptr.vmem [resolvable:$true] %s19
  %22 = dma.vmem_to_smem %s20, 16, [#allocation5], [#allocation2]
  %s23 = sshll.u32 %s3, 4
  %s24 = int_to_ptr.vmem [resolvable:$true] %s23
  %26 = dma.vmem_to_smem %s24, 16, [#allocation6], [#allocation2]
  %s27 = sshll.u32 %s4, 4
  %s28 = int_to_ptr.vmem [resolvable:$true] %s27
  %30 = dma.vmem_to_smem %s28, 16, [#allocation7], [#allocation2]
  %31 = dma.done [#allocation2], 80
  %32 = sfence
  loop: start=0, step=1, limit=18
  $region2: #{faster_rcnn_forward.6} parent=0 // loop_pre_header
    _
  $region3: #{faster_rcnn_forward.6} parent=0 // loop_header
    %s34 = sphi 0, %s38
    %p35 = scmp.ge.s32.totalorder %s34, 18
    %s46 = sphi 0, %s48
    %s49 = sphi 0, %s46
    %s50 = sphi 0, %s49
    %s66 = sphi 0, %s50
    %s72 = sphi 0, %s74
    %s75 = sphi 0, %s72
    %s76 = sphi 0, %s75
    %s92 = sphi 0, %s76
  $region4: #{faster_rcnn_forward.6} parent=0 // loop_header_branch
    %37 = sbr.rel (%p35) target = $region8
  $region5: #{faster_rcnn_forward.6} parent=0 // loop_body
    %s39 = ssub.s32 %s34, 1
    %s40 = ssub.s32 %s34, 2
    %s41 = sadd.s32 %s34, 1
    %s42 = sld [smem:[#allocation3 + %s34]]
    %s43 = sld [smem:[#allocation3 + %s41]]
    %s44 = ssub.s32 %s42, %s43
    %p45 = scmp.eq.s32.totalorder %s44, 0
    %s47 = sadd.s32 %s46, 1
    %s48 = scalar_select %p45, %s46, %s47
    %p51 = pneg %p45
    %p52 = scmp.eq.s32.totalorder %s34, 15
    %p53 = por %p51, %p52
    %p54 = scmp.ne.s32.totalorder %s46, %s49
    %p55 = scmp.eq.s32.totalorder %s34, 0
    %p56 = por %p54, %p55
    %p57 = scmp.ne.s32.totalorder %s46, %s49
    %p58 = scmp.eq.s32.totalorder %s39, 15
    %p59 = por %p57, %p58
    %p60 = scmp.ne.s32.totalorder %s49, %s50
    %p61 = scmp.eq.s32.totalorder %s39, 0
    %p62 = por %p60, %p61
    %p63 = scmp.ne.s32.totalorder %s49, %s50
    %p64 = scmp.eq.s32.totalorder %s40, 15
    %p65 = por %p63, %p64
    %p67 = scmp.ne.s32.totalorder %s50, %s66
    %p68 = scmp.eq.s32.totalorder %s40, 0
    %p69 = por %p67, %p68
    %s70 = ssub.s32 %s34, %s41
    %p71 = scmp.eq.s32.totalorder %s70, 0
    %s73 = sadd.s32 %s72, 1
    %s74 = scalar_select %p71, %s72, %s73
    %p77 = pneg %p71
    %p78 = scmp.eq.s32.totalorder %s34, 15
    %p79 = por %p77, %p78
    %p80 = scmp.ne.s32.totalorder %s72, %s75
    %p81 = scmp.eq.s32.totalorder %s34, 0
    %p82 = por %p80, %p81
    %p83 = scmp.ne.s32.totalorder %s72, %s75
    %p84 = scmp.eq.s32.totalorder %s39, 15
    %p85 = por %p83, %p84
    %p86 = scmp.ne.s32.totalorder %s75, %s76
    %p87 = scmp.eq.s32.totalorder %s39, 0
    %p88 = por %p86, %p87
    %p89 = scmp.ne.s32.totalorder %s75, %s76
    %p90 = scmp.eq.s32.totalorder %s40, 15
    %p91 = por %p89, %p90
    %p93 = scmp.ne.s32.totalorder %s76, %s92
    %p94 = scmp.eq.s32.totalorder %s40, 0
    %p95 = por %p93, %p94
    %p96 = scmp.le.s32.totalorder 1, %s34
    %p97 = scmp.lt.s32.totalorder %s34, 17
    %p98 = pnand %p96, %p97
    %p99 = pneg %p98
    // Predicated region
    $region9: #{faster_rcnn_forward.6} parent=5 // pred_check
      _
    $region10: #{faster_rcnn_forward.6} parent=5 // pred_check_branch
      %101 = sbr.rel (%p98) target = $region12
    $region11: #{faster_rcnn_forward.6} parent=5 // pred_region
      %s102 = ssub.s32 %s34, 1
    $region12: #{faster_rcnn_forward.6} parent=5 // pred_fallthru
      _
    %p103 = scmp.lt.s32.totalorder %s34, 16
    // Predicated region
    $region13: #{faster_rcnn_forward.6} parent=5 // pred_check
      %p104 = pneg %p103
    $region14: #{faster_rcnn_forward.6} parent=5 // pred_check_branch
      %106 = sbr.rel (%p104) target = $region16
    $region15: #{faster_rcnn_forward.6} parent=5 // pred_region
      // Predicated region
      $region17: #{faster_rcnn_forward.6} parent=15 // pred_check
        %p107 = pneg %p56
      $region18: #{faster_rcnn_forward.6} parent=15 // pred_check_branch
        %109 = sbr.rel (%p107) target = $region20
      $region19: #{faster_rcnn_forward.6} parent=15 // pred_region
        %s110 = sld [smem:[#allocation3 + %s34]]
        %p111 = scmp.lt.s32.totalorder %s110, 1
        %s112 = scalar_select %p111, %s110, 1
        %s113 = smul.addr %s112, 4
        %s114 = smul.addr %s113, 4
        %s115 = scalar_lea.vmem %s5, %s114
        %s116 = sld [smem:[#allocation3 + %s34]]
      $region20: #{faster_rcnn_forward.6} parent=15 // pred_fallthru
        _
    $region16: #{faster_rcnn_forward.6} parent=5 // pred_fallthru
      _
    %p117 = scmp.le.s32.totalorder 1, %s34
    %p118 = scmp.lt.s32.totalorder %s34, 17
    %p119 = pnand %p117, %p118
    %p120 = pneg %p119
    // Predicated region
    $region21: #{faster_rcnn_forward.6} parent=5 // pred_check
      _
    $region22: #{faster_rcnn_forward.6} parent=5 // pred_check_branch
      %122 = sbr.rel (%p119) target = $region24
    $region23: #{faster_rcnn_forward.6} parent=5 // pred_region
      %s123 = ssub.s32 %s34, 1
      %s124 = sld [smem:[#allocation3 + %s39]]
      %p125 = scmp.lt.s32.totalorder %s124, 1
      %s126 = scalar_select %p125, %s124, 1
      %s127 = smul.addr %s126, 4
      %s128 = smul.addr %s127, 4
      %s129 = scalar_lea.vmem %s5, %s128
      %p130 = pneg %p62
      %p131 = pneg %p59
      %p132 = pneg %p88
      %p133 = pneg %p85
      %p134 = scmp.lt.s32.totalorder %s39, 15
      %s135 = scalar_select %p134, %s39, 15
      %s136 = smul.addr %s135, 2
      %s137 = smul.addr %s136, 8
      %s138 = scalar_lea.vmem %s6, %s137
      %s139 = sld [smem:[#allocation3 + %s39]]
      %p140 = scmp.lt.s32.totalorder %s139, 1
      %s141 = scalar_select %p140, %s139, 1
      %s142 = smul.addr %s141, 4
      %s143 = smul.addr %s142, 4
      %s144 = scalar_lea.vmem %s5, %s143
      %s145 = sld [smem:[#allocation3 + %s39]]
      %p146 = scmp.lt.s32.totalorder %s39, 15
      %s147 = scalar_select %p146, %s39, 15
      %s148 = smul.addr %s147, 2
      %s149 = smul.addr %s148, 8
      %s150 = scalar_lea.vmem %s6, %s149
      %v151 = vld [vmem:[%s144] sm:$0xf]
      %v152 = vld [vmem:[%s144 + $0x4] sm:$0xf]
      %v153 = vld [vmem:[%s144 + $0x8] sm:$0xf]
      %v154 = vld [vmem:[%s144 + $0xc] sm:$0xf]
      %v155 = vlaneseq
      %v156 = vshrl.u32 %v155, 7
      %s157 = smul.u32 %s39, 4
      %s158 = sld [smem:[#allocation6 + %s157]]
      %s159 = sld [smem:[#allocation7 + %s157]]
      %v160 = vstv %s158
      %vm161 = vcmp.ge.s32.totalorder %v156, %v160
      %v162 = vstv %s159
      %vm163 = vcmp.lt.s32.totalorder %v156, %v162
      %vm164 = vmand %vm161, %vm163
      %v165 = vsel %vm164, 1, 0
      %vm166 = vcmp.eq.s32.totalorder %v165, 1
      %v167 = vsel %vm166, %v151, -1e+30
      %v168 = vsel %vm166, %v152, -1e+30
      %v169 = vsel %vm166, %v153, -1e+30
      %v170 = vsel %vm166, %v154, -1e+30
      %vm171 = vcmask 1043456
      %v172 = vsel %vm171, %v167, -inf
      %v173 = vrot.slane %v172, 4
      %v174 = vmax.f32 %v172, %v173
      %v175 = vrot.slane %v174, 2
      %v176 = vmax.f32 %v174, %v175
      %v177 = vrot.slane %v176, 1
      %v178 = vmax.f32 %v176, %v177
      %v179 = vsel %vm171, %v168, -inf
      %v180 = vrot.slane %v179, 4
      %v181 = vmax.f32 %v179, %v180
      %v182 = vrot.slane %v181, 2
      %v183 = vmax.f32 %v181, %v182
      %v184 = vrot.slane %v183, 1
      %v185 = vmax.f32 %v183, %v184
      %v186 = vsel %vm171, %v169, -inf
      %v187 = vrot.slane %v186, 4
      %v188 = vmax.f32 %v186, %v187
      %v189 = vrot.slane %v188, 2
      %v190 = vmax.f32 %v188, %v189
      %v191 = vrot.slane %v190, 1
      %v192 = vmax.f32 %v190, %v191
      %v193 = vsel %vm171, %v170, -inf
      %v194 = vrot.slane %v193, 4
      %v195 = vmax.f32 %v193, %v194
      %v196 = vrot.slane %v195, 2
      %v197 = vmax.f32 %v195, %v196
      %v198 = vrot.slane %v197, 1
      %v199 = vmax.f32 %v197, %v198
      %p200 = scmp.gt.s32.totalorder %s159, %s158
      %s201 = sadd.s32 %s157, 1
      %s202 = sld [smem:[#allocation6 + %s201]]
      %s203 = sld [smem:[#allocation7 + %s201]]
      %v204 = vstv %s202
      %vm205 = vcmp.ge.s32.totalorder %v156, %v204
      %v206 = vstv %s203
      %vm207 = vcmp.lt.s32.totalorder %v156, %v206
      %vm208 = vmand %vm205, %vm207
      %v209 = vsel %vm208, 1, 0
      %vm210 = vcmp.eq.s32.totalorder %v209, 1
      %v211 = vsel %vm210, %v151, -1e+30
      %v212 = vsel %vm210, %v152, -1e+30
      %v213 = vsel %vm210, %v153, -1e+30
      %v214 = vsel %vm210, %v154, -1e+30
      %v215 = vsel %vm171, %v211, -inf
      %v216 = vrot.slane %v215, 4
      %v217 = vmax.f32 %v215, %v216
      %v218 = vrot.slane %v217, 2
      %v219 = vmax.f32 %v217, %v218
      %v220 = vrot.slane %v219, 1
      %v221 = vmax.f32 %v219, %v220
      %v222 = vsel %vm171, %v212, -inf
      %v223 = vrot.slane %v222, 4
      %v224 = vmax.f32 %v222, %v223
      %v225 = vrot.slane %v224, 2
      %v226 = vmax.f32 %v224, %v225
      %v227 = vrot.slane %v226, 1
      %v228 = vmax.f32 %v226, %v227
      %v229 = vsel %vm171, %v213, -inf
      %v230 = vrot.slane %v229, 4
      %v231 = vmax.f32 %v229, %v230
      %v232 = vrot.slane %v231, 2
      %v233 = vmax.f32 %v231, %v232
      %v234 = vrot.slane %v233, 1
      %v235 = vmax.f32 %v233, %v234
      %v236 = vsel %vm171, %v214, -inf
      %v237 = vrot.slane %v236, 4
      %v238 = vmax.f32 %v236, %v237
      %v239 = vrot.slane %v238, 2
      %v240 = vmax.f32 %v238, %v239
      %v241 = vrot.slane %v240, 1
      %v242 = vmax.f32 %v240, %v241
      %p243 = scmp.gt.s32.totalorder %s203, %s202
      %s244 = sadd.s32 %s157, 2
      %s245 = sld [smem:[#allocation6 + %s244]]
      %s246 = sld [smem:[#allocation7 + %s244]]
      %v247 = vstv %s245
      %vm248 = vcmp.ge.s32.totalorder %v156, %v247
      %v249 = vstv %s246
      %vm250 = vcmp.lt.s32.totalorder %v156, %v249
      %vm251 = vmand %vm248, %vm250
      %v252 = vsel %vm251, 1, 0
      %vm253 = vcmp.eq.s32.totalorder %v252, 1
      %v254 = vsel %vm253, %v151, -1e+30
      %v255 = vsel %vm253, %v152, -1e+30
      %v256 = vsel %vm253, %v153, -1e+30
      %v257 = vsel %vm253, %v154, -1e+30
      %v258 = vsel %vm171, %v254, -inf
      %v259 = vrot.slane %v258, 4
      %v260 = vmax.f32 %v258, %v259
      %v261 = vrot.slane %v260, 2
      %v262 = vmax.f32 %v260, %v261
      %v263 = vrot.slane %v262, 1
      %v264 = vmax.f32 %v262, %v263
      %v265 = vsel %vm171, %v255, -inf
      %v266 = vrot.slane %v265, 4
      %v267 = vmax.f32 %v265, %v266
      %v268 = vrot.slane %v267, 2
      %v269 = vmax.f32 %v267, %v268
      %v270 = vrot.slane %v269, 1
      %v271 = vmax.f32 %v269, %v270
      %v272 = vsel %vm171, %v256, -inf
      %v273 = vrot.slane %v272, 4
      %v274 = vmax.f32 %v272, %v273
      %v275 = vrot.slane %v274, 2
      %v276 = vmax.f32 %v274, %v275
      %v277 = vrot.slane %v276, 1
      %v278 = vmax.f32 %v276, %v277
      %v279 = vsel %vm171, %v257, -inf
      %v280 = vrot.slane %v279, 4
      %v281 = vmax.f32 %v279, %v280
      %v282 = vrot.slane %v281, 2
      %v283 = vmax.f32 %v281, %v282
      %v284 = vrot.slane %v283, 1
      %v285 = vmax.f32 %v283, %v284
      %p286 = scmp.gt.s32.totalorder %s246, %s245
      %s287 = sadd.s32 %s157, 3
      %s288 = sld [smem:[#allocation6 + %s287]]
      %s289 = sld [smem:[#allocation7 + %s287]]
      %v290 = vstv %s288
      %vm291 = vcmp.ge.s32.totalorder %v156, %v290
      %v292 = vstv %s289
      %vm293 = vcmp.lt.s32.totalorder %v156, %v292
      %vm294 = vmand %vm291, %vm293
      %v295 = vsel %vm294, 1, 0
      %vm296 = vcmp.eq.s32.totalorder %v295, 1
      %v297 = vsel %vm296, %v151, -1e+30
      %v298 = vsel %vm296, %v152, -1e+30
      %v299 = vsel %vm296, %v153, -1e+30
      %v300 = vsel %vm296, %v154, -1e+30
      %v301 = vsel %vm171, %v297, -inf
      %v302 = vrot.slane %v301, 4
      %v303 = vmax.f32 %v301, %v302
      %v304 = vrot.slane %v303, 2
      %v305 = vmax.f32 %v303, %v304
      %v306 = vrot.slane %v305, 1
      %v307 = vmax.f32 %v305, %v306
      %v308 = vsel %vm171, %v298, -inf
      %v309 = vrot.slane %v308, 4
      %v310 = vmax.f32 %v308, %v309
      %v311 = vrot.slane %v310, 2
      %v312 = vmax.f32 %v310, %v311
      %v313 = vrot.slane %v312, 1
      %v314 = vmax.f32 %v312, %v313
      %v315 = vsel %vm171, %v299, -inf
      %v316 = vrot.slane %v315, 4
      %v317 = vmax.f32 %v315, %v316
      %v318 = vrot.slane %v317, 2
      %v319 = vmax.f32 %v317, %v318
      %v320 = vrot.slane %v319, 1
      %v321 = vmax.f32 %v319, %v320
      %v322 = vsel %vm171, %v300, -inf
      %v323 = vrot.slane %v322, 4
      %v324 = vmax.f32 %v322, %v323
      %v325 = vrot.slane %v324, 2
      %v326 = vmax.f32 %v324, %v325
      %v327 = vrot.slane %v326, 1
      %v328 = vmax.f32 %v326, %v327
      %p329 = scmp.gt.s32.totalorder %s289, %s288
      %s330 = sld [smem:[#allocation4 + %s157]]
      %s331 = sld [smem:[#allocation5 + %s157]]
      %v332 = vstv %s330
      %vm333 = vcmp.ge.s32.totalorder %v156, %v332
      %v334 = vstv %s331
      %vm335 = vcmp.lt.s32.totalorder %v156, %v334
      %vm336 = vmand %vm333, %vm335
      %p337 = scmp.gt.s32.totalorder %s331, %s330
      %v338 = vsel %vm336, 1, 0
      %vm339 = vcmp.eq.s32.totalorder %v338, 1
      %vm344 = vcmask 1041409
      %v345 = vsel %vm344, %v185, %v178
      %vm346 = vcmask 1042434
      %v347 = vsel %vm346, %v192, %v345
      %vm348 = vcmask 1043459
      %v349 = vsel %vm348, %v199, %v347
      %v351 = vsel %vm339, %v349, -1e+30
      %v352 = vsel %vm171, %v351, -inf
      %v353 = vrot.slane %v352, 4
      %v354 = vmax.f32 %v352, %v353
      %v355 = vrot.slane %v354, 2
      %v356 = vmax.f32 %v354, %v355
      %v357 = vrot.slane %v356, 1
      %v358 = vmax.f32 %v356, %v357
      %p359 = pnand %p337, %p200
      %p360 = pneg %p359
      %s361 = scalar_select %p360, 1, 0
      %v362 = vstv %s361
      %vm363 = vcmp.eq.s32.totalorder %v362, 1
      %v364 = vsel %vm363, %v358, 0.0
      %v369 = vsel %vm344, %v228, %v221
      %v370 = vsel %vm346, %v235, %v369
      %v371 = vsel %vm348, %v242, %v370
      %v373 = vsel %vm339, %v371, -1e+30
      %v374 = vsel %vm171, %v373, -inf
      %v375 = vrot.slane %v374, 4
      %v376 = vmax.f32 %v374, %v375
      %v377 = vrot.slane %v376, 2
      %v378 = vmax.f32 %v376, %v377
      %v379 = vrot.slane %v378, 1
      %v380 = vmax.f32 %v378, %v379
      %p381 = pnand %p337, %p243
      %p382 = pneg %p381
      %s383 = scalar_select %p382, 1, 0
      %v384 = vstv %s383
      %vm385 = vcmp.eq.s32.totalorder %v384, 1
      %v386 = vsel %vm385, %v380, 0.0
      %v391 = vsel %vm344, %v271, %v264
      %v392 = vsel %vm346, %v278, %v391
      %v393 = vsel %vm348, %v285, %v392
      %v395 = vsel %vm339, %v393, -1e+30
      %v396 = vsel %vm171, %v395, -inf
      %v397 = vrot.slane %v396, 4
      %v398 = vmax.f32 %v396, %v397
      %v399 = vrot.slane %v398, 2
      %v400 = vmax.f32 %v398, %v399
      %v401 = vrot.slane %v400, 1
      %v402 = vmax.f32 %v400, %v401
      %p403 = pnand %p337, %p286
      %p404 = pneg %p403
      %s405 = scalar_select %p404, 1, 0
      %v406 = vstv %s405
      %vm407 = vcmp.eq.s32.totalorder %v406, 1
      %v408 = vsel %vm407, %v402, 0.0
      %v413 = vsel %vm344, %v314, %v307
      %v414 = vsel %vm346, %v321, %v413
      %v415 = vsel %vm348, %v328, %v414
      %v417 = vsel %vm339, %v415, -1e+30
      %v418 = vsel %vm171, %v417, -inf
      %v419 = vrot.slane %v418, 4
      %v420 = vmax.f32 %v418, %v419
      %v421 = vrot.slane %v420, 2
      %v422 = vmax.f32 %v420, %v421
      %v423 = vrot.slane %v422, 1
      %v424 = vmax.f32 %v422, %v423
      %p425 = pnand %p337, %p329
      %p426 = pneg %p425
      %s427 = scalar_select %p426, 1, 0
      %v428 = vstv %s427
      %vm429 = vcmp.eq.s32.totalorder %v428, 1
      %v430 = vsel %vm429, %v424, 0.0
      %s431 = sld [smem:[#allocation4 + %s201]]
      %s432 = sld [smem:[#allocation5 + %s201]]
      %v433 = vstv %s431
      %vm434 = vcmp.ge.s32.totalorder %v156, %v433
      %v435 = vstv %s432
      %vm436 = vcmp.lt.s32.totalorder %v156, %v435
      %vm437 = vmand %vm434, %vm436
      %p438 = scmp.gt.s32.totalorder %s432, %s431
      %v439 = vsel %vm437, 1, 0
      %vm440 = vcmp.eq.s32.totalorder %v439, 1
      %v441 = vsel %vm440, %v349, -1e+30
      %v442 = vsel %vm171, %v441, -inf
      %v443 = vrot.slane %v442, 4
      %v444 = vmax.f32 %v442, %v443
      %v445 = vrot.slane %v444, 2
      %v446 = vmax.f32 %v444, %v445
      %v447 = vrot.slane %v446, 1
      %v448 = vmax.f32 %v446, %v447
      %p449 = pnand %p438, %p200
      %p450 = pneg %p449
      %s451 = scalar_select %p450, 1, 0
      %v452 = vstv %s451
      %vm453 = vcmp.eq.s32.totalorder %v452, 1
      %v454 = vsel %vm453, %v448, 0.0
      %v455 = vsel %vm440, %v371, -1e+30
      %v456 = vsel %vm171, %v455, -inf
      %v457 = vrot.slane %v456, 4
      %v458 = vmax.f32 %v456, %v457
      %v459 = vrot.slane %v458, 2
      %v460 = vmax.f32 %v458, %v459
      %v461 = vrot.slane %v460, 1
      %v462 = vmax.f32 %v460, %v461
      %p463 = pnand %p438, %p243
      %p464 = pneg %p463
      %s465 = scalar_select %p464, 1, 0
      %v466 = vstv %s465
      %vm467 = vcmp.eq.s32.totalorder %v466, 1
      %v468 = vsel %vm467, %v462, 0.0
      %v469 = vsel %vm440, %v393, -1e+30
      %v470 = vsel %vm171, %v469, -inf
      %v471 = vrot.slane %v470, 4
      %v472 = vmax.f32 %v470, %v471
      %v473 = vrot.slane %v472, 2
      %v474 = vmax.f32 %v472, %v473
      %v475 = vrot.slane %v474, 1
      %v476 = vmax.f32 %v474, %v475
      %p477 = pnand %p438, %p286
      %p478 = pneg %p477
      %s479 = scalar_select %p478, 1, 0
      %v480 = vstv %s479
      %vm481 = vcmp.eq.s32.totalorder %v480, 1
      %v482 = vsel %vm481, %v476, 0.0
      %v483 = vsel %vm440, %v415, -1e+30
      %v484 = vsel %vm171, %v483, -inf
      %v485 = vrot.slane %v484, 4
      %v486 = vmax.f32 %v484, %v485
      %v487 = vrot.slane %v486, 2
      %v488 = vmax.f32 %v486, %v487
      %v489 = vrot.slane %v488, 1
      %v490 = vmax.f32 %v488, %v489
      %p491 = pnand %p438, %p329
      %p492 = pneg %p491
      %s493 = scalar_select %p492, 1, 0
      %v494 = vstv %s493
      %vm495 = vcmp.eq.s32.totalorder %v494, 1
      %v496 = vsel %vm495, %v490, 0.0
      %s497 = sld [smem:[#allocation4 + %s244]]
      %s498 = sld [smem:[#allocation5 + %s244]]
      %v499 = vstv %s497
      %vm500 = vcmp.ge.s32.totalorder %v156, %v499
      %v501 = vstv %s498
      %vm502 = vcmp.lt.s32.totalorder %v156, %v501
      %vm503 = vmand %vm500, %vm502
      %p504 = scmp.gt.s32.totalorder %s498, %s497
      %v505 = vsel %vm503, 1, 0
      %vm506 = vcmp.eq.s32.totalorder %v505, 1
      %v507 = vsel %vm506, %v349, -1e+30
      %v508 = vsel %vm171, %v507, -inf
      %v509 = vrot.slane %v508, 4
      %v510 = vmax.f32 %v508, %v509
      %v511 = vrot.slane %v510, 2
      %v512 = vmax.f32 %v510, %v511
      %v513 = vrot.slane %v512, 1
      %v514 = vmax.f32 %v512, %v513
      %p515 = pnand %p504, %p200
      %p516 = pneg %p515
      %s517 = scalar_select %p516, 1, 0
      %v518 = vstv %s517
      %vm519 = vcmp.eq.s32.totalorder %v518, 1
      %v520 = vsel %vm519, %v514, 0.0
      %v521 = vsel %vm506, %v371, -1e+30
      %v522 = vsel %vm171, %v521, -inf
      %v523 = vrot.slane %v522, 4
      %v524 = vmax.f32 %v522, %v523
      %v525 = vrot.slane %v524, 2
      %v526 = vmax.f32 %v524, %v525
      %v527 = vrot.slane %v526, 1
      %v528 = vmax.f32 %v526, %v527
      %p529 = pnand %p504, %p243
      %p530 = pneg %p529
      %s531 = scalar_select %p530, 1, 0
      %v532 = vstv %s531
      %vm533 = vcmp.eq.s32.totalorder %v532, 1
      %v534 = vsel %vm533, %v528, 0.0
      %v535 = vsel %vm506, %v393, -1e+30
      %v536 = vsel %vm171, %v535, -inf
      %v537 = vrot.slane %v536, 4
      %v538 = vmax.f32 %v536, %v537
      %v539 = vrot.slane %v538, 2
      %v540 = vmax.f32 %v538, %v539
      %v541 = vrot.slane %v540, 1
      %v542 = vmax.f32 %v540, %v541
      %p543 = pnand %p504, %p286
      %p544 = pneg %p543
      %s545 = scalar_select %p544, 1, 0
      %v546 = vstv %s545
      %vm547 = vcmp.eq.s32.totalorder %v546, 1
      %v548 = vsel %vm547, %v542, 0.0
      %v549 = vsel %vm506, %v415, -1e+30
      %v550 = vsel %vm171, %v549, -inf
      %v551 = vrot.slane %v550, 4
      %v552 = vmax.f32 %v550, %v551
      %v553 = vrot.slane %v552, 2
      %v554 = vmax.f32 %v552, %v553
      %v555 = vrot.slane %v554, 1
      %v556 = vmax.f32 %v554, %v555
      %p557 = pnand %p504, %p329
      %p558 = pneg %p557
      %s559 = scalar_select %p558, 1, 0
      %v560 = vstv %s559
      %vm561 = vcmp.eq.s32.totalorder %v560, 1
      %v562 = vsel %vm561, %v556, 0.0
      %s563 = sld [smem:[#allocation4 + %s287]]
      %s564 = sld [smem:[#allocation5 + %s287]]
      %v565 = vstv %s563
      %vm566 = vcmp.ge.s32.totalorder %v156, %v565
      %v567 = vstv %s564
      %vm568 = vcmp.lt.s32.totalorder %v156, %v567
      %vm569 = vmand %vm566, %vm568
      %p570 = scmp.gt.s32.totalorder %s564, %s563
      %v571 = vsel %vm569, 1, 0
      %vm572 = vcmp.eq.s32.totalorder %v571, 1
      %v573 = vsel %vm572, %v349, -1e+30
      %v574 = vsel %vm171, %v573, -inf
      %v575 = vrot.slane %v574, 4
      %v576 = vmax.f32 %v574, %v575
      %v577 = vrot.slane %v576, 2
      %v578 = vmax.f32 %v576, %v577
      %v579 = vrot.slane %v578, 1
      %v580 = vmax.f32 %v578, %v579
      %p581 = pnand %p570, %p200
      %p582 = pneg %p581
      %s583 = scalar_select %p582, 1, 0
      %v584 = vstv %s583
      %vm585 = vcmp.eq.s32.totalorder %v584, 1
      %v586 = vsel %vm585, %v580, 0.0
      %v587 = vsel %vm572, %v371, -1e+30
      %v588 = vsel %vm171, %v587, -inf
      %v589 = vrot.slane %v588, 4
      %v590 = vmax.f32 %v588, %v589
      %v591 = vrot.slane %v590, 2
      %v592 = vmax.f32 %v590, %v591
      %v593 = vrot.slane %v592, 1
      %v594 = vmax.f32 %v592, %v593
      %p595 = pnand %p570, %p243
      %p596 = pneg %p595
      %s597 = scalar_select %p596, 1, 0
      %v598 = vstv %s597
      %vm599 = vcmp.eq.s32.totalorder %v598, 1
      %v600 = vsel %vm599, %v594, 0.0
      %v601 = vsel %vm572, %v393, -1e+30
      %v602 = vsel %vm171, %v601, -inf
      %v603 = vrot.slane %v602, 4
      %v604 = vmax.f32 %v602, %v603
      %v605 = vrot.slane %v604, 2
      %v606 = vmax.f32 %v604, %v605
      %v607 = vrot.slane %v606, 1
      %v608 = vmax.f32 %v606, %v607
      %p609 = pnand %p570, %p286
      %p610 = pneg %p609
      %s611 = scalar_select %p610, 1, 0
      %v612 = vstv %s611
      %vm613 = vcmp.eq.s32.totalorder %v612, 1
      %v614 = vsel %vm613, %v608, 0.0
      %v615 = vsel %vm572, %v415, -1e+30
      %v616 = vsel %vm171, %v615, -inf
      %v617 = vrot.slane %v616, 4
      %v618 = vmax.f32 %v616, %v617
      %v619 = vrot.slane %v618, 2
      %v620 = vmax.f32 %v618, %v619
      %v621 = vrot.slane %v620, 1
      %v622 = vmax.f32 %v620, %v621
      %p623 = pnand %p570, %p329
      %p624 = pneg %p623
      %s625 = scalar_select %p624, 1, 0
      %v626 = vstv %s625
      %vm627 = vcmp.eq.s32.totalorder %v626, 1
      %v628 = vsel %vm627, %v622, 0.0
      %vm629 = vcmask 1040384
      %v630 = vsel %vm629, %v364, %v386
      %vm631 = vcmask 1041408
      %v632 = vsel %vm631, %v630, %v408
      %vm633 = vcmask 1042432
      %v634 = vsel %vm633, %v632, %v430
      %v635 = vsel %vm171, %v634, %v454
      %vm636 = vcmask 1044480
      %v637 = vsel %vm636, %v635, %v468
      %vm638 = vcmask 1045504
      %v639 = vsel %vm638, %v637, %v482
      %vm640 = vcmask 1046528
      %v641 = vsel %vm640, %v639, %v496
      %v642 = vsel %vm629, %v520, %v534
      %v643 = vsel %vm631, %v642, %v548
      %v644 = vsel %vm633, %v643, %v562
      %v645 = vsel %vm171, %v644, %v586
      %v646 = vsel %vm636, %v645, %v600
      %v647 = vsel %vm638, %v646, %v614
      %v648 = vsel %vm640, %v647, %v628
      %649 = vst [vmem:[%s150] sm:$0xff] %v641
      %650 = vst [vmem:[%s150 + $0x8] sm:$0xff] %v648
      %p651 = scmp.lt.s32.totalorder %s39, 15
      %s652 = scalar_select %p651, %s39, 15
      %s653 = smul.addr %s652, 2
      %s654 = smul.addr %s653, 8
      %s655 = scalar_lea.vmem %s6, %s654
      // Predicated region
      $region25: #{faster_rcnn_forward.6} parent=23 // pred_check
        %p656 = pneg %p85
      $region26: #{faster_rcnn_forward.6} parent=23 // pred_check_branch
        %658 = sbr.rel (%p656) target = $region28
      $region27: #{faster_rcnn_forward.6} parent=23 // pred_region
        _
      $region28: #{faster_rcnn_forward.6} parent=23 // pred_fallthru
        _
    $region24: #{faster_rcnn_forward.6} parent=5 // pred_fallthru
      _
    %p659 = scmp.le.s32.totalorder 2, %s34
    // Predicated region
    $region29: #{faster_rcnn_forward.6} parent=5 // pred_check
      %p660 = pneg %p659
    $region30: #{faster_rcnn_forward.6} parent=5 // pred_check_branch
      %662 = sbr.rel (%p660) target = $region32
    $region31: #{faster_rcnn_forward.6} parent=5 // pred_region
      %s663 = ssub.s32 %s34, 2
      // Predicated region
      $region33: #{faster_rcnn_forward.6} parent=31 // pred_check
        %p664 = pneg %p91
      $region34: #{faster_rcnn_forward.6} parent=31 // pred_check_branch
        %666 = sbr.rel (%p664) target = $region36
      $region35: #{faster_rcnn_forward.6} parent=31 // pred_region
        %p667 = scmp.lt.s32.totalorder %s40, 15
        %s668 = scalar_select %p667, %s40, 15
        %s669 = smul.addr %s668, 2
        %s670 = smul.addr %s669, 8
        %s671 = scalar_lea.vmem %s6, %s670
      $region36: #{faster_rcnn_forward.6} parent=31 // pred_fallthru
        _
    $region32: #{faster_rcnn_forward.6} parent=5 // pred_fallthru
      _
  $region6: #{faster_rcnn_forward.6} parent=0 // loop_footer
    %s38 = sadd.s32 1, %s34
  $region7: #{faster_rcnn_forward.6} parent=0 // loop_footer_branch
    %33 = sbr.rel target = $region3
  $region8: #{faster_rcnn_forward.6} parent=0 // loop_exit
    _

// kernel: faster_rcnn_forward.7
$region0: #{faster_rcnn_forward.7}
  #allocation0 [shape = 'u32[]', space=smem, size = 0x4, offset = 0x4, fixed_abs, tag = 'smem constant byte address 0x4 - core index']
  #allocation1 [shape = 'u32[144,128]{1,0:T(1,128)}', space=vmem, size = 0x12000, scoped, tag = 'internal scratch']
  %s0 = inlined_call_operand.vmem [shape: f32[16,2048], index: 0, kind: input, shape index: {}]
  %s1 = inlined_call_operand.vmem [shape: f32[2048,128], index: 1, kind: input, shape index: {}]
  %s2 = inlined_call_operand.vmem [shape: f32[1,128], index: 2, kind: input, shape index: {}]
  %s3 = inlined_call_operand.vmem [shape: f32[128,128], index: 3, kind: input, shape index: {}]
  %s4 = inlined_call_operand.vmem [shape: f32[1,128], index: 4, kind: input, shape index: {}]
  %s5 = inlined_call_operand.vmem [shape: f32[128,25], index: 5, kind: input, shape index: {}]
  %s6 = inlined_call_operand.vmem [shape: f32[1,25], index: 6, kind: input, shape index: {}]
  %s7 = inlined_call_operand.vmem [shape: f32[16,5], index: 7, kind: output, shape index: {0}]
  %s8 = inlined_call_operand.hbm [shape: f32[16,20], index: 8, kind: output, shape index: {1}]
  %9 = xla_tuple %s7, %s8
  %s10 = sld [smem:[#allocation0]]
  $region46: #{faster_rcnn_forward.7} parent=0
    _
  %s12 = ssub.s32 1, %s10
  %s13 = scalar_select 0, %s12, %s10
  $region1: #{faster_rcnn_forward.7} parent=0
    #allocation2 [shape = 'u8[8192]{0}', space=vmem, size = 0x2000, scoped, tag = 'output window, operand 1, single buffered']
    #allocation3 [shape = 's32[1]{0}', space=sflag, size = 0x4, scoped, tag = 'scoped memory for faster_rcnn_forward.7']
    %14 = vsyncpa [#allocation3], 0
    // Predicated region
    $region2: #{faster_rcnn_forward.7} parent=1 // pred_check
      _
    $region3: #{faster_rcnn_forward.7} parent=1 // pred_check_branch
      %16 = sbr.rel (0) target = $region5
    $region4: #{faster_rcnn_forward.7} parent=1 // pred_region
      _
    $region5: #{faster_rcnn_forward.7} parent=1 // pred_fallthru
      _
    // Predicated region
    $region6: #{faster_rcnn_forward.7} parent=1 // pred_check
      _
    $region7: #{faster_rcnn_forward.7} parent=1 // pred_check_branch
      %18 = sbr.rel (0) target = $region9
    $region8: #{faster_rcnn_forward.7} parent=1 // pred_region
      _
    $region9: #{faster_rcnn_forward.7} parent=1 // pred_fallthru
      _
    // Predicated region
    $region10: #{faster_rcnn_forward.7} parent=1 // pred_check
      _
    $region11: #{faster_rcnn_forward.7} parent=1 // pred_check_branch
      %20 = sbr.rel (0) target = $region13
    $region12: #{faster_rcnn_forward.7} parent=1 // pred_region
      _
    $region13: #{faster_rcnn_forward.7} parent=1 // pred_fallthru
      _
    // Predicated region
    $region14: #{faster_rcnn_forward.7} parent=1 // pred_check
      _
    $region15: #{faster_rcnn_forward.7} parent=1 // pred_check_branch
      %22 = sbr.rel (0) target = $region17
    $region16: #{faster_rcnn_forward.7} parent=1 // pred_region
      _
    $region17: #{faster_rcnn_forward.7} parent=1 // pred_fallthru
      _
    // Predicated region
    $region18: #{faster_rcnn_forward.7} parent=1 // pred_check
      _
    $region19: #{faster_rcnn_forward.7} parent=1 // pred_check_branch
      %24 = sbr.rel (0) target = $region21
    $region20: #{faster_rcnn_forward.7} parent=1 // pred_region
      _
    $region21: #{faster_rcnn_forward.7} parent=1 // pred_fallthru
      _
    // Predicated region
    $region22: #{faster_rcnn_forward.7} parent=1 // pred_check
      _
    $region23: #{faster_rcnn_forward.7} parent=1 // pred_check_branch
      %26 = sbr.rel (0) target = $region25
    $region24: #{faster_rcnn_forward.7} parent=1 // pred_region
      _
    $region25: #{faster_rcnn_forward.7} parent=1 // pred_fallthru
      _
    // Predicated region
    $region26: #{faster_rcnn_forward.7} parent=1 // pred_check
      _
    $region27: #{faster_rcnn_forward.7} parent=1 // pred_check_branch
      %28 = sbr.rel (0) target = $region29
    $region28: #{faster_rcnn_forward.7} parent=1 // pred_region
      _
    $region29: #{faster_rcnn_forward.7} parent=1 // pred_fallthru
      _
    %v29 = vld [vmem:[%s0] sm:$0xff]
    %v30 = vld [vmem:[%s0 + $0x8] sm:$0xff]
    %v31 = vld [vmem:[%s0 + $0x10] sm:$0xff]
    %v32 = vld [vmem:[%s0 + $0x18] sm:$0xff]
    %v33 = vld [vmem:[%s0 + $0x20] sm:$0xff]
    %v34 = vld [vmem:[%s0 + $0x28] sm:$0xff]
    %v35 = vld [vmem:[%s0 + $0x30] sm:$0xff]
    %v36 = vld [vmem:[%s0 + $0x38] sm:$0xff]
    %v37 = vld [vmem:[%s0 + $0x40] sm:$0xff]
    %v38 = vld [vmem:[%s0 + $0x48] sm:$0xff]
    %v39 = vld [vmem:[%s0 + $0x50] sm:$0xff]
    %v40 = vld [vmem:[%s0 + $0x58] sm:$0xff]
    %v41 = vld [vmem:[%s0 + $0x60] sm:$0xff]
    %v42 = vld [vmem:[%s0 + $0x68] sm:$0xff]
    %v43 = vld [vmem:[%s0 + $0x70] sm:$0xff]
    %v44 = vld [vmem:[%s0 + $0x78] sm:$0xff]
    %v45 = vld [vmem:[%s0 + $0x80] sm:$0xff]
    %v46 = vld [vmem:[%s0 + $0x88] sm:$0xff]
    %v47 = vld [vmem:[%s0 + $0x90] sm:$0xff]
    %v48 = vld [vmem:[%s0 + $0x98] sm:$0xff]
    %v49 = vld [vmem:[%s0 + $0xa0] sm:$0xff]
    %v50 = vld [vmem:[%s0 + $0xa8] sm:$0xff]
    %v51 = vld [vmem:[%s0 + $0xb0] sm:$0xff]
    %v52 = vld [vmem:[%s0 + $0xb8] sm:$0xff]
    %v53 = vld [vmem:[%s0 + $0xc0] sm:$0xff]
    %v54 = vld [vmem:[%s0 + $0xc8] sm:$0xff]
    %v55 = vld [vmem:[%s0 + $0xd0] sm:$0xff]
    %v56 = vld [vmem:[%s0 + $0xd8] sm:$0xff]
    %v57 = vld [vmem:[%s0 + $0xe0] sm:$0xff]
    %v58 = vld [vmem:[%s0 + $0xe8] sm:$0xff]
    %v59 = vld [vmem:[%s0 + $0xf0] sm:$0xff]
    %v60 = vld [vmem:[%s0 + $0xf8] sm:$0xff]
    %v61 = vld [vmem:[%s1] sm:$0xff]
    %v62 = vld [vmem:[%s1 + $0x8] sm:$0xff]
    %v63 = vld [vmem:[%s1 + $0x10] sm:$0xff]
    %v64 = vld [vmem:[%s1 + $0x18] sm:$0xff]
    %v65 = vld [vmem:[%s1 + $0x20] sm:$0xff]
    %v66 = vld [vmem:[%s1 + $0x28] sm:$0xff]
    %v67 = vld [vmem:[%s1 + $0x30] sm:$0xff]
    %v68 = vld [vmem:[%s1 + $0x38] sm:$0xff]
    %v69 = vld [vmem:[%s1 + $0x40] sm:$0xff]
    %v70 = vld [vmem:[%s1 + $0x48] sm:$0xff]
    %v71 = vld [vmem:[%s1 + $0x50] sm:$0xff]
    %v72 = vld [vmem:[%s1 + $0x58] sm:$0xff]
    %v73 = vld [vmem:[%s1 + $0x60] sm:$0xff]
    %v74 = vld [vmem:[%s1 + $0x68] sm:$0xff]
    %v75 = vld [vmem:[%s1 + $0x70] sm:$0xff]
    %v76 = vld [vmem:[%s1 + $0x78] sm:$0xff]
    %v77 = vld [vmem:[%s1 + $0x80] sm:$0xff]
    %v78 = vld [vmem:[%s1 + $0x88] sm:$0xff]
    %v79 = vld [vmem:[%s1 + $0x90] sm:$0xff]
    %v80 = vld [vmem:[%s1 + $0x98] sm:$0xff]
    %v81 = vld [vmem:[%s1 + $0xa0] sm:$0xff]
    %v82 = vld [vmem:[%s1 + $0xa8] sm:$0xff]
    %v83 = vld [vmem:[%s1 + $0xb0] sm:$0xff]
    %v84 = vld [vmem:[%s1 + $0xb8] sm:$0xff]
    %v85 = vld [vmem:[%s1 + $0xc0] sm:$0xff]
    %v86 = vld [vmem:[%s1 + $0xc8] sm:$0xff]
    %v87 = vld [vmem:[%s1 + $0xd0] sm:$0xff]
    %v88 = vld [vmem:[%s1 + $0xd8] sm:$0xff]
    %v89 = vld [vmem:[%s1 + $0xe0] sm:$0xff]
    %v90 = vld [vmem:[%s1 + $0xe8] sm:$0xff]
    %v91 = vld [vmem:[%s1 + $0xf0] sm:$0xff]
    %v92 = vld [vmem:[%s1 + $0xf8] sm:$0xff]
    %v93 = vld [vmem:[%s1 + $0x100] sm:$0xff]
    %v94 = vld [vmem:[%s1 + $0x108] sm:$0xff]
    %v95 = vld [vmem:[%s1 + $0x110] sm:$0xff]
    %v96 = vld [vmem:[%s1 + $0x118] sm:$0xff]
    %v97 = vld [vmem:[%s1 + $0x120] sm:$0xff]
    %v98 = vld [vmem:[%s1 + $0x128] sm:$0xff]
    %v99 = vld [vmem:[%s1 + $0x130] sm:$0xff]
    %v100 = vld [vmem:[%s1 + $0x138] sm:$0xff]
    %v101 = vld [vmem:[%s1 + $0x140] sm:$0xff]
    %v102 = vld [vmem:[%s1 + $0x148] sm:$0xff]
    %v103 = vld [vmem:[%s1 + $0x150] sm:$0xff]
    %v104 = vld [vmem:[%s1 + $0x158] sm:$0xff]
    %v105 = vld [vmem:[%s1 + $0x160] sm:$0xff]
    %v106 = vld [vmem:[%s1 + $0x168] sm:$0xff]
    %v107 = vld [vmem:[%s1 + $0x170] sm:$0xff]
    %v108 = vld [vmem:[%s1 + $0x178] sm:$0xff]
    %v109 = vld [vmem:[%s1 + $0x180] sm:$0xff]
    %v110 = vld [vmem:[%s1 + $0x188] sm:$0xff]
    %v111 = vld [vmem:[%s1 + $0x190] sm:$0xff]
    %v112 = vld [vmem:[%s1 + $0x198] sm:$0xff]
    %v113 = vld [vmem:[%s1 + $0x1a0] sm:$0xff]
    %v114 = vld [vmem:[%s1 + $0x1a8] sm:$0xff]
    %v115 = vld [vmem:[%s1 + $0x1b0] sm:$0xff]
    %v116 = vld [vmem:[%s1 + $0x1b8] sm:$0xff]
    %v117 = vld [vmem:[%s1 + $0x1c0] sm:$0xff]
    %v118 = vld [vmem:[%s1 + $0x1c8] sm:$0xff]
    %v119 = vld [vmem:[%s1 + $0x1d0] sm:$0xff]
    %v120 = vld [vmem:[%s1 + $0x1d8] sm:$0xff]
    %v121 = vld [vmem:[%s1 + $0x1e0] sm:$0xff]
    %v122 = vld [vmem:[%s1 + $0x1e8] sm:$0xff]
    %v123 = vld [vmem:[%s1 + $0x1f0] sm:$0xff]
    %v124 = vld [vmem:[%s1 + $0x1f8] sm:$0xff]
    %v125 = vld [vmem:[%s1 + $0x200] sm:$0xff]
    %v126 = vld [vmem:[%s1 + $0x208] sm:$0xff]
    %v127 = vld [vmem:[%s1 + $0x210] sm:$0xff]
    %v128 = vld [vmem:[%s1 + $0x218] sm:$0xff]
    %v129 = vld [vmem:[%s1 + $0x220] sm:$0xff]
    %v130 = vld [vmem:[%s1 + $0x228] sm:$0xff]
    %v131 = vld [vmem:[%s1 + $0x230] sm:$0xff]
    %v132 = vld [vmem:[%s1 + $0x238] sm:$0xff]
    %v133 = vld [vmem:[%s1 + $0x240] sm:$0xff]
    %v134 = vld [vmem:[%s1 + $0x248] sm:$0xff]
    %v135 = vld [vmem:[%s1 + $0x250] sm:$0xff]
    %v136 = vld [vmem:[%s1 + $0x258] sm:$0xff]
    %v137 = vld [vmem:[%s1 + $0x260] sm:$0xff]
    %v138 = vld [vmem:[%s1 + $0x268] sm:$0xff]
    %v139 = vld [vmem:[%s1 + $0x270] sm:$0xff]
    %v140 = vld [vmem:[%s1 + $0x278] sm:$0xff]
    %v141 = vld [vmem:[%s1 + $0x280] sm:$0xff]
    %v142 = vld [vmem:[%s1 + $0x288] sm:$0xff]
    %v143 = vld [vmem:[%s1 + $0x290] sm:$0xff]
    %v144 = vld [vmem:[%s1 + $0x298] sm:$0xff]
    %v145 = vld [vmem:[%s1 + $0x2a0] sm:$0xff]
    %v146 = vld [vmem:[%s1 + $0x2a8] sm:$0xff]
    %v147 = vld [vmem:[%s1 + $0x2b0] sm:$0xff]
    %v148 = vld [vmem:[%s1 + $0x2b8] sm:$0xff]
    %v149 = vld [vmem:[%s1 + $0x2c0] sm:$0xff]
    %v150 = vld [vmem:[%s1 + $0x2c8] sm:$0xff]
    %v151 = vld [vmem:[%s1 + $0x2d0] sm:$0xff]
    %v152 = vld [vmem:[%s1 + $0x2d8] sm:$0xff]
    %v153 = vld [vmem:[%s1 + $0x2e0] sm:$0xff]
    %v154 = vld [vmem:[%s1 + $0x2e8] sm:$0xff]
    %v155 = vld [vmem:[%s1 + $0x2f0] sm:$0xff]
    %v156 = vld [vmem:[%s1 + $0x2f8] sm:$0xff]
    %v157 = vld [vmem:[%s1 + $0x300] sm:$0xff]
    %v158 = vld [vmem:[%s1 + $0x308] sm:$0xff]
    %v159 = vld [vmem:[%s1 + $0x310] sm:$0xff]
    %v160 = vld [vmem:[%s1 + $0x318] sm:$0xff]
    %v161 = vld [vmem:[%s1 + $0x320] sm:$0xff]
    %v162 = vld [vmem:[%s1 + $0x328] sm:$0xff]
    %v163 = vld [vmem:[%s1 + $0x330] sm:$0xff]
    %v164 = vld [vmem:[%s1 + $0x338] sm:$0xff]
    %v165 = vld [vmem:[%s1 + $0x340] sm:$0xff]
    %v166 = vld [vmem:[%s1 + $0x348] sm:$0xff]
    %v167 = vld [vmem:[%s1 + $0x350] sm:$0xff]
    %v168 = vld [vmem:[%s1 + $0x358] sm:$0xff]
    %v169 = vld [vmem:[%s1 + $0x360] sm:$0xff]
    %v170 = vld [vmem:[%s1 + $0x368] sm:$0xff]
    %v171 = vld [vmem:[%s1 + $0x370] sm:$0xff]
    %v172 = vld [vmem:[%s1 + $0x378] sm:$0xff]
    %v173 = vld [vmem:[%s1 + $0x380] sm:$0xff]
    %v174 = vld [vmem:[%s1 + $0x388] sm:$0xff]
    %v175 = vld [vmem:[%s1 + $0x390] sm:$0xff]
    %v176 = vld [vmem:[%s1 + $0x398] sm:$0xff]
    %v177 = vld [vmem:[%s1 + $0x3a0] sm:$0xff]
    %v178 = vld [vmem:[%s1 + $0x3a8] sm:$0xff]
    %v179 = vld [vmem:[%s1 + $0x3b0] sm:$0xff]
    %v180 = vld [vmem:[%s1 + $0x3b8] sm:$0xff]
    %v181 = vld [vmem:[%s1 + $0x3c0] sm:$0xff]
    %v182 = vld [vmem:[%s1 + $0x3c8] sm:$0xff]
    %v183 = vld [vmem:[%s1 + $0x3d0] sm:$0xff]
    %v184 = vld [vmem:[%s1 + $0x3d8] sm:$0xff]
    %v185 = vld [vmem:[%s1 + $0x3e0] sm:$0xff]
    %v186 = vld [vmem:[%s1 + $0x3e8] sm:$0xff]
    %v187 = vld [vmem:[%s1 + $0x3f0] sm:$0xff]
    %v188 = vld [vmem:[%s1 + $0x3f8] sm:$0xff]
    %v189 = vld [vmem:[%s1 + $0x400] sm:$0xff]
    %v190 = vld [vmem:[%s1 + $0x408] sm:$0xff]
    %v191 = vld [vmem:[%s1 + $0x410] sm:$0xff]
    %v192 = vld [vmem:[%s1 + $0x418] sm:$0xff]
    %v193 = vld [vmem:[%s1 + $0x420] sm:$0xff]
    %v194 = vld [vmem:[%s1 + $0x428] sm:$0xff]
    %v195 = vld [vmem:[%s1 + $0x430] sm:$0xff]
    %v196 = vld [vmem:[%s1 + $0x438] sm:$0xff]
    %v197 = vld [vmem:[%s1 + $0x440] sm:$0xff]
    %v198 = vld [vmem:[%s1 + $0x448] sm:$0xff]
    %v199 = vld [vmem:[%s1 + $0x450] sm:$0xff]
    %v200 = vld [vmem:[%s1 + $0x458] sm:$0xff]
    %v201 = vld [vmem:[%s1 + $0x460] sm:$0xff]
    %v202 = vld [vmem:[%s1 + $0x468] sm:$0xff]
    %v203 = vld [vmem:[%s1 + $0x470] sm:$0xff]
    %v204 = vld [vmem:[%s1 + $0x478] sm:$0xff]
    %v205 = vld [vmem:[%s1 + $0x480] sm:$0xff]
    %v206 = vld [vmem:[%s1 + $0x488] sm:$0xff]
    %v207 = vld [vmem:[%s1 + $0x490] sm:$0xff]
    %v208 = vld [vmem:[%s1 + $0x498] sm:$0xff]
    %v209 = vld [vmem:[%s1 + $0x4a0] sm:$0xff]
    %v210 = vld [vmem:[%s1 + $0x4a8] sm:$0xff]
    %v211 = vld [vmem:[%s1 + $0x4b0] sm:$0xff]
    %v212 = vld [vmem:[%s1 + $0x4b8] sm:$0xff]
    %v213 = vld [vmem:[%s1 + $0x4c0] sm:$0xff]
    %v214 = vld [vmem:[%s1 + $0x4c8] sm:$0xff]
    %v215 = vld [vmem:[%s1 + $0x4d0] sm:$0xff]
    %v216 = vld [vmem:[%s1 + $0x4d8] sm:$0xff]
    %v217 = vld [vmem:[%s1 + $0x4e0] sm:$0xff]
    %v218 = vld [vmem:[%s1 + $0x4e8] sm:$0xff]
    %v219 = vld [vmem:[%s1 + $0x4f0] sm:$0xff]
    %v220 = vld [vmem:[%s1 + $0x4f8] sm:$0xff]
    %v221 = vld [vmem:[%s1 + $0x500] sm:$0xff]
    %v222 = vld [vmem:[%s1 + $0x508] sm:$0xff]
    %v223 = vld [vmem:[%s1 + $0x510] sm:$0xff]
    %v224 = vld [vmem:[%s1 + $0x518] sm:$0xff]
    %v225 = vld [vmem:[%s1 + $0x520] sm:$0xff]
    %v226 = vld [vmem:[%s1 + $0x528] sm:$0xff]
    %v227 = vld [vmem:[%s1 + $0x530] sm:$0xff]
    %v228 = vld [vmem:[%s1 + $0x538] sm:$0xff]
    %v229 = vld [vmem:[%s1 + $0x540] sm:$0xff]
    %v230 = vld [vmem:[%s1 + $0x548] sm:$0xff]
    %v231 = vld [vmem:[%s1 + $0x550] sm:$0xff]
    %v232 = vld [vmem:[%s1 + $0x558] sm:$0xff]
    %v233 = vld [vmem:[%s1 + $0x560] sm:$0xff]
    %v234 = vld [vmem:[%s1 + $0x568] sm:$0xff]
    %v235 = vld [vmem:[%s1 + $0x570] sm:$0xff]
    %v236 = vld [vmem:[%s1 + $0x578] sm:$0xff]
    %v237 = vld [vmem:[%s1 + $0x580] sm:$0xff]
    %v238 = vld [vmem:[%s1 + $0x588] sm:$0xff]
    %v239 = vld [vmem:[%s1 + $0x590] sm:$0xff]
    %v240 = vld [vmem:[%s1 + $0x598] sm:$0xff]
    %v241 = vld [vmem:[%s1 + $0x5a0] sm:$0xff]
    %v242 = vld [vmem:[%s1 + $0x5a8] sm:$0xff]
    %v243 = vld [vmem:[%s1 + $0x5b0] sm:$0xff]
    %v244 = vld [vmem:[%s1 + $0x5b8] sm:$0xff]
    %v245 = vld [vmem:[%s1 + $0x5c0] sm:$0xff]
    %v246 = vld [vmem:[%s1 + $0x5c8] sm:$0xff]
    %v247 = vld [vmem:[%s1 + $0x5d0] sm:$0xff]
    %v248 = vld [vmem:[%s1 + $0x5d8] sm:$0xff]
    %v249 = vld [vmem:[%s1 + $0x5e0] sm:$0xff]
    %v250 = vld [vmem:[%s1 + $0x5e8] sm:$0xff]
    %v251 = vld [vmem:[%s1 + $0x5f0] sm:$0xff]
    %v252 = vld [vmem:[%s1 + $0x5f8] sm:$0xff]
    %v253 = vld [vmem:[%s1 + $0x600] sm:$0xff]
    %v254 = vld [vmem:[%s1 + $0x608] sm:$0xff]
    %v255 = vld [vmem:[%s1 + $0x610] sm:$0xff]
    %v256 = vld [vmem:[%s1 + $0x618] sm:$0xff]
    %v257 = vld [vmem:[%s1 + $0x620] sm:$0xff]
    %v258 = vld [vmem:[%s1 + $0x628] sm:$0xff]
    %v259 = vld [vmem:[%s1 + $0x630] sm:$0xff]
    %v260 = vld [vmem:[%s1 + $0x638] sm:$0xff]
    %v261 = vld [vmem:[%s1 + $0x640] sm:$0xff]
    %v262 = vld [vmem:[%s1 + $0x648] sm:$0xff]
    %v263 = vld [vmem:[%s1 + $0x650] sm:$0xff]
    %v264 = vld [vmem:[%s1 + $0x658] sm:$0xff]
    %v265 = vld [vmem:[%s1 + $0x660] sm:$0xff]
    %v266 = vld [vmem:[%s1 + $0x668] sm:$0xff]
    %v267 = vld [vmem:[%s1 + $0x670] sm:$0xff]
    %v268 = vld [vmem:[%s1 + $0x678] sm:$0xff]
    %v269 = vld [vmem:[%s1 + $0x680] sm:$0xff]
    %v270 = vld [vmem:[%s1 + $0x688] sm:$0xff]
    %v271 = vld [vmem:[%s1 + $0x690] sm:$0xff]
    %v272 = vld [vmem:[%s1 + $0x698] sm:$0xff]
    %v273 = vld [vmem:[%s1 + $0x6a0] sm:$0xff]
    %v274 = vld [vmem:[%s1 + $0x6a8] sm:$0xff]
    %v275 = vld [vmem:[%s1 + $0x6b0] sm:$0xff]
    %v276 = vld [vmem:[%s1 + $0x6b8] sm:$0xff]
    %v277 = vld [vmem:[%s1 + $0x6c0] sm:$0xff]
    %v278 = vld [vmem:[%s1 + $0x6c8] sm:$0xff]
    %v279 = vld [vmem:[%s1 + $0x6d0] sm:$0xff]
    %v280 = vld [vmem:[%s1 + $0x6d8] sm:$0xff]
    %v281 = vld [vmem:[%s1 + $0x6e0] sm:$0xff]
    %v282 = vld [vmem:[%s1 + $0x6e8] sm:$0xff]
    %v283 = vld [vmem:[%s1 + $0x6f0] sm:$0xff]
    %v284 = vld [vmem:[%s1 + $0x6f8] sm:$0xff]
    %v285 = vld [vmem:[%s1 + $0x700] sm:$0xff]
    %v286 = vld [vmem:[%s1 + $0x708] sm:$0xff]
    %v287 = vld [vmem:[%s1 + $0x710] sm:$0xff]
    %v288 = vld [vmem:[%s1 + $0x718] sm:$0xff]
    %v289 = vld [vmem:[%s1 + $0x720] sm:$0xff]
    %v290 = vld [vmem:[%s1 + $0x728] sm:$0xff]
    %v291 = vld [vmem:[%s1 + $0x730] sm:$0xff]
    %v292 = vld [vmem:[%s1 + $0x738] sm:$0xff]
    %v293 = vld [vmem:[%s1 + $0x740] sm:$0xff]
    %v294 = vld [vmem:[%s1 + $0x748] sm:$0xff]
    %v295 = vld [vmem:[%s1 + $0x750] sm:$0xff]
    %v296 = vld [vmem:[%s1 + $0x758] sm:$0xff]
    %v297 = vld [vmem:[%s1 + $0x760] sm:$0xff]
    %v298 = vld [vmem:[%s1 + $0x768] sm:$0xff]
    %v299 = vld [vmem:[%s1 + $0x770] sm:$0xff]
    %v300 = vld [vmem:[%s1 + $0x778] sm:$0xff]
    %v301 = vld [vmem:[%s1 + $0x780] sm:$0xff]
    %v302 = vld [vmem:[%s1 + $0x788] sm:$0xff]
    %v303 = vld [vmem:[%s1 + $0x790] sm:$0xff]
    %v304 = vld [vmem:[%s1 + $0x798] sm:$0xff]
    %v305 = vld [vmem:[%s1 + $0x7a0] sm:$0xff]
    %v306 = vld [vmem:[%s1 + $0x7a8] sm:$0xff]
    %v307 = vld [vmem:[%s1 + $0x7b0] sm:$0xff]
    %v308 = vld [vmem:[%s1 + $0x7b8] sm:$0xff]
    %v309 = vld [vmem:[%s1 + $0x7c0] sm:$0xff]
    %v310 = vld [vmem:[%s1 + $0x7c8] sm:$0xff]
    %v311 = vld [vmem:[%s1 + $0x7d0] sm:$0xff]
    %v312 = vld [vmem:[%s1 + $0x7d8] sm:$0xff]
    %v313 = vld [vmem:[%s1 + $0x7e0] sm:$0xff]
    %v314 = vld [vmem:[%s1 + $0x7e8] sm:$0xff]
    %v315 = vld [vmem:[%s1 + $0x7f0] sm:$0xff]
    %v316 = vld [vmem:[%s1 + $0x7f8] sm:$0xff]
    %v317 = vld [vmem:[%s2] sm:$0x1]
    %v319 = vlaneseq
    %v320 = vshrl.u32 %v319, 7
    %v321 = vsub.s32 0, %v320
    %v322 = vrot.slane %v317, %v321
    %324 = vmatprep.subr.mxu0 0.0
    %325 = vmatpush1.msra.mxu0 %v61
    %326 = vmatprep.subr.mxu0 0.0
    %327 = vmatpush1.msra.mxu0 %v62
    %328 = vmatprep.subr.mxu0 0.0
    %329 = vmatpush1.msra.mxu0 %v63
    %330 = vmatprep.subr.mxu0 0.0
    %331 = vmatpush1.msra.mxu0 %v64
    %332 = vmatprep.subr.mxu0 0.0
    %333 = vmatpush1.msra.mxu0 %v65
    %334 = vmatprep.subr.mxu0 0.0
    %335 = vmatpush1.msra.mxu0 %v66
    %336 = vmatprep.subr.mxu0 0.0
    %337 = vmatpush1.msra.mxu0 %v67
    %338 = vmatprep.subr.mxu0 0.0
    %339 = vmatpush1.msra.mxu0 %v68
    %340 = vmatprep.subr.mxu0 0.0
    %341 = vmatpush1.msra.mxu0 %v69
    %342 = vmatprep.subr.mxu0 0.0
    %343 = vmatpush1.msra.mxu0 %v70
    %344 = vmatprep.subr.mxu0 0.0
    %345 = vmatpush1.msra.mxu0 %v71
    %346 = vmatprep.subr.mxu0 0.0
    %347 = vmatpush1.msra.mxu0 %v72
    %348 = vmatprep.subr.mxu0 0.0
    %349 = vmatpush1.msra.mxu0 %v73
    %350 = vmatprep.subr.mxu0 0.0
    %351 = vmatpush1.msra.mxu0 %v74
    %352 = vmatprep.subr.mxu0 0.0
    %353 = vmatpush1.msra.mxu0 %v75
    %354 = vmatprep.subr.mxu0 0.0
    %355 = vmatpush1.msra.mxu0 %v76
    %356 = vmatprep.subr.mxu0 0.0
    %357 = vmatpush1.msra.mxu0 %v77
    %358 = vmatprep.subr.mxu0 0.0
    %359 = vmatpush1.msra.mxu0 %v78
    %360 = vmatprep.subr.mxu0 0.0
    %361 = vmatpush1.msra.mxu0 %v79
    %362 = vmatprep.subr.mxu0 0.0
    %363 = vmatpush1.msra.mxu0 %v80
    %364 = vmatprep.subr.mxu0 0.0
    %365 = vmatpush1.msra.mxu0 %v81
    %366 = vmatprep.subr.mxu0 0.0
    %367 = vmatpush1.msra.mxu0 %v82
    %368 = vmatprep.subr.mxu0 0.0
    %369 = vmatpush1.msra.mxu0 %v83
    %370 = vmatprep.subr.mxu0 0.0
    %371 = vmatpush1.msra.mxu0 %v84
    %372 = vmatprep.subr.mxu0 0.0
    %373 = vmatpush1.msra.mxu0 %v85
    %374 = vmatprep.subr.mxu0 0.0
    %375 = vmatpush1.msra.mxu0 %v86
    %376 = vmatprep.subr.mxu0 0.0
    %377 = vmatpush1.msra.mxu0 %v87
    %378 = vmatprep.subr.mxu0 0.0
    %379 = vmatpush1.msra.mxu0 %v88
    %380 = vmatprep.subr.mxu0 0.0
    %381 = vmatpush1.msra.mxu0 %v89
    %382 = vmatprep.subr.mxu0 0.0
    %383 = vmatpush1.msra.mxu0 %v90
    %384 = vmatprep.subr.mxu0 0.0
    %385 = vmatpush1.msra.mxu0 %v91
    %386 = vmatprep.subr.mxu0 0.0
    %387 = vmatpush1.msra.mxu0 %v92
    %388 = vmatprep.mubr.f32.mxu0 %v30
    %389 = vmatmul.mubr.f32.gmra.mrb[0].mxu0 %v29
    %v390 = vpop.f32.mrb[0].mxu0
    %v391 = vadd.f32 %v322, %v390
    %v392 = vpop.f32.mrb[0].mxu0
    %393 = vmatprep.mubr.f32.mxu0 %v46
    %394 = vmatmul.mubr.f32.gmra.mrb[0].mxu0 %v45
    %v395 = vpop.f32.mrb[0].mxu0
    %v396 = vadd.f32 %v322, %v395
    %v397 = vpop.f32.mrb[0].mxu0
    %398 = vdwg.mxu0
    %399 = vmatprep.subr.mxu0 0.0
    %400 = vmatpush1.msra.mxu0 %v93
    %401 = vmatprep.subr.mxu0 0.0
    %402 = vmatpush1.msra.mxu0 %v94
    %403 = vmatprep.subr.mxu0 0.0
    %404 = vmatpush1.msra.mxu0 %v95
    %405 = vmatprep.subr.mxu0 0.0
    %406 = vmatpush1.msra.mxu0 %v96
    %407 = vmatprep.subr.mxu0 0.0
    %408 = vmatpush1.msra.mxu0 %v97
    %409 = vmatprep.subr.mxu0 0.0
    %410 = vmatpush1.msra.mxu0 %v98
    %411 = vmatprep.subr.mxu0 0.0
    %412 = vmatpush1.msra.mxu0 %v99
    %413 = vmatprep.subr.mxu0 0.0
    %414 = vmatpush1.msra.mxu0 %v100
    %415 = vmatprep.subr.mxu0 0.0
    %416 = vmatpush1.msra.mxu0 %v101
    %417 = vmatprep.subr.mxu0 0.0
    %418 = vmatpush1.msra.mxu0 %v102
    %419 = vmatprep.subr.mxu0 0.0
    %420 = vmatpush1.msra.mxu0 %v103
    %421 = vmatprep.subr.mxu0 0.0
    %422 = vmatpush1.msra.mxu0 %v104
    %423 = vmatprep.subr.mxu0 0.0
    %424 = vmatpush1.msra.mxu0 %v105
    %425 = vmatprep.subr.mxu0 0.0
    %426 = vmatpush1.msra.mxu0 %v106
    %427 = vmatprep.subr.mxu0 0.0
    %428 = vmatpush1.msra.mxu0 %v107
    %429 = vmatprep.subr.mxu0 0.0
    %430 = vmatpush1.msra.mxu0 %v108
    %431 = vmatprep.subr.mxu0 0.0
    %432 = vmatpush1.msra.mxu0 %v109
    %433 = vmatprep.subr.mxu0 0.0
    %434 = vmatpush1.msra.mxu0 %v110
    %435 = vmatprep.subr.mxu0 0.0
    %436 = vmatpush1.msra.mxu0 %v111
    %437 = vmatprep.subr.mxu0 0.0
    %438 = vmatpush1.msra.mxu0 %v112
    %439 = vmatprep.subr.mxu0 0.0
    %440 = vmatpush1.msra.mxu0 %v113
    %441 = vmatprep.subr.mxu0 0.0
    %442 = vmatpush1.msra.mxu0 %v114
    %443 = vmatprep.subr.mxu0 0.0
    %444 = vmatpush1.msra.mxu0 %v115
    %445 = vmatprep.subr.mxu0 0.0
    %446 = vmatpush1.msra.mxu0 %v116
    %447 = vmatprep.subr.mxu0 0.0
    %448 = vmatpush1.msra.mxu0 %v117
    %449 = vmatprep.subr.mxu0 0.0
    %450 = vmatpush1.msra.mxu0 %v118
    %451 = vmatprep.subr.mxu0 0.0
    %452 = vmatpush1.msra.mxu0 %v119
    %453 = vmatprep.subr.mxu0 0.0
    %454 = vmatpush1.msra.mxu0 %v120
    %455 = vmatprep.subr.mxu0 0.0
    %456 = vmatpush1.msra.mxu0 %v121
    %457 = vmatprep.subr.mxu0 0.0
    %458 = vmatpush1.msra.mxu0 %v122
    %459 = vmatprep.subr.mxu0 0.0
    %460 = vmatpush1.msra.mxu0 %v123
    %461 = vmatprep.subr.mxu0 0.0
    %462 = vmatpush1.msra.mxu0 %v124
    %463 = vmatprep.mubr.f32.mxu0 %v32
    %464 = vmatmul.mubr.f32.gmra.mrb[0].mxu0 %v31
    %v465 = vpop.f32.mrb[0].mxu0
    %v466 = vadd.f32 %v391, %v465
    %v467 = vpop.f32.mrb[0].mxu0
    %468 = vmatprep.mubr.f32.mxu0 %v48
    %469 = vmatmul.mubr.f32.gmra.mrb[0].mxu0 %v47
    %v470 = vpop.f32.mrb[0].mxu0
    %v471 = vadd.f32 %v396, %v470
    %v472 = vpop.f32.mrb[0].mxu0
    %473 = vdwg.mxu0
    %474 = vmatprep.subr.mxu0 0.0
    %475 = vmatpush1.msra.mxu0 %v125
    %476 = vmatprep.subr.mxu0 0.0
    %477 = vmatpush1.msra.mxu0 %v126
    %478 = vmatprep.subr.mxu0 0.0
    %479 = vmatpush1.msra.mxu0 %v127
    %480 = vmatprep.subr.mxu0 0.0
    %481 = vmatpush1.msra.mxu0 %v128
    %482 = vmatprep.subr.mxu0 0.0
    %483 = vmatpush1.msra.mxu0 %v129
    %484 = vmatprep.subr.mxu0 0.0
    %485 = vmatpush1.msra.mxu0 %v130
    %486 = vmatprep.subr.mxu0 0.0
    %487 = vmatpush1.msra.mxu0 %v131
    %488 = vmatprep.subr.mxu0 0.0
    %489 = vmatpush1.msra.mxu0 %v132
    %490 = vmatprep.subr.mxu0 0.0
    %491 = vmatpush1.msra.mxu0 %v133
    %492 = vmatprep.subr.mxu0 0.0
    %493 = vmatpush1.msra.mxu0 %v134
    %494 = vmatprep.subr.mxu0 0.0
    %495 = vmatpush1.msra.mxu0 %v135
    %496 = vmatprep.subr.mxu0 0.0
    %497 = vmatpush1.msra.mxu0 %v136
    %498 = vmatprep.subr.mxu0 0.0
    %499 = vmatpush1.msra.mxu0 %v137
    %500 = vmatprep.subr.mxu0 0.0
    %501 = vmatpush1.msra.mxu0 %v138
    %502 = vmatprep.subr.mxu0 0.0
    %503 = vmatpush1.msra.mxu0 %v139
    %504 = vmatprep.subr.mxu0 0.0
    %505 = vmatpush1.msra.mxu0 %v140
    %506 = vmatprep.subr.mxu0 0.0
    %507 = vmatpush1.msra.mxu0 %v141
    %508 = vmatprep.subr.mxu0 0.0
    %509 = vmatpush1.msra.mxu0 %v142
    %510 = vmatprep.subr.mxu0 0.0
    %511 = vmatpush1.msra.mxu0 %v143
    %512 = vmatprep.subr.mxu0 0.0
    %513 = vmatpush1.msra.mxu0 %v144
    %514 = vmatprep.subr.mxu0 0.0
    %515 = vmatpush1.msra.mxu0 %v145
    %516 = vmatprep.subr.mxu0 0.0
    %517 = vmatpush1.msra.mxu0 %v146
    %518 = vmatprep.subr.mxu0 0.0
    %519 = vmatpush1.msra.mxu0 %v147
    %520 = vmatprep.subr.mxu0 0.0
    %521 = vmatpush1.msra.mxu0 %v148
    %522 = vmatprep.subr.mxu0 0.0
    %523 = vmatpush1.msra.mxu0 %v149
    %524 = vmatprep.subr.mxu0 0.0
    %525 = vmatpush1.msra.mxu0 %v150
    %526 = vmatprep.subr.mxu0 0.0
    %527 = vmatpush1.msra.mxu0 %v151
    %528 = vmatprep.subr.mxu0 0.0
    %529 = vmatpush1.msra.mxu0 %v152
    %530 = vmatprep.subr.mxu0 0.0
    %531 = vmatpush1.msra.mxu0 %v153
    %532 = vmatprep.subr.mxu0 0.0
    %533 = vmatpush1.msra.mxu0 %v154
    %534 = vmatprep.subr.mxu0 0.0
    %535 = vmatpush1.msra.mxu0 %v155
    %536 = vmatprep.subr.mxu0 0.0
    %537 = vmatpush1.msra.mxu0 %v156
    %538 = vmatprep.mubr.f32.mxu0 %v34
    %539 = vmatmul.mubr.f32.gmra.mrb[0].mxu0 %v33
    %v540 = vpop.f32.mrb[0].mxu0
    %v541 = vadd.f32 %v466, %v540
    %v542 = vpop.f32.mrb[0].mxu0
    %543 = vmatprep.mubr.f32.mxu0 %v50
    %544 = vmatmul.mubr.f32.gmra.mrb[0].mxu0 %v49
    %v545 = vpop.f32.mrb[0].mxu0
    %v546 = vadd.f32 %v471, %v545
    %v547 = vpop.f32.mrb[0].mxu0
    %548 = vdwg.mxu0
    %549 = vmatprep.subr.mxu0 0.0
    %550 = vmatpush1.msra.mxu0 %v157
    %551 = vmatprep.subr.mxu0 0.0
    %552 = vmatpush1.msra.mxu0 %v158
    %553 = vmatprep.subr.mxu0 0.0
    %554 = vmatpush1.msra.mxu0 %v159
    %555 = vmatprep.subr.mxu0 0.0
    %556 = vmatpush1.msra.mxu0 %v160
    %557 = vmatprep.subr.mxu0 0.0
    %558 = vmatpush1.msra.mxu0 %v161
    %559 = vmatprep.subr.mxu0 0.0
    %560 = vmatpush1.msra.mxu0 %v162
    %561 = vmatprep.subr.mxu0 0.0
    %562 = vmatpush1.msra.mxu0 %v163
    %563 = vmatprep.subr.mxu0 0.0
    %564 = vmatpush1.msra.mxu0 %v164
    %565 = vmatprep.subr.mxu0 0.0
    %566 = vmatpush1.msra.mxu0 %v165
    %567 = vmatprep.subr.mxu0 0.0
    %568 = vmatpush1.msra.mxu0 %v166
    %569 = vmatprep.subr.mxu0 0.0
    %570 = vmatpush1.msra.mxu0 %v167
    %571 = vmatprep.subr.mxu0 0.0
    %572 = vmatpush1.msra.mxu0 %v168
    %573 = vmatprep.subr.mxu0 0.0
    %574 = vmatpush1.msra.mxu0 %v169
    %575 = vmatprep.subr.mxu0 0.0
    %576 = vmatpush1.msra.mxu0 %v170
    %577 = vmatprep.subr.mxu0 0.0
    %578 = vmatpush1.msra.mxu0 %v171
    %579 = vmatprep.subr.mxu0 0.0
    %580 = vmatpush1.msra.mxu0 %v172
    %581 = vmatprep.subr.mxu0 0.0
    %582 = vmatpush1.msra.mxu0 %v173
    %583 = vmatprep.subr.mxu0 0.0
    %584 = vmatpush1.msra.mxu0 %v174
    %585 = vmatprep.subr.mxu0 0.0
    %586 = vmatpush1.msra.mxu0 %v175
    %587 = vmatprep.subr.mxu0 0.0
    %588 = vmatpush1.msra.mxu0 %v176
    %589 = vmatprep.subr.mxu0 0.0
    %590 = vmatpush1.msra.mxu0 %v177
    %591 = vmatprep.subr.mxu0 0.0
    %592 = vmatpush1.msra.mxu0 %v178
    %593 = vmatprep.subr.mxu0 0.0
    %594 = vmatpush1.msra.mxu0 %v179
    %595 = vmatprep.subr.mxu0 0.0
    %596 = vmatpush1.msra.mxu0 %v180
    %597 = vmatprep.subr.mxu0 0.0
    %598 = vmatpush1.msra.mxu0 %v181
    %599 = vmatprep.subr.mxu0 0.0
    %600 = vmatpush1.msra.mxu0 %v182
    %601 = vmatprep.subr.mxu0 0.0
    %602 = vmatpush1.msra.mxu0 %v183
    %603 = vmatprep.subr.mxu0 0.0
    %604 = vmatpush1.msra.mxu0 %v184
    %605 = vmatprep.subr.mxu0 0.0
    %606 = vmatpush1.msra.mxu0 %v185
    %607 = vmatprep.subr.mxu0 0.0
    %608 = vmatpush1.msra.mxu0 %v186
    %609 = vmatprep.subr.mxu0 0.0
    %610 = vmatpush1.msra.mxu0 %v187
    %611 = vmatprep.subr.mxu0 0.0
    %612 = vmatpush1.msra.mxu0 %v188
    %613 = vmatprep.mubr.f32.mxu0 %v36
    %614 = vmatmul.mubr.f32.gmra.mrb[0].mxu0 %v35
    %v615 = vpop.f32.mrb[0].mxu0
    %v616 = vadd.f32 %v541, %v615
    %v617 = vpop.f32.mrb[0].mxu0
    %618 = vmatprep.mubr.f32.mxu0 %v52
    %619 = vmatmul.mubr.f32.gmra.mrb[0].mxu0 %v51
    %v620 = vpop.f32.mrb[0].mxu0
    %v621 = vadd.f32 %v546, %v620
    %v622 = vpop.f32.mrb[0].mxu0
    %623 = vdwg.mxu0
    %624 = vmatprep.subr.mxu0 0.0
    %625 = vmatpush1.msra.mxu0 %v189
    %626 = vmatprep.subr.mxu0 0.0
    %627 = vmatpush1.msra.mxu0 %v190
    %628 = vmatprep.subr.mxu0 0.0
    %629 = vmatpush1.msra.mxu0 %v191
    %630 = vmatprep.subr.mxu0 0.0
    %631 = vmatpush1.msra.mxu0 %v192
    %632 = vmatprep.subr.mxu0 0.0
    %633 = vmatpush1.msra.mxu0 %v193
    %634 = vmatprep.subr.mxu0 0.0
    %635 = vmatpush1.msra.mxu0 %v194
    %636 = vmatprep.subr.mxu0 0.0
    %637 = vmatpush1.msra.mxu0 %v195
    %638 = vmatprep.subr.mxu0 0.0
    %639 = vmatpush1.msra.mxu0 %v196
    %640 = vmatprep.subr.mxu0 0.0
    %641 = vmatpush1.msra.mxu0 %v197
    %642 = vmatprep.subr.mxu0 0.0
    %643 = vmatpush1.msra.mxu0 %v198
    %644 = vmatprep.subr.mxu0 0.0
    %645 = vmatpush1.msra.mxu0 %v199
    %646 = vmatprep.subr.mxu0 0.0
    %647 = vmatpush1.msra.mxu0 %v200
    %648 = vmatprep.subr.mxu0 0.0
    %649 = vmatpush1.msra.mxu0 %v201
    %650 = vmatprep.subr.mxu0 0.0
    %651 = vmatpush1.msra.mxu0 %v202
    %652 = vmatprep.subr.mxu0 0.0
    %653 = vmatpush1.msra.mxu0 %v203
    %654 = vmatprep.subr.mxu0 0.0
    %655 = vmatpush1.msra.mxu0 %v204
    %656 = vmatprep.subr.mxu0 0.0
    %657 = vmatpush1.msra.mxu0 %v205
    %658 = vmatprep.subr.mxu0 0.0
    %659 = vmatpush1.msra.mxu0 %v206
    %660 = vmatprep.subr.mxu0 0.0
    %661 = vmatpush1.msra.mxu0 %v207
    %662 = vmatprep.subr.mxu0 0.0
    %663 = vmatpush1.msra.mxu0 %v208
    %664 = vmatprep.subr.mxu0 0.0
    %665 = vmatpush1.msra.mxu0 %v209
    %666 = vmatprep.subr.mxu0 0.0
    %667 = vmatpush1.msra.mxu0 %v210
    %668 = vmatprep.subr.mxu0 0.0
    %669 = vmatpush1.msra.mxu0 %v211
    %670 = vmatprep.subr.mxu0 0.0
    %671 = vmatpush1.msra.mxu0 %v212
    %672 = vmatprep.subr.mxu0 0.0
    %673 = vmatpush1.msra.mxu0 %v213
    %674 = vmatprep.subr.mxu0 0.0
    %675 = vmatpush1.msra.mxu0 %v214
    %676 = vmatprep.subr.mxu0 0.0
    %677 = vmatpush1.msra.mxu0 %v215
    %678 = vmatprep.subr.mxu0 0.0
    %679 = vmatpush1.msra.mxu0 %v216
    %680 = vmatprep.subr.mxu0 0.0
    %681 = vmatpush1.msra.mxu0 %v217
    %682 = vmatprep.subr.mxu0 0.0
    %683 = vmatpush1.msra.mxu0 %v218
    %684 = vmatprep.subr.mxu0 0.0
    %685 = vmatpush1.msra.mxu0 %v219
    %686 = vmatprep.subr.mxu0 0.0
    %687 = vmatpush1.msra.mxu0 %v220
    %688 = vmatprep.mubr.f32.mxu0 %v38
    %689 = vmatmul.mubr.f32.gmra.mrb[0].mxu0 %v37
    %v690 = vpop.f32.mrb[0].mxu0
    %v691 = vadd.f32 %v616, %v690
    %v692 = vpop.f32.mrb[0].mxu0
    %693 = vmatprep.mubr.f32.mxu0 %v54
    %694 = vmatmul.mubr.f32.gmra.mrb[0].mxu0 %v53
    %v695 = vpop.f32.mrb[0].mxu0
    %v696 = vadd.f32 %v621, %v695
    %v697 = vpop.f32.mrb[0].mxu0
    %698 = vdwg.mxu0
    %699 = vmatprep.subr.mxu0 0.0
    %700 = vmatpush1.msra.mxu0 %v221
    %701 = vmatprep.subr.mxu0 0.0
    %702 = vmatpush1.msra.mxu0 %v222
    %703 = vmatprep.subr.mxu0 0.0
    %704 = vmatpush1.msra.mxu0 %v223
    %705 = vmatprep.subr.mxu0 0.0
    %706 = vmatpush1.msra.mxu0 %v224
    %707 = vmatprep.subr.mxu0 0.0
    %708 = vmatpush1.msra.mxu0 %v225
    %709 = vmatprep.subr.mxu0 0.0
    %710 = vmatpush1.msra.mxu0 %v226
    %711 = vmatprep.subr.mxu0 0.0
    %712 = vmatpush1.msra.mxu0 %v227
    %713 = vmatprep.subr.mxu0 0.0
    %714 = vmatpush1.msra.mxu0 %v228
    %715 = vmatprep.subr.mxu0 0.0
    %716 = vmatpush1.msra.mxu0 %v229
    %717 = vmatprep.subr.mxu0 0.0
    %718 = vmatpush1.msra.mxu0 %v230
    %719 = vmatprep.subr.mxu0 0.0
    %720 = vmatpush1.msra.mxu0 %v231
    %721 = vmatprep.subr.mxu0 0.0
    %722 = vmatpush1.msra.mxu0 %v232
    %723 = vmatprep.subr.mxu0 0.0
    %724 = vmatpush1.msra.mxu0 %v233
    %725 = vmatprep.subr.mxu0 0.0
    %726 = vmatpush1.msra.mxu0 %v234
    %727 = vmatprep.subr.mxu0 0.0
    %728 = vmatpush1.msra.mxu0 %v235
    %729 = vmatprep.subr.mxu0 0.0
    %730 = vmatpush1.msra.mxu0 %v236
    %731 = vmatprep.subr.mxu0 0.0
    %732 = vmatpush1.msra.mxu0 %v237
    %733 = vmatprep.subr.mxu0 0.0
    %734 = vmatpush1.msra.mxu0 %v238
    %735 = vmatprep.subr.mxu0 0.0
    %736 = vmatpush1.msra.mxu0 %v239
    %737 = vmatprep.subr.mxu0 0.0
    %738 = vmatpush1.msra.mxu0 %v240
    %739 = vmatprep.subr.mxu0 0.0
    %740 = vmatpush1.msra.mxu0 %v241
    %741 = vmatprep.subr.mxu0 0.0
    %742 = vmatpush1.msra.mxu0 %v242
    %743 = vmatprep.subr.mxu0 0.0
    %744 = vmatpush1.msra.mxu0 %v243
    %745 = vmatprep.subr.mxu0 0.0
    %746 = vmatpush1.msra.mxu0 %v244
    %747 = vmatprep.subr.mxu0 0.0
    %748 = vmatpush1.msra.mxu0 %v245
    %749 = vmatprep.subr.mxu0 0.0
    %750 = vmatpush1.msra.mxu0 %v246
    %751 = vmatprep.subr.mxu0 0.0
    %752 = vmatpush1.msra.mxu0 %v247
    %753 = vmatprep.subr.mxu0 0.0
    %754 = vmatpush1.msra.mxu0 %v248
    %755 = vmatprep.subr.mxu0 0.0
    %756 = vmatpush1.msra.mxu0 %v249
    %757 = vmatprep.subr.mxu0 0.0
    %758 = vmatpush1.msra.mxu0 %v250
    %759 = vmatprep.subr.mxu0 0.0
    %760 = vmatpush1.msra.mxu0 %v251
    %761 = vmatprep.subr.mxu0 0.0
    %762 = vmatpush1.msra.mxu0 %v252
    %763 = vmatprep.mubr.f32.mxu0 %v40
    %764 = vmatmul.mubr.f32.gmra.mrb[0].mxu0 %v39
    %v765 = vpop.f32.mrb[0].mxu0
    %v766 = vadd.f32 %v691, %v765
    %v767 = vpop.f32.mrb[0].mxu0
    %768 = vmatprep.mubr.f32.mxu0 %v56
    %769 = vmatmul.mubr.f32.gmra.mrb[0].mxu0 %v55
    %v770 = vpop.f32.mrb[0].mxu0
    %v771 = vadd.f32 %v696, %v770
    %v772 = vpop.f32.mrb[0].mxu0
    %773 = vdwg.mxu0
    %774 = vmatprep.subr.mxu0 0.0
    %775 = vmatpush1.msra.mxu0 %v253
    %776 = vmatprep.subr.mxu0 0.0
    %777 = vmatpush1.msra.mxu0 %v254
    %778 = vmatprep.subr.mxu0 0.0
    %779 = vmatpush1.msra.mxu0 %v255
    %780 = vmatprep.subr.mxu0 0.0
    %781 = vmatpush1.msra.mxu0 %v256
    %782 = vmatprep.subr.mxu0 0.0
    %783 = vmatpush1.msra.mxu0 %v257
    %784 = vmatprep.subr.mxu0 0.0
    %785 = vmatpush1.msra.mxu0 %v258
    %786 = vmatprep.subr.mxu0 0.0
    %787 = vmatpush1.msra.mxu0 %v259
    %788 = vmatprep.subr.mxu0 0.0
    %789 = vmatpush1.msra.mxu0 %v260
    %790 = vmatprep.subr.mxu0 0.0
    %791 = vmatpush1.msra.mxu0 %v261
    %792 = vmatprep.subr.mxu0 0.0
    %793 = vmatpush1.msra.mxu0 %v262
    %794 = vmatprep.subr.mxu0 0.0
    %795 = vmatpush1.msra.mxu0 %v263
    %796 = vmatprep.subr.mxu0 0.0
    %797 = vmatpush1.msra.mxu0 %v264
    %798 = vmatprep.subr.mxu0 0.0
    %799 = vmatpush1.msra.mxu0 %v265
    %800 = vmatprep.subr.mxu0 0.0
    %801 = vmatpush1.msra.mxu0 %v266
    %802 = vmatprep.subr.mxu0 0.0
    %803 = vmatpush1.msra.mxu0 %v267
    %804 = vmatprep.subr.mxu0 0.0
    %805 = vmatpush1.msra.mxu0 %v268
    %806 = vmatprep.subr.mxu0 0.0
    %807 = vmatpush1.msra.mxu0 %v269
    %808 = vmatprep.subr.mxu0 0.0
    %809 = vmatpush1.msra.mxu0 %v270
    %810 = vmatprep.subr.mxu0 0.0
    %811 = vmatpush1.msra.mxu0 %v271
    %812 = vmatprep.subr.mxu0 0.0
    %813 = vmatpush1.msra.mxu0 %v272
    %814 = vmatprep.subr.mxu0 0.0
    %815 = vmatpush1.msra.mxu0 %v273
    %816 = vmatprep.subr.mxu0 0.0
    %817 = vmatpush1.msra.mxu0 %v274
    %818 = vmatprep.subr.mxu0 0.0
    %819 = vmatpush1.msra.mxu0 %v275
    %820 = vmatprep.subr.mxu0 0.0
    %821 = vmatpush1.msra.mxu0 %v276
    %822 = vmatprep.subr.mxu0 0.0
    %823 = vmatpush1.msra.mxu0 %v277
    %824 = vmatprep.subr.mxu0 0.0
    %825 = vmatpush1.msra.mxu0 %v278
    %826 = vmatprep.subr.mxu0 0.0
    %827 = vmatpush1.msra.mxu0 %v279
    %828 = vmatprep.subr.mxu0 0.0
    %829 = vmatpush1.msra.mxu0 %v280
    %830 = vmatprep.subr.mxu0 0.0
    %831 = vmatpush1.msra.mxu0 %v281
    %832 = vmatprep.subr.mxu0 0.0
    %833 = vmatpush1.msra.mxu0 %v282
    %834 = vmatprep.subr.mxu0 0.0
    %835 = vmatpush1.msra.mxu0 %v283
    %836 = vmatprep.subr.mxu0 0.0
    %837 = vmatpush1.msra.mxu0 %v284
    %838 = vmatprep.mubr.f32.mxu0 %v42
    %839 = vmatmul.mubr.f32.gmra.mrb[0].mxu0 %v41
    %v840 = vpop.f32.mrb[0].mxu0
    %v841 = vadd.f32 %v766, %v840
    %v842 = vpop.f32.mrb[0].mxu0
    %843 = vmatprep.mubr.f32.mxu0 %v58
    %844 = vmatmul.mubr.f32.gmra.mrb[0].mxu0 %v57
    %v845 = vpop.f32.mrb[0].mxu0
    %v846 = vadd.f32 %v771, %v845
    %v847 = vpop.f32.mrb[0].mxu0
    %848 = vdwg.mxu0
    %849 = vmatprep.subr.mxu0 0.0
    %850 = vmatpush1.msra.mxu0 %v285
    %851 = vmatprep.subr.mxu0 0.0
    %852 = vmatpush1.msra.mxu0 %v286
    %853 = vmatprep.subr.mxu0 0.0
    %854 = vmatpush1.msra.mxu0 %v287
    %855 = vmatprep.subr.mxu0 0.0
    %856 = vmatpush1.msra.mxu0 %v288
    %857 = vmatprep.subr.mxu0 0.0
    %858 = vmatpush1.msra.mxu0 %v289
    %859 = vmatprep.subr.mxu0 0.0
    %860 = vmatpush1.msra.mxu0 %v290
    %861 = vmatprep.subr.mxu0 0.0
    %862 = vmatpush1.msra.mxu0 %v291
    %863 = vmatprep.subr.mxu0 0.0
    %864 = vmatpush1.msra.mxu0 %v292
    %865 = vmatprep.subr.mxu0 0.0
    %866 = vmatpush1.msra.mxu0 %v293
    %867 = vmatprep.subr.mxu0 0.0
    %868 = vmatpush1.msra.mxu0 %v294
    %869 = vmatprep.subr.mxu0 0.0
    %870 = vmatpush1.msra.mxu0 %v295
    %871 = vmatprep.subr.mxu0 0.0
    %872 = vmatpush1.msra.mxu0 %v296
    %873 = vmatprep.subr.mxu0 0.0
    %874 = vmatpush1.msra.mxu0 %v297
    %875 = vmatprep.subr.mxu0 0.0
    %876 = vmatpush1.msra.mxu0 %v298
    %877 = vmatprep.subr.mxu0 0.0
    %878 = vmatpush1.msra.mxu0 %v299
    %879 = vmatprep.subr.mxu0 0.0
    %880 = vmatpush1.msra.mxu0 %v300
    %881 = vmatprep.subr.mxu0 0.0
    %882 = vmatpush1.msra.mxu0 %v301
    %883 = vmatprep.subr.mxu0 0.0
    %884 = vmatpush1.msra.mxu0 %v302
    %885 = vmatprep.subr.mxu0 0.0
    %886 = vmatpush1.msra.mxu0 %v303
    %887 = vmatprep.subr.mxu0 0.0
    %888 = vmatpush1.msra.mxu0 %v304
    %889 = vmatprep.subr.mxu0 0.0
    %890 = vmatpush1.msra.mxu0 %v305
    %891 = vmatprep.subr.mxu0 0.0
    %892 = vmatpush1.msra.mxu0 %v306
    %893 = vmatprep.subr.mxu0 0.0
    %894 = vmatpush1.msra.mxu0 %v307
    %895 = vmatprep.subr.mxu0 0.0
    %896 = vmatpush1.msra.mxu0 %v308
    %897 = vmatprep.subr.mxu0 0.0
    %898 = vmatpush1.msra.mxu0 %v309
    %899 = vmatprep.subr.mxu0 0.0
    %900 = vmatpush1.msra.mxu0 %v310
    %901 = vmatprep.subr.mxu0 0.0
    %902 = vmatpush1.msra.mxu0 %v311
    %903 = vmatprep.subr.mxu0 0.0
    %904 = vmatpush1.msra.mxu0 %v312
    %905 = vmatprep.subr.mxu0 0.0
    %906 = vmatpush1.msra.mxu0 %v313
    %907 = vmatprep.subr.mxu0 0.0
    %908 = vmatpush1.msra.mxu0 %v314
    %909 = vmatprep.subr.mxu0 0.0
    %910 = vmatpush1.msra.mxu0 %v315
    %911 = vmatprep.subr.mxu0 0.0
    %912 = vmatpush1.msra.mxu0 %v316
    %913 = vmatprep.mubr.f32.mxu0 %v44
    %914 = vmatmul.mubr.f32.gmra.mrb[0].mxu0 %v43
    %v915 = vpop.f32.mrb[0].mxu0
    %v916 = vadd.f32 %v841, %v915
    %v917 = vpop.f32.mrb[0].mxu0
    %918 = vmatprep.mubr.f32.mxu0 %v60
    %919 = vmatmul.mubr.f32.gmra.mrb[0].mxu0 %v59
    %v920 = vpop.f32.mrb[0].mxu0
    %v921 = vadd.f32 %v846, %v920
    %v922 = vpop.f32.mrb[0].mxu0
    %923 = vdwg.mxu0
    %v924 = vmax.f32 %v916, 0.0
    %v925 = vmax.f32 %v921, 0.0
    %v926 = vld [vmem:[%s3] sm:$0xff]
    %v927 = vld [vmem:[%s3 + $0x8] sm:$0xff]
    %v928 = vld [vmem:[%s3 + $0x10] sm:$0xff]
    %v929 = vld [vmem:[%s3 + $0x18] sm:$0xff]
    %v930 = vld [vmem:[%s3 + $0x20] sm:$0xff]
    %v931 = vld [vmem:[%s3 + $0x28] sm:$0xff]
    %v932 = vld [vmem:[%s3 + $0x30] sm:$0xff]
    %v933 = vld [vmem:[%s3 + $0x38] sm:$0xff]
    %v934 = vld [vmem:[%s3 + $0x40] sm:$0xff]
    %v935 = vld [vmem:[%s3 + $0x48] sm:$0xff]
    %v936 = vld [vmem:[%s3 + $0x50] sm:$0xff]
    %v937 = vld [vmem:[%s3 + $0x58] sm:$0xff]
    %v938 = vld [vmem:[%s3 + $0x60] sm:$0xff]
    %v939 = vld [vmem:[%s3 + $0x68] sm:$0xff]
    %v940 = vld [vmem:[%s3 + $0x70] sm:$0xff]
    %v941 = vld [vmem:[%s3 + $0x78] sm:$0xff]
    %v942 = vld [vmem:[%s4] sm:$0x1]
    %v944 = vlaneseq
    %v945 = vshrl.u32 %v944, 7
    %v946 = vsub.s32 0, %v945
    %v947 = vrot.slane %v942, %v946
    %949 = vmatprep.subr.mxu0 0.0
    %950 = vmatpush1.msra.mxu0 %v926
    %951 = vmatprep.subr.mxu0 0.0
    %952 = vmatpush1.msra.mxu0 %v927
    %953 = vmatprep.subr.mxu0 0.0
    %954 = vmatpush1.msra.mxu0 %v928
    %955 = vmatprep.subr.mxu0 0.0
    %956 = vmatpush1.msra.mxu0 %v929
    %957 = vmatprep.subr.mxu0 0.0
    %958 = vmatpush1.msra.mxu0 %v930
    %959 = vmatprep.subr.mxu0 0.0
    %960 = vmatpush1.msra.mxu0 %v931
    %961 = vmatprep.subr.mxu0 0.0
    %962 = vmatpush1.msra.mxu0 %v932
    %963 = vmatprep.subr.mxu0 0.0
    %964 = vmatpush1.msra.mxu0 %v933
    %965 = vmatprep.subr.mxu0 0.0
    %966 = vmatpush1.msra.mxu0 %v934
    %967 = vmatprep.subr.mxu0 0.0
    %968 = vmatpush1.msra.mxu0 %v935
    %969 = vmatprep.subr.mxu0 0.0
    %970 = vmatpush1.msra.mxu0 %v936
    %971 = vmatprep.subr.mxu0 0.0
    %972 = vmatpush1.msra.mxu0 %v937
    %973 = vmatprep.subr.mxu0 0.0
    %974 = vmatpush1.msra.mxu0 %v938
    %975 = vmatprep.subr.mxu0 0.0
    %976 = vmatpush1.msra.mxu0 %v939
    %977 = vmatprep.subr.mxu0 0.0
    %978 = vmatpush1.msra.mxu0 %v940
    %979 = vmatprep.subr.mxu0 0.0
    %980 = vmatpush1.msra.mxu0 %v941
    %981 = vmatprep.subr.mxu0 0.0
    %982 = vmatpush1.msra.mxu0 0.0
    %983 = vmatprep.subr.mxu0 0.0
    %984 = vmatpush1.msra.mxu0 0.0
    %985 = vmatprep.subr.mxu0 0.0
    %986 = vmatpush1.msra.mxu0 0.0
    %987 = vmatprep.subr.mxu0 0.0
    %988 = vmatpush1.msra.mxu0 0.0
    %989 = vmatprep.subr.mxu0 0.0
    %990 = vmatpush1.msra.mxu0 0.0
    %991 = vmatprep.subr.mxu0 0.0
    %992 = vmatpush1.msra.mxu0 0.0
    %993 = vmatprep.subr.mxu0 0.0
    %994 = vmatpush1.msra.mxu0 0.0
    %995 = vmatprep.subr.mxu0 0.0
    %996 = vmatpush1.msra.mxu0 0.0
    %997 = vmatprep.subr.mxu0 0.0
    %998 = vmatpush1.msra.mxu0 0.0
    %999 = vmatprep.subr.mxu0 0.0
    %1000 = vmatpush1.msra.mxu0 0.0
    %1001 = vmatprep.subr.mxu0 0.0
    %1002 = vmatpush1.msra.mxu0 0.0
    %1003 = vmatprep.subr.mxu0 0.0
    %1004 = vmatpush1.msra.mxu0 0.0
    %1005 = vmatprep.subr.mxu0 0.0
    %1006 = vmatpush1.msra.mxu0 0.0
    %1007 = vmatprep.subr.mxu0 0.0
    %1008 = vmatpush1.msra.mxu0 0.0
    %1009 = vmatprep.subr.mxu0 0.0
    %1010 = vmatpush1.msra.mxu0 0.0
    %1011 = vmatprep.subr.mxu0 0.0
    %1012 = vmatpush1.msra.mxu0 0.0
    %1013 = vmatprep.mubr.f32.mxu0 0.0
    %1014 = vmatmul.mubr.f32.gmra.mrb[0].mxu0 %v924
    %v1015 = vpop.f32.mrb[0].mxu0
    %v1016 = vadd.f32 %v947, %v1015
    %v1017 = vpop.f32.mrb[0].mxu0
    %1018 = vmatprep.mubr.f32.mxu0 0.0
    %1019 = vmatmul.mubr.f32.gmra.mrb[0].mxu0 %v925
    %v1020 = vpop.f32.mrb[0].mxu0
    %v1021 = vadd.f32 %v947, %v1020
    %v1022 = vpop.f32.mrb[0].mxu0
    %1023 = vdwg.mxu0
    %v1024 = vmax.f32 %v1016, 0.0
    %v1025 = vmax.f32 %v1021, 0.0
    %v1026 = vld [vmem:[%s5] sm:$0xff]
    %v1027 = vld [vmem:[%s5 + $0x8] sm:$0xff]
    %v1028 = vld [vmem:[%s5 + $0x10] sm:$0xff]
    %v1029 = vld [vmem:[%s5 + $0x18] sm:$0xff]
    %v1030 = vld [vmem:[%s5 + $0x20] sm:$0xff]
    %v1031 = vld [vmem:[%s5 + $0x28] sm:$0xff]
    %v1032 = vld [vmem:[%s5 + $0x30] sm:$0xff]
    %v1033 = vld [vmem:[%s5 + $0x38] sm:$0xff]
    %v1034 = vld [vmem:[%s5 + $0x40] sm:$0xff]
    %v1035 = vld [vmem:[%s5 + $0x48] sm:$0xff]
    %v1036 = vld [vmem:[%s5 + $0x50] sm:$0xff]
    %v1037 = vld [vmem:[%s5 + $0x58] sm:$0xff]
    %v1038 = vld [vmem:[%s5 + $0x60] sm:$0xff]
    %v1039 = vld [vmem:[%s5 + $0x68] sm:$0xff]
    %v1040 = vld [vmem:[%s5 + $0x70] sm:$0xff]
    %v1041 = vld [vmem:[%s5 + $0x78] sm:$0xff]
    %v1042 = vld [vmem:[%s6] sm:$0x1]
    %v1044 = vlaneseq
    %v1045 = vshrl.u32 %v1044, 7
    %v1046 = vsub.s32 0, %v1045
    %v1047 = vrot.slane %v1042, %v1046
    %1049 = vmatprep.subr.mxu0 0.0
    %1050 = vmatpush1.msra.mxu0 %v1026
    %1051 = vmatprep.subr.mxu0 0.0
    %1052 = vmatpush1.msra.mxu0 %v1027
    %1053 = vmatprep.subr.mxu0 0.0
    %1054 = vmatpush1.msra.mxu0 %v1028
    %1055 = vmatprep.subr.mxu0 0.0
    %1056 = vmatpush1.msra.mxu0 %v1029
    %1057 = vmatprep.subr.mxu0 0.0
    %1058 = vmatpush1.msra.mxu0 %v1030
    %1059 = vmatprep.subr.mxu0 0.0
    %1060 = vmatpush1.msra.mxu0 %v1031
    %1061 = vmatprep.subr.mxu0 0.0
    %1062 = vmatpush1.msra.mxu0 %v1032
    %1063 = vmatprep.subr.mxu0 0.0
    %1064 = vmatpush1.msra.mxu0 %v1033
    %1065 = vmatprep.subr.mxu0 0.0
    %1066 = vmatpush1.msra.mxu0 %v1034
    %1067 = vmatprep.subr.mxu0 0.0
    %1068 = vmatpush1.msra.mxu0 %v1035
    %1069 = vmatprep.subr.mxu0 0.0
    %1070 = vmatpush1.msra.mxu0 %v1036
    %1071 = vmatprep.subr.mxu0 0.0
    %1072 = vmatpush1.msra.mxu0 %v1037
    %1073 = vmatprep.subr.mxu0 0.0
    %1074 = vmatpush1.msra.mxu0 %v1038
    %1075 = vmatprep.subr.mxu0 0.0
    %1076 = vmatpush1.msra.mxu0 %v1039
    %1077 = vmatprep.subr.mxu0 0.0
    %1078 = vmatpush1.msra.mxu0 %v1040
    %1079 = vmatprep.subr.mxu0 0.0
    %1080 = vmatpush1.msra.mxu0 %v1041
    %1081 = vmatprep.subr.mxu0 0.0
    %1082 = vmatpush1.msra.mxu0 0.0
    %1083 = vmatprep.subr.mxu0 0.0
    %1084 = vmatpush1.msra.mxu0 0.0
    %1085 = vmatprep.subr.mxu0 0.0
    %1086 = vmatpush1.msra.mxu0 0.0
    %1087 = vmatprep.subr.mxu0 0.0
    %1088 = vmatpush1.msra.mxu0 0.0
    %1089 = vmatprep.subr.mxu0 0.0
    %1090 = vmatpush1.msra.mxu0 0.0
    %1091 = vmatprep.subr.mxu0 0.0
    %1092 = vmatpush1.msra.mxu0 0.0
    %1093 = vmatprep.subr.mxu0 0.0
    %1094 = vmatpush1.msra.mxu0 0.0
    %1095 = vmatprep.subr.mxu0 0.0
    %1096 = vmatpush1.msra.mxu0 0.0
    %1097 = vmatprep.subr.mxu0 0.0
    %1098 = vmatpush1.msra.mxu0 0.0
    %1099 = vmatprep.subr.mxu0 0.0
    %1100 = vmatpush1.msra.mxu0 0.0
    %1101 = vmatprep.subr.mxu0 0.0
    %1102 = vmatpush1.msra.mxu0 0.0
    %1103 = vmatprep.subr.mxu0 0.0
    %1104 = vmatpush1.msra.mxu0 0.0
    %1105 = vmatprep.subr.mxu0 0.0
    %1106 = vmatpush1.msra.mxu0 0.0
    %1107 = vmatprep.subr.mxu0 0.0
    %1108 = vmatpush1.msra.mxu0 0.0
    %1109 = vmatprep.subr.mxu0 0.0
    %1110 = vmatpush1.msra.mxu0 0.0
    %1111 = vmatprep.subr.mxu0 0.0
    %1112 = vmatpush1.msra.mxu0 0.0
    %1113 = vmatprep.mubr.f32.mxu0 0.0
    %1114 = vmatmul.mubr.f32.gmra.mrb[0].mxu0 %v1024
    %v1115 = vpop.f32.mrb[0].mxu0
    %v1116 = vadd.f32 %v1047, %v1115
    %v1117 = vpop.f32.mrb[0].mxu0
    %1118 = vmatprep.mubr.f32.mxu0 0.0
    %1119 = vmatmul.mubr.f32.gmra.mrb[0].mxu0 %v1025
    %v1120 = vpop.f32.mrb[0].mxu0
    %v1121 = vadd.f32 %v1047, %v1120
    %v1122 = vpop.f32.mrb[0].mxu0
    %1123 = vdwg.mxu0
    %1126 = vrot.lane.b32.xlu0 %v1116, 123
    %v1127 = vpop.permute.xlu0 %1126
    %1128 = vrot.lane.b32.xlu0 %v1121, 123
    %v1129 = vpop.permute.xlu0 %1128
    %vm1132 = vcmask 162816
    %1133 = vst.msk [vmem:[#allocation2] sm:$0xff] %vm1132, %v1127
    %1134 = vst.msk [vmem:[#allocation2 + $0x8] sm:$0xff] %vm1132, %v1129
    %vm1135 = vcmask 39936
    %v1136 = vsel %vm1135, %v1116, -inf
    %1137 = vmax.xlane.f32.xlu0 %v1136
    %v1138 = vpop.xlane.xlu0 %1137
    %v1139 = vsel %vm1135, %v1121, -inf
    %1140 = vmax.xlane.f32.xlu0 %v1139
    %v1141 = vpop.xlane.xlu0 %1140
    %v1142 = vsub.f32 %v1116, %v1138
    %v1143 = vsub.f32 %v1121, %v1141
    %v1144 = vmul.f32 %v1142, 1.442695
    %v1145 = vpow.pop %v1144
    %v1146 = vmul.f32 %v1143, 1.442695
    %v1147 = vpow.pop %v1146
    %v1148 = vsel %vm1135, %v1145, 0.0
    %1149 = vadd.xlane.f32.xlu0 %v1148
    %v1150 = vpop.xlane.xlu0 %1149
    %v1151 = vsel %vm1135, %v1147, 0.0
    %1152 = vadd.xlane.f32.xlu0 %v1151
    %v1153 = vpop.xlane.xlu0 %1152
    %v1154 = vrcp.pop %v1150
    %v1155 = vrcp.pop %v1153
    %v1156 = vmul.f32 %v1145, %v1154
    %v1157 = vmul.f32 %v1147, %v1155
    %1158 = vst.msk [vmem:[%s7] sm:$0xff] %vm1135, %v1156
    %1159 = vst.msk [vmem:[%s7 + $0x8] sm:$0xff] %vm1135, %v1157
    // Predicated region
    $region30: #{faster_rcnn_forward.7} parent=1 // pred_check
      _
    $region31: #{faster_rcnn_forward.7} parent=1 // pred_check_branch
      %1161 = sbr.rel (0) target = $region33
    $region32: #{faster_rcnn_forward.7} parent=1 // pred_region
      _
    $region33: #{faster_rcnn_forward.7} parent=1 // pred_fallthru
      _
    // Predicated region
    $region34: #{faster_rcnn_forward.7} parent=1 // pred_check
      _
    $region35: #{faster_rcnn_forward.7} parent=1 // pred_check_branch
      %1163 = sbr.rel (0) target = $region37
    $region36: #{faster_rcnn_forward.7} parent=1 // pred_region
      %s1165 = ssub.s32 256, 256
      %1166 = vsyncadd [#allocation3], %s1165
      %s1167 = sshll.u32 [#allocation2], 4
      %s1168 = int_to_ptr.vmem [resolvable:$true] %s1167
      %1173 = dma.vmem_to_hbm [thread:$0]  %s1168, 256, %s8, [#allocation3], 128, 128, 8
    $region37: #{faster_rcnn_forward.7} parent=1 // pred_fallthru
      _
    // Predicated region
    $region38: #{faster_rcnn_forward.7} parent=1 // pred_check
      _
    $region39: #{faster_rcnn_forward.7} parent=1 // pred_check_branch
      %1175 = sbr.rel (0) target = $region41
    $region40: #{faster_rcnn_forward.7} parent=1 // pred_region
      _
    $region41: #{faster_rcnn_forward.7} parent=1 // pred_fallthru
      _
    // Predicated region
    $region42: #{faster_rcnn_forward.7} parent=1 // pred_check
      _
    $region43: #{faster_rcnn_forward.7} parent=1 // pred_check_branch
      %1177 = sbr.rel (0) target = $region45
    $region44: #{faster_rcnn_forward.7} parent=1 // pred_region
      %1178 = dma.done [#allocation3], 256
    $region45: #{faster_rcnn_forward.7} parent=1 // pred_fallthru
      _
    %1179 = vsyncpa [#allocation3], 1

</llo_original>
